<compile_context>
chip_gen: v5e
topology: v5e:2x2
jax: 0.10.0
libtpu: 0.0.40
codegen_flags: <defaults>
</compile_context>

<pallas_src>
import jax
import jax.numpy as jnp
from jax.experimental import pallas as pl
from jax.experimental.pallas import tpu as pltpu

TILE_B = 8  # samples per grid step (multiple of 8 -> sublane-aligned slabs)


# ------------------------------ fused kernel --------------------------------

def _fused_kernel(a1_ref, w1_ref, b1_ref, w2_ref, b2_ref, w3_ref, b3_ref,
                  o_ref, pad2_ref, pad3_ref):
    """One batch tile end-to-end: conv1 -> conv2 -> conv3 -> 4x4 avg pool.

    a1_ref : (14, 14, TB, 9)   conv1 im2col patches (ho, wo, b, kh*3+kw)
    w1_ref : (9, 16)           conv1 weights, rows = kh*3+kw
    w2_ref : (3, 3, 16, 16)    conv2 weights [kh, kw, cin, cout]
    w3_ref : (3, 3, 16, 10)    conv3 weights [kh, kw, cin, cout]
    b*_ref : (1, C)            biases
    o_ref  : (TB, 10)          pooled logits
    pad2_ref / pad3_ref        VMEM scratch for zero-padded conv2/conv3 inputs
    """
    f32 = jnp.float32
    TB = o_ref.shape[0]

    w1 = w1_ref[...]
    b1 = b1_ref[...]
    w2 = w2_ref[...]
    b2 = b2_ref[...]
    w3 = w3_ref[...]
    b3 = b3_ref[...]

    # ---------------- conv1 (+ReLU): one matmul on prebuilt patches ---------
    a1 = a1_ref[...].reshape(14 * 14 * TB, 9)
    y1 = jnp.maximum(jnp.dot(a1, w1, preferred_element_type=f32) + b1, 0.0)
    y1 = y1.reshape(14, 14, TB, 16)                      # (ho, wo, b, c)

    # ---------------- conv2 (+ReLU): shift-and-accumulate over 9 taps -------
    pad2_ref[...] = jnp.zeros_like(pad2_ref)             # zero border
    pad2_ref[1:15, 1:15, :, :] = y1                      # interior = y1
    p2 = pad2_ref[...].reshape(8, 2, 16, TB, 16)         # split H -> (H/2, parity)
    acc2 = jnp.zeros((7 * 7 * TB, 16), f32)
    for kh in range(3):
        hs, hp = kh // 2, kh % 2
        rows = p2[hs:hs + 7, hp]                         # (7, 16, TB, 16)
        rows = rows.reshape(7, 8, 2, TB, 16)             # split W -> (W/2, parity)
        for kw in range(3):
            ws, wp = kw // 2, kw % 2
            xs = rows[:, ws:ws + 7, wp]                  # (7, 7, TB, 16)
            acc2 = acc2 + jnp.dot(xs.reshape(7 * 7 * TB, 16), w2[kh, kw],
                                  preferred_element_type=f32)
    y2 = jnp.maximum(acc2 + b2, 0.0).reshape(7, 7, TB, 16)

    # ---------------- conv3 (+ReLU) ------------------------------------------
    pad3_ref[...] = jnp.zeros_like(pad3_ref)
    pad3_ref[1:8, 1:8, :, :] = y2
    p3 = pad3_ref[...].reshape(5, 2, 10, TB, 16)
    acc3 = jnp.zeros((4 * 4 * TB, 10), f32)
    for kh in range(3):
        hs, hp = kh // 2, kh % 2
        rows = p3[hs:hs + 4, hp]                         # (4, 10, TB, 16)
        rows = rows.reshape(4, 5, 2, TB, 16)
        for kw in range(3):
            ws, wp = kw // 2, kw % 2
            xs = rows[:, ws:ws + 4, wp]                  # (4, 4, TB, 16)
            acc3 = acc3 + jnp.dot(xs.reshape(4 * 4 * TB, 16), w3[kh, kw],
                                  preferred_element_type=f32)
    y3 = jnp.maximum(acc3 + b3, 0.0)                     # (16*TB, 10), rows (ho,wo,b)

    # ---------------- fused 4x4 average pool --------------------------------
    o_ref[...] = jnp.mean(y3.reshape(16, TB, 10), axis=0).astype(o_ref.dtype)


# ------------------------------- JAX wrapper ---------------------------------

def _prep_params(params):
    """PyTorch-layout weights -> kernel-friendly matrices (pure weight reshapes)."""
    w1, b1 = params["conv1"]          # (16, 1, 3, 3), (16,)
    w2, b2 = params["conv2"]          # (16, 16, 3, 3), (16,)
    w3, b3 = params["conv3"]          # (10, 16, 3, 3), (10,)
    w1m = w1.reshape(16, 9).T                       # (9, 16), row = kh*3+kw
    w2m = jnp.transpose(w2, (2, 3, 1, 0))           # (3, 3, 16, 16) [kh,kw,ci,co]
    w3m = jnp.transpose(w3, (2, 3, 1, 0))           # (3, 3, 16, 10)
    return (w1m, b1.reshape(1, 16), w2m, b2.reshape(1, 16), w3m, b3.reshape(1, 10))


@jax.jit
def my_model_forward(params, xb):
    """xb: (B, 784) (or anything that views to (-1, 1, 28, 28)). Returns (B, 10)."""
    x = xb.reshape(-1, 28, 28).astype(jnp.float32)
    B = x.shape[0]
    Bp = ((B + TILE_B - 1) // TILE_B) * TILE_B

    # conv1 patch extraction on the raw input (cheap XLA glue, fuses into jit):
    # a1[ho, wo, b, kh*3+kw] = x_padded[b, 2*ho+kh, 2*wo+kw]
    xp = jnp.pad(x, ((0, Bp - B), (1, 1), (1, 1)))
    taps = [xp[:, i:i + 27:2, j:j + 27:2] for i in range(3) for j in range(3)]
    a1 = jnp.stack(taps, axis=-1).transpose(1, 2, 0, 3)   # (14, 14, Bp, 9)

    w1m, b1, w2m, b2, w3m, b3 = _prep_params(params)

    out = pl.pallas_call(
        _fused_kernel,
        out_shape=jax.ShapeDtypeStruct((Bp, 10), jnp.float32),
        grid=(Bp // TILE_B,),
        in_specs=[
            pl.BlockSpec((14, 14, TILE_B, 9), lambda i: (0, 0, i, 0)),
            pl.BlockSpec((9, 16), lambda i: (0, 0)),
            pl.BlockSpec((1, 16), lambda i: (0, 0)),
            pl.BlockSpec((3, 3, 16, 16), lambda i: (0, 0, 0, 0)),
            pl.BlockSpec((1, 16), lambda i: (0, 0)),
            pl.BlockSpec((3, 3, 16, 10), lambda i: (0, 0, 0, 0)),
            pl.BlockSpec((1, 10), lambda i: (0, 0)),
        ],
        out_specs=pl.BlockSpec((TILE_B, 10), lambda i: (i, 0)),
        scratch_shapes=[
            pltpu.VMEM((16, 16, TILE_B, 16), jnp.float32),   # padded conv2 input
            pltpu.VMEM((10, 10, TILE_B, 16), jnp.float32),   # padded conv3 input
        ],
        compiler_params=pltpu.CompilerParams(
            dimension_semantics=("parallel",)),
    )(a1, w1m, b1, w2m, b2, w3m, b3)

    return out[:B]


# --------------------------- params / reference ------------------------------

def init_params(key):
    """Deterministic parameter init matching nn.Conv2d shapes (PyTorch layout)."""
    def conv_init(k, cout, cin, ksz=3):
        kw, kb = jax.random.split(k)
        fan_in = cin * ksz * ksz
        bound = 1.0 / jnp.sqrt(fan_in)
        w = jax.random.uniform(kw, (cout, cin, ksz, ksz), jnp.float32,
                               -bound, bound)
        b = jax.random.uniform(kb, (cout,), jnp.float32, -bound, bound)
        return w, b

    k1, k2, k3 = jax.random.split(key, 3)
    return {
        "conv1": conv_init(k1, 16, 1),
        "conv2": conv_init(k2, 16, 16),
        "conv3": conv_init(k3, 10, 16),
    }


def _reference_forward(params, xb):
    x = xb.reshape(-1, 1, 28, 28)
    for name in ("conv1", "conv2", "conv3"):
        w, b = params[name]
        x = jax.lax.conv_general_dilated(
            x, w, window_strides=(2, 2), padding=((1, 1), (1, 1)),
            dimension_numbers=("NCHW", "OIHW", "NCHW"))
        x = jnp.maximum(x + b[None, :, None, None], 0.0)
    return jnp.mean(x, axis=(2, 3))


if __name__ == "__main__":
    key = jax.random.PRNGKey(0)
    kx, kp = jax.random.split(key)

    batch = 2
    xb = jax.random.normal(kx, (batch, 784), dtype=jnp.float32)
    params = init_params(kp)

    out = my_model_forward(params, xb)
    out = jax.block_until_ready(out)
    assert out.shape == (batch, 10), out.shape

    ref = _reference_forward(params, xb)
    assert jnp.allclose(out, ref, atol=1e-4, rtol=1e-4), (
        float(jnp.max(jnp.abs(out - ref))))

    print("KERNEL_OK")
</pallas_src>

<mosaic_0001>
module attributes {stable_mosaic.version = 11 : i64} {
  func.func @_fused_kernel(%arg0: i32, %arg1: memref<14x14x8x9xf32, #tpu.memory_space<vmem>>, %arg2: memref<9x16xf32, #tpu.memory_space<vmem>>, %arg3: memref<1x16xf32, #tpu.memory_space<vmem>>, %arg4: memref<3x3x16x16xf32, #tpu.memory_space<vmem>>, %arg5: memref<1x16xf32, #tpu.memory_space<vmem>>, %arg6: memref<3x3x16x10xf32, #tpu.memory_space<vmem>>, %arg7: memref<1x10xf32, #tpu.memory_space<vmem>>, %arg8: memref<8x10xf32, #tpu.memory_space<vmem>>, %arg9: memref<16x16x8x16xf32, #tpu.memory_space<vmem>>, %arg10: memref<10x10x8x16xf32, #tpu.memory_space<vmem>>) attributes {dimension_semantics = [#tpu.dimension_semantics<parallel>], iteration_bounds = array<i64: 1>, scalar_prefetch = 0 : i64, scratch_operands = 2 : i64, tpu.core_type = #tpu.core_type<tc>, window_params = [{transform_indices = @transform_0, window_bounds = array<i64: 14, 14, 8, 9>}, {pipeline_mode = #tpu.pipeline_mode<synchronous>, transform_indices = @transform_1, window_bounds = array<i64: 9, 16>}, {pipeline_mode = #tpu.pipeline_mode<synchronous>, transform_indices = @transform_2, window_bounds = array<i64: 1, 16>}, {pipeline_mode = #tpu.pipeline_mode<synchronous>, transform_indices = @transform_3, window_bounds = array<i64: 3, 3, 16, 16>}, {pipeline_mode = #tpu.pipeline_mode<synchronous>, transform_indices = @transform_4, window_bounds = array<i64: 1, 16>}, {pipeline_mode = #tpu.pipeline_mode<synchronous>, transform_indices = @transform_5, window_bounds = array<i64: 3, 3, 16, 10>}, {pipeline_mode = #tpu.pipeline_mode<synchronous>, transform_indices = @transform_6, window_bounds = array<i64: 1, 10>}, {transform_indices = @transform_7, window_bounds = array<i64: 8, 10>}]} {
    %c0 = arith.constant 0 : index
    %c0_0 = arith.constant 0 : index
    %0 = vector.load %arg2[%c0, %c0_0] : memref<9x16xf32, #tpu.memory_space<vmem>>, vector<9x16xf32>
    %c0_1 = arith.constant 0 : index
    %c0_2 = arith.constant 0 : index
    %1 = vector.load %arg3[%c0_1, %c0_2] : memref<1x16xf32, #tpu.memory_space<vmem>>, vector<1x16xf32>
    %c0_3 = arith.constant 0 : index
    %c0_4 = arith.constant 0 : index
    %c0_5 = arith.constant 0 : index
    %c0_6 = arith.constant 0 : index
    %2 = vector.load %arg4[%c0_3, %c0_4, %c0_5, %c0_6] : memref<3x3x16x16xf32, #tpu.memory_space<vmem>>, vector<3x3x16x16xf32>
    %c0_7 = arith.constant 0 : index
    %c0_8 = arith.constant 0 : index
    %3 = vector.load %arg5[%c0_7, %c0_8] : memref<1x16xf32, #tpu.memory_space<vmem>>, vector<1x16xf32>
    %c0_9 = arith.constant 0 : index
    %c0_10 = arith.constant 0 : index
    %c0_11 = arith.constant 0 : index
    %c0_12 = arith.constant 0 : index
    %4 = vector.load %arg6[%c0_9, %c0_10, %c0_11, %c0_12] : memref<3x3x16x10xf32, #tpu.memory_space<vmem>>, vector<3x3x16x10xf32>
    %c0_13 = arith.constant 0 : index
    %c0_14 = arith.constant 0 : index
    %5 = vector.load %arg7[%c0_13, %c0_14] : memref<1x10xf32, #tpu.memory_space<vmem>>, vector<1x10xf32>
    %c0_15 = arith.constant 0 : index
    %c0_16 = arith.constant 0 : index
    %c0_17 = arith.constant 0 : index
    %c0_18 = arith.constant 0 : index
    %6 = vector.load %arg1[%c0_15, %c0_16, %c0_17, %c0_18] : memref<14x14x8x9xf32, #tpu.memory_space<vmem>>, vector<14x14x8x9xf32>
    %7 = vector.shape_cast %6 : vector<14x14x8x9xf32> to vector<1568x9xf32>
    %cst = arith.constant dense<0.000000e+00> : vector<1568x16xf32>
    %8 = tpu.matmul %7, %0, %cst {dimension_numbers = #tpu.dot_dimension_numbers<[1], [0], [0], [1], [0, 0, 1, 1], [], []>} : vector<1568x9xf32>, vector<9x16xf32>, vector<1568x16xf32> -> vector<1568x16xf32>
    %9 = vector.broadcast %1 : vector<1x16xf32> to vector<1568x16xf32>
    %10 = arith.addf %8, %9 : vector<1568x16xf32>
    %cst_19 = arith.constant 0.000000e+00 : f32
    %11 = vector.broadcast %cst_19 : f32 to vector<1568x16xf32>
    %12 = arith.maximumf %10, %11 : vector<1568x16xf32>
    %13 = vector.shape_cast %12 : vector<1568x16xf32> to vector<14x14x8x16xf32>
    %cst_20 = arith.constant 0.000000e+00 : f32
    %14 = vector.broadcast %cst_20 : f32 to vector<16x16x8x16xf32>
    %c0_21 = arith.constant 0 : index
    %c0_22 = arith.constant 0 : index
    %c0_23 = arith.constant 0 : index
    %c0_24 = arith.constant 0 : index
    %15 = vector.load %arg9[%c0_21, %c0_22, %c0_23, %c0_24] : memref<16x16x8x16xf32, #tpu.memory_space<vmem>>, vector<16x16x8x16xf32>
    tpu.vector_store %arg9[%c0_21, %c0_22, %c0_23, %c0_24], %14 {strides = array<i32>} : memref<16x16x8x16xf32, #tpu.memory_space<vmem>>, vector<16x16x8x16xf32>,
    %c1 = arith.constant 1 : index
    %c1_25 = arith.constant 1 : index
    %c0_26 = arith.constant 0 : index
    %c0_27 = arith.constant 0 : index
    %16 = vector.load %arg9[%c1, %c1_25, %c0_26, %c0_27] : memref<16x16x8x16xf32, #tpu.memory_space<vmem>>, vector<14x14x8x16xf32>
    tpu.vector_store %arg9[%c1, %c1_25, %c0_26, %c0_27], %13 {strides = array<i32>} : memref<16x16x8x16xf32, #tpu.memory_space<vmem>>, vector<14x14x8x16xf32>,
    %c0_28 = arith.constant 0 : index
    %c0_29 = arith.constant 0 : index
    %c0_30 = arith.constant 0 : index
    %c0_31 = arith.constant 0 : index
    %17 = vector.load %arg9[%c0_28, %c0_29, %c0_30, %c0_31] : memref<16x16x8x16xf32, #tpu.memory_space<vmem>>, vector<16x16x8x16xf32>
    %18 = vector.shape_cast %17 : vector<16x16x8x16xf32> to vector<8x2x16x8x16xf32>
    %cst_32 = arith.constant 0.000000e+00 : f32
    %19 = vector.broadcast %cst_32 : f32 to vector<392x16xf32>
    %20 = vector.extract_strided_slice %18 {offsets = [0, 0, 0, 0, 0], sizes = [7, 1, 16, 8, 16], strides = [1, 1, 1, 1, 1]} : vector<8x2x16x8x16xf32> to vector<7x1x16x8x16xf32>
    %21 = vector.shape_cast %20 : vector<7x1x16x8x16xf32> to vector<7x16x8x16xf32>
    %22 = vector.shape_cast %21 : vector<7x16x8x16xf32> to vector<7x8x2x8x16xf32>
    %23 = vector.extract_strided_slice %22 {offsets = [0, 0, 0, 0, 0], sizes = [7, 7, 1, 8, 16], strides = [1, 1, 1, 1, 1]} : vector<7x8x2x8x16xf32> to vector<7x7x1x8x16xf32>
    %24 = vector.shape_cast %23 : vector<7x7x1x8x16xf32> to vector<7x7x8x16xf32>
    %25 = vector.shape_cast %24 : vector<7x7x8x16xf32> to vector<392x16xf32>
    %26 = vector.extract_strided_slice %2 {offsets = [0, 0, 0, 0], sizes = [1, 1, 16, 16], strides = [1, 1, 1, 1]} : vector<3x3x16x16xf32> to vector<1x1x16x16xf32>
    %27 = vector.shape_cast %26 : vector<1x1x16x16xf32> to vector<16x16xf32>
    %cst_33 = arith.constant dense<0.000000e+00> : vector<392x16xf32>
    %28 = tpu.matmul %25, %27, %cst_33 {dimension_numbers = #tpu.dot_dimension_numbers<[1], [0], [0], [1], [0, 0, 1, 1], [], []>} : vector<392x16xf32>, vector<16x16xf32>, vector<392x16xf32> -> vector<392x16xf32>
    %29 = arith.addf %19, %28 : vector<392x16xf32>
    %30 = vector.extract_strided_slice %22 {offsets = [0, 0, 1, 0, 0], sizes = [7, 7, 1, 8, 16], strides = [1, 1, 1, 1, 1]} : vector<7x8x2x8x16xf32> to vector<7x7x1x8x16xf32>
    %31 = vector.shape_cast %30 : vector<7x7x1x8x16xf32> to vector<7x7x8x16xf32>
    %32 = vector.shape_cast %31 : vector<7x7x8x16xf32> to vector<392x16xf32>
    %33 = vector.extract_strided_slice %2 {offsets = [0, 1, 0, 0], sizes = [1, 1, 16, 16], strides = [1, 1, 1, 1]} : vector<3x3x16x16xf32> to vector<1x1x16x16xf32>
    %34 = vector.shape_cast %33 : vector<1x1x16x16xf32> to vector<16x16xf32>
    %cst_34 = arith.constant dense<0.000000e+00> : vector<392x16xf32>
    %35 = tpu.matmul %32, %34, %cst_34 {dimension_numbers = #tpu.dot_dimension_numbers<[1], [0], [0], [1], [0, 0, 1, 1], [], []>} : vector<392x16xf32>, vector<16x16xf32>, vector<392x16xf32> -> vector<392x16xf32>
    %36 = arith.addf %29, %35 : vector<392x16xf32>
    %37 = vector.extract_strided_slice %22 {offsets = [0, 1, 0, 0, 0], sizes = [7, 7, 1, 8, 16], strides = [1, 1, 1, 1, 1]} : vector<7x8x2x8x16xf32> to vector<7x7x1x8x16xf32>
    %38 = vector.shape_cast %37 : vector<7x7x1x8x16xf32> to vector<7x7x8x16xf32>
    %39 = vector.shape_cast %38 : vector<7x7x8x16xf32> to vector<392x16xf32>
    %40 = vector.extract_strided_slice %2 {offsets = [0, 2, 0, 0], sizes = [1, 1, 16, 16], strides = [1, 1, 1, 1]} : vector<3x3x16x16xf32> to vector<1x1x16x16xf32>
    %41 = vector.shape_cast %40 : vector<1x1x16x16xf32> to vector<16x16xf32>
    %cst_35 = arith.constant dense<0.000000e+00> : vector<392x16xf32>
    %42 = tpu.matmul %39, %41, %cst_35 {dimension_numbers = #tpu.dot_dimension_numbers<[1], [0], [0], [1], [0, 0, 1, 1], [], []>} : vector<392x16xf32>, vector<16x16xf32>, vector<392x16xf32> -> vector<392x16xf32>
    %43 = arith.addf %36, %42 : vector<392x16xf32>
    %44 = vector.extract_strided_slice %18 {offsets = [0, 1, 0, 0, 0], sizes = [7, 1, 16, 8, 16], strides = [1, 1, 1, 1, 1]} : vector<8x2x16x8x16xf32> to vector<7x1x16x8x16xf32>
    %45 = vector.shape_cast %44 : vector<7x1x16x8x16xf32> to vector<7x16x8x16xf32>
    %46 = vector.shape_cast %45 : vector<7x16x8x16xf32> to vector<7x8x2x8x16xf32>
    %47 = vector.extract_strided_slice %46 {offsets = [0, 0, 0, 0, 0], sizes = [7, 7, 1, 8, 16], strides = [1, 1, 1, 1, 1]} : vector<7x8x2x8x16xf32> to vector<7x7x1x8x16xf32>
    %48 = vector.shape_cast %47 : vector<7x7x1x8x16xf32> to vector<7x7x8x16xf32>
    %49 = vector.shape_cast %48 : vector<7x7x8x16xf32> to vector<392x16xf32>
    %50 = vector.extract_strided_slice %2 {offsets = [1, 0, 0, 0], sizes = [1, 1, 16, 16], strides = [1, 1, 1, 1]} : vector<3x3x16x16xf32> to vector<1x1x16x16xf32>
    %51 = vector.shape_cast %50 : vector<1x1x16x16xf32> to vector<16x16xf32>
    %cst_36 = arith.constant dense<0.000000e+00> : vector<392x16xf32>
    %52 = tpu.matmul %49, %51, %cst_36 {dimension_numbers = #tpu.dot_dimension_numbers<[1], [0], [0], [1], [0, 0, 1, 1], [], []>} : vector<392x16xf32>, vector<16x16xf32>, vector<392x16xf32> -> vector<392x16xf32>
    %53 = arith.addf %43, %52 : vector<392x16xf32>
    %54 = vector.extract_strided_slice %46 {offsets = [0, 0, 1, 0, 0], sizes = [7, 7, 1, 8, 16], strides = [1, 1, 1, 1, 1]} : vector<7x8x2x8x16xf32> to vector<7x7x1x8x16xf32>
    %55 = vector.shape_cast %54 : vector<7x7x1x8x16xf32> to vector<7x7x8x16xf32>
    %56 = vector.shape_cast %55 : vector<7x7x8x16xf32> to vector<392x16xf32>
    %57 = vector.extract_strided_slice %2 {offsets = [1, 1, 0, 0], sizes = [1, 1, 16, 16], strides = [1, 1, 1, 1]} : vector<3x3x16x16xf32> to vector<1x1x16x16xf32>
    %58 = vector.shape_cast %57 : vector<1x1x16x16xf32> to vector<16x16xf32>
    %cst_37 = arith.constant dense<0.000000e+00> : vector<392x16xf32>
    %59 = tpu.matmul %56, %58, %cst_37 {dimension_numbers = #tpu.dot_dimension_numbers<[1], [0], [0], [1], [0, 0, 1, 1], [], []>} : vector<392x16xf32>, vector<16x16xf32>, vector<392x16xf32> -> vector<392x16xf32>
    %60 = arith.addf %53, %59 : vector<392x16xf32>
    %61 = vector.extract_strided_slice %46 {offsets = [0, 1, 0, 0, 0], sizes = [7, 7, 1, 8, 16], strides = [1, 1, 1, 1, 1]} : vector<7x8x2x8x16xf32> to vector<7x7x1x8x16xf32>
    %62 = vector.shape_cast %61 : vector<7x7x1x8x16xf32> to vector<7x7x8x16xf32>
    %63 = vector.shape_cast %62 : vector<7x7x8x16xf32> to vector<392x16xf32>
    %64 = vector.extract_strided_slice %2 {offsets = [1, 2, 0, 0], sizes = [1, 1, 16, 16], strides = [1, 1, 1, 1]} : vector<3x3x16x16xf32> to vector<1x1x16x16xf32>
    %65 = vector.shape_cast %64 : vector<1x1x16x16xf32> to vector<16x16xf32>
    %cst_38 = arith.constant dense<0.000000e+00> : vector<392x16xf32>
    %66 = tpu.matmul %63, %65, %cst_38 {dimension_numbers = #tpu.dot_dimension_numbers<[1], [0], [0], [1], [0, 0, 1, 1], [], []>} : vector<392x16xf32>, vector<16x16xf32>, vector<392x16xf32> -> vector<392x16xf32>
    %67 = arith.addf %60, %66 : vector<392x16xf32>
    %68 = vector.extract_strided_slice %18 {offsets = [1, 0, 0, 0, 0], sizes = [7, 1, 16, 8, 16], strides = [1, 1, 1, 1, 1]} : vector<8x2x16x8x16xf32> to vector<7x1x16x8x16xf32>
    %69 = vector.shape_cast %68 : vector<7x1x16x8x16xf32> to vector<7x16x8x16xf32>
    %70 = vector.shape_cast %69 : vector<7x16x8x16xf32> to vector<7x8x2x8x16xf32>
    %71 = vector.extract_strided_slice %70 {offsets = [0, 0, 0, 0, 0], sizes = [7, 7, 1, 8, 16], strides = [1, 1, 1, 1, 1]} : vector<7x8x2x8x16xf32> to vector<7x7x1x8x16xf32>
    %72 = vector.shape_cast %71 : vector<7x7x1x8x16xf32> to vector<7x7x8x16xf32>
    %73 = vector.shape_cast %72 : vector<7x7x8x16xf32> to vector<392x16xf32>
    %74 = vector.extract_strided_slice %2 {offsets = [2, 0, 0, 0], sizes = [1, 1, 16, 16], strides = [1, 1, 1, 1]} : vector<3x3x16x16xf32> to vector<1x1x16x16xf32>
    %75 = vector.shape_cast %74 : vector<1x1x16x16xf32> to vector<16x16xf32>
    %cst_39 = arith.constant dense<0.000000e+00> : vector<392x16xf32>
    %76 = tpu.matmul %73, %75, %cst_39 {dimension_numbers = #tpu.dot_dimension_numbers<[1], [0], [0], [1], [0, 0, 1, 1], [], []>} : vector<392x16xf32>, vector<16x16xf32>, vector<392x16xf32> -> vector<392x16xf32>
    %77 = arith.addf %67, %76 : vector<392x16xf32>
    %78 = vector.extract_strided_slice %70 {offsets = [0, 0, 1, 0, 0], sizes = [7, 7, 1, 8, 16], strides = [1, 1, 1, 1, 1]} : vector<7x8x2x8x16xf32> to vector<7x7x1x8x16xf32>
    %79 = vector.shape_cast %78 : vector<7x7x1x8x16xf32> to vector<7x7x8x16xf32>
    %80 = vector.shape_cast %79 : vector<7x7x8x16xf32> to vector<392x16xf32>
    %81 = vector.extract_strided_slice %2 {offsets = [2, 1, 0, 0], sizes = [1, 1, 16, 16], strides = [1, 1, 1, 1]} : vector<3x3x16x16xf32> to vector<1x1x16x16xf32>
    %82 = vector.shape_cast %81 : vector<1x1x16x16xf32> to vector<16x16xf32>
    %cst_40 = arith.constant dense<0.000000e+00> : vector<392x16xf32>
    %83 = tpu.matmul %80, %82, %cst_40 {dimension_numbers = #tpu.dot_dimension_numbers<[1], [0], [0], [1], [0, 0, 1, 1], [], []>} : vector<392x16xf32>, vector<16x16xf32>, vector<392x16xf32> -> vector<392x16xf32>
    %84 = arith.addf %77, %83 : vector<392x16xf32>
    %85 = vector.extract_strided_slice %70 {offsets = [0, 1, 0, 0, 0], sizes = [7, 7, 1, 8, 16], strides = [1, 1, 1, 1, 1]} : vector<7x8x2x8x16xf32> to vector<7x7x1x8x16xf32>
    %86 = vector.shape_cast %85 : vector<7x7x1x8x16xf32> to vector<7x7x8x16xf32>
    %87 = vector.shape_cast %86 : vector<7x7x8x16xf32> to vector<392x16xf32>
    %88 = vector.extract_strided_slice %2 {offsets = [2, 2, 0, 0], sizes = [1, 1, 16, 16], strides = [1, 1, 1, 1]} : vector<3x3x16x16xf32> to vector<1x1x16x16xf32>
    %89 = vector.shape_cast %88 : vector<1x1x16x16xf32> to vector<16x16xf32>
    %cst_41 = arith.constant dense<0.000000e+00> : vector<392x16xf32>
    %90 = tpu.matmul %87, %89, %cst_41 {dimension_numbers = #tpu.dot_dimension_numbers<[1], [0], [0], [1], [0, 0, 1, 1], [], []>} : vector<392x16xf32>, vector<16x16xf32>, vector<392x16xf32> -> vector<392x16xf32>
    %91 = arith.addf %84, %90 : vector<392x16xf32>
    %92 = vector.broadcast %3 : vector<1x16xf32> to vector<392x16xf32>
    %93 = arith.addf %91, %92 : vector<392x16xf32>
    %cst_42 = arith.constant 0.000000e+00 : f32
    %94 = vector.broadcast %cst_42 : f32 to vector<392x16xf32>
    %95 = arith.maximumf %93, %94 : vector<392x16xf32>
    %96 = vector.shape_cast %95 : vector<392x16xf32> to vector<7x7x8x16xf32>
    %cst_43 = arith.constant 0.000000e+00 : f32
    %97 = vector.broadcast %cst_43 : f32 to vector<10x10x8x16xf32>
    %c0_44 = arith.constant 0 : index
    %c0_45 = arith.constant 0 : index
    %c0_46 = arith.constant 0 : index
    %c0_47 = arith.constant 0 : index
    %98 = vector.load %arg10[%c0_44, %c0_45, %c0_46, %c0_47] : memref<10x10x8x16xf32, #tpu.memory_space<vmem>>, vector<10x10x8x16xf32>
    tpu.vector_store %arg10[%c0_44, %c0_45, %c0_46, %c0_47], %97 {strides = array<i32>} : memref<10x10x8x16xf32, #tpu.memory_space<vmem>>, vector<10x10x8x16xf32>,
    %c1_48 = arith.constant 1 : index
    %c1_49 = arith.constant 1 : index
    %c0_50 = arith.constant 0 : index
    %c0_51 = arith.constant 0 : index
    %99 = vector.load %arg10[%c1_48, %c1_49, %c0_50, %c0_51] : memref<10x10x8x16xf32, #tpu.memory_space<vmem>>, vector<7x7x8x16xf32>
    tpu.vector_store %arg10[%c1_48, %c1_49, %c0_50, %c0_51], %96 {strides = array<i32>} : memref<10x10x8x16xf32, #tpu.memory_space<vmem>>, vector<7x7x8x16xf32>,
    %c0_52 = arith.constant 0 : index
    %c0_53 = arith.constant 0 : index
    %c0_54 = arith.constant 0 : index
    %c0_55 = arith.constant 0 : index
    %100 = vector.load %arg10[%c0_52, %c0_53, %c0_54, %c0_55] : memref<10x10x8x16xf32, #tpu.memory_space<vmem>>, vector<10x10x8x16xf32>
    %101 = vector.shape_cast %100 : vector<10x10x8x16xf32> to vector<5x2x10x8x16xf32>
    %cst_56 = arith.constant 0.000000e+00 : f32
    %102 = vector.broadcast %cst_56 : f32 to vector<128x10xf32>
    %103 = vector.extract_strided_slice %101 {offsets = [0, 0, 0, 0, 0], sizes = [4, 1, 10, 8, 16], strides = [1, 1, 1, 1, 1]} : vector<5x2x10x8x16xf32> to vector<4x1x10x8x16xf32>
    %104 = vector.shape_cast %103 : vector<4x1x10x8x16xf32> to vector<4x10x8x16xf32>
    %105 = vector.shape_cast %104 : vector<4x10x8x16xf32> to vector<4x5x2x8x16xf32>
    %106 = vector.extract_strided_slice %105 {offsets = [0, 0, 0, 0, 0], sizes = [4, 4, 1, 8, 16], strides = [1, 1, 1, 1, 1]} : vector<4x5x2x8x16xf32> to vector<4x4x1x8x16xf32>
    %107 = vector.shape_cast %106 : vector<4x4x1x8x16xf32> to vector<4x4x8x16xf32>
    %108 = vector.shape_cast %107 : vector<4x4x8x16xf32> to vector<128x16xf32>
    %109 = vector.extract_strided_slice %4 {offsets = [0, 0, 0, 0], sizes = [1, 1, 16, 10], strides = [1, 1, 1, 1]} : vector<3x3x16x10xf32> to vector<1x1x16x10xf32>
    %110 = vector.shape_cast %109 : vector<1x1x16x10xf32> to vector<16x10xf32>
    %cst_57 = arith.constant dense<0.000000e+00> : vector<128x10xf32>
    %111 = tpu.matmul %108, %110, %cst_57 {dimension_numbers = #tpu.dot_dimension_numbers<[1], [0], [0], [1], [0, 0, 1, 1], [], []>} : vector<128x16xf32>, vector<16x10xf32>, vector<128x10xf32> -> vector<128x10xf32>
    %112 = arith.addf %102, %111 : vector<128x10xf32>
    %113 = vector.extract_strided_slice %105 {offsets = [0, 0, 1, 0, 0], sizes = [4, 4, 1, 8, 16], strides = [1, 1, 1, 1, 1]} : vector<4x5x2x8x16xf32> to vector<4x4x1x8x16xf32>
    %114 = vector.shape_cast %113 : vector<4x4x1x8x16xf32> to vector<4x4x8x16xf32>
    %115 = vector.shape_cast %114 : vector<4x4x8x16xf32> to vector<128x16xf32>
    %116 = vector.extract_strided_slice %4 {offsets = [0, 1, 0, 0], sizes = [1, 1, 16, 10], strides = [1, 1, 1, 1]} : vector<3x3x16x10xf32> to vector<1x1x16x10xf32>
    %117 = vector.shape_cast %116 : vector<1x1x16x10xf32> to vector<16x10xf32>
    %cst_58 = arith.constant dense<0.000000e+00> : vector<128x10xf32>
    %118 = tpu.matmul %115, %117, %cst_58 {dimension_numbers = #tpu.dot_dimension_numbers<[1], [0], [0], [1], [0, 0, 1, 1], [], []>} : vector<128x16xf32>, vector<16x10xf32>, vector<128x10xf32> -> vector<128x10xf32>
    %119 = arith.addf %112, %118 : vector<128x10xf32>
    %120 = vector.extract_strided_slice %105 {offsets = [0, 1, 0, 0, 0], sizes = [4, 4, 1, 8, 16], strides = [1, 1, 1, 1, 1]} : vector<4x5x2x8x16xf32> to vector<4x4x1x8x16xf32>
    %121 = vector.shape_cast %120 : vector<4x4x1x8x16xf32> to vector<4x4x8x16xf32>
    %122 = vector.shape_cast %121 : vector<4x4x8x16xf32> to vector<128x16xf32>
    %123 = vector.extract_strided_slice %4 {offsets = [0, 2, 0, 0], sizes = [1, 1, 16, 10], strides = [1, 1, 1, 1]} : vector<3x3x16x10xf32> to vector<1x1x16x10xf32>
    %124 = vector.shape_cast %123 : vector<1x1x16x10xf32> to vector<16x10xf32>
    %cst_59 = arith.constant dense<0.000000e+00> : vector<128x10xf32>
    %125 = tpu.matmul %122, %124, %cst_59 {dimension_numbers = #tpu.dot_dimension_numbers<[1], [0], [0], [1], [0, 0, 1, 1], [], []>} : vector<128x16xf32>, vector<16x10xf32>, vector<128x10xf32> -> vector<128x10xf32>
    %126 = arith.addf %119, %125 : vector<128x10xf32>
    %127 = vector.extract_strided_slice %101 {offsets = [0, 1, 0, 0, 0], sizes = [4, 1, 10, 8, 16], strides = [1, 1, 1, 1, 1]} : vector<5x2x10x8x16xf32> to vector<4x1x10x8x16xf32>
    %128 = vector.shape_cast %127 : vector<4x1x10x8x16xf32> to vector<4x10x8x16xf32>
    %129 = vector.shape_cast %128 : vector<4x10x8x16xf32> to vector<4x5x2x8x16xf32>
    %130 = vector.extract_strided_slice %129 {offsets = [0, 0, 0, 0, 0], sizes = [4, 4, 1, 8, 16], strides = [1, 1, 1, 1, 1]} : vector<4x5x2x8x16xf32> to vector<4x4x1x8x16xf32>
    %131 = vector.shape_cast %130 : vector<4x4x1x8x16xf32> to vector<4x4x8x16xf32>
    %132 = vector.shape_cast %131 : vector<4x4x8x16xf32> to vector<128x16xf32>
    %133 = vector.extract_strided_slice %4 {offsets = [1, 0, 0, 0], sizes = [1, 1, 16, 10], strides = [1, 1, 1, 1]} : vector<3x3x16x10xf32> to vector<1x1x16x10xf32>
    %134 = vector.shape_cast %133 : vector<1x1x16x10xf32> to vector<16x10xf32>
    %cst_60 = arith.constant dense<0.000000e+00> : vector<128x10xf32>
    %135 = tpu.matmul %132, %134, %cst_60 {dimension_numbers = #tpu.dot_dimension_numbers<[1], [0], [0], [1], [0, 0, 1, 1], [], []>} : vector<128x16xf32>, vector<16x10xf32>, vector<128x10xf32> -> vector<128x10xf32>
    %136 = arith.addf %126, %135 : vector<128x10xf32>
    %137 = vector.extract_strided_slice %129 {offsets = [0, 0, 1, 0, 0], sizes = [4, 4, 1, 8, 16], strides = [1, 1, 1, 1, 1]} : vector<4x5x2x8x16xf32> to vector<4x4x1x8x16xf32>
    %138 = vector.shape_cast %137 : vector<4x4x1x8x16xf32> to vector<4x4x8x16xf32>
    %139 = vector.shape_cast %138 : vector<4x4x8x16xf32> to vector<128x16xf32>
    %140 = vector.extract_strided_slice %4 {offsets = [1, 1, 0, 0], sizes = [1, 1, 16, 10], strides = [1, 1, 1, 1]} : vector<3x3x16x10xf32> to vector<1x1x16x10xf32>
    %141 = vector.shape_cast %140 : vector<1x1x16x10xf32> to vector<16x10xf32>
    %cst_61 = arith.constant dense<0.000000e+00> : vector<128x10xf32>
    %142 = tpu.matmul %139, %141, %cst_61 {dimension_numbers = #tpu.dot_dimension_numbers<[1], [0], [0], [1], [0, 0, 1, 1], [], []>} : vector<128x16xf32>, vector<16x10xf32>, vector<128x10xf32> -> vector<128x10xf32>
    %143 = arith.addf %136, %142 : vector<128x10xf32>
    %144 = vector.extract_strided_slice %129 {offsets = [0, 1, 0, 0, 0], sizes = [4, 4, 1, 8, 16], strides = [1, 1, 1, 1, 1]} : vector<4x5x2x8x16xf32> to vector<4x4x1x8x16xf32>
    %145 = vector.shape_cast %144 : vector<4x4x1x8x16xf32> to vector<4x4x8x16xf32>
    %146 = vector.shape_cast %145 : vector<4x4x8x16xf32> to vector<128x16xf32>
    %147 = vector.extract_strided_slice %4 {offsets = [1, 2, 0, 0], sizes = [1, 1, 16, 10], strides = [1, 1, 1, 1]} : vector<3x3x16x10xf32> to vector<1x1x16x10xf32>
    %148 = vector.shape_cast %147 : vector<1x1x16x10xf32> to vector<16x10xf32>
    %cst_62 = arith.constant dense<0.000000e+00> : vector<128x10xf32>
    %149 = tpu.matmul %146, %148, %cst_62 {dimension_numbers = #tpu.dot_dimension_numbers<[1], [0], [0], [1], [0, 0, 1, 1], [], []>} : vector<128x16xf32>, vector<16x10xf32>, vector<128x10xf32> -> vector<128x10xf32>
    %150 = arith.addf %143, %149 : vector<128x10xf32>
    %151 = vector.extract_strided_slice %101 {offsets = [1, 0, 0, 0, 0], sizes = [4, 1, 10, 8, 16], strides = [1, 1, 1, 1, 1]} : vector<5x2x10x8x16xf32> to vector<4x1x10x8x16xf32>
    %152 = vector.shape_cast %151 : vector<4x1x10x8x16xf32> to vector<4x10x8x16xf32>
    %153 = vector.shape_cast %152 : vector<4x10x8x16xf32> to vector<4x5x2x8x16xf32>
    %154 = vector.extract_strided_slice %153 {offsets = [0, 0, 0, 0, 0], sizes = [4, 4, 1, 8, 16], strides = [1, 1, 1, 1, 1]} : vector<4x5x2x8x16xf32> to vector<4x4x1x8x16xf32>
    %155 = vector.shape_cast %154 : vector<4x4x1x8x16xf32> to vector<4x4x8x16xf32>
    %156 = vector.shape_cast %155 : vector<4x4x8x16xf32> to vector<128x16xf32>
    %157 = vector.extract_strided_slice %4 {offsets = [2, 0, 0, 0], sizes = [1, 1, 16, 10], strides = [1, 1, 1, 1]} : vector<3x3x16x10xf32> to vector<1x1x16x10xf32>
    %158 = vector.shape_cast %157 : vector<1x1x16x10xf32> to vector<16x10xf32>
    %cst_63 = arith.constant dense<0.000000e+00> : vector<128x10xf32>
    %159 = tpu.matmul %156, %158, %cst_63 {dimension_numbers = #tpu.dot_dimension_numbers<[1], [0], [0], [1], [0, 0, 1, 1], [], []>} : vector<128x16xf32>, vector<16x10xf32>, vector<128x10xf32> -> vector<128x10xf32>
    %160 = arith.addf %150, %159 : vector<128x10xf32>
    %161 = vector.extract_strided_slice %153 {offsets = [0, 0, 1, 0, 0], sizes = [4, 4, 1, 8, 16], strides = [1, 1, 1, 1, 1]} : vector<4x5x2x8x16xf32> to vector<4x4x1x8x16xf32>
    %162 = vector.shape_cast %161 : vector<4x4x1x8x16xf32> to vector<4x4x8x16xf32>
    %163 = vector.shape_cast %162 : vector<4x4x8x16xf32> to vector<128x16xf32>
    %164 = vector.extract_strided_slice %4 {offsets = [2, 1, 0, 0], sizes = [1, 1, 16, 10], strides = [1, 1, 1, 1]} : vector<3x3x16x10xf32> to vector<1x1x16x10xf32>
    %165 = vector.shape_cast %164 : vector<1x1x16x10xf32> to vector<16x10xf32>
    %cst_64 = arith.constant dense<0.000000e+00> : vector<128x10xf32>
    %166 = tpu.matmul %163, %165, %cst_64 {dimension_numbers = #tpu.dot_dimension_numbers<[1], [0], [0], [1], [0, 0, 1, 1], [], []>} : vector<128x16xf32>, vector<16x10xf32>, vector<128x10xf32> -> vector<128x10xf32>
    %167 = arith.addf %160, %166 : vector<128x10xf32>
    %168 = vector.extract_strided_slice %153 {offsets = [0, 1, 0, 0, 0], sizes = [4, 4, 1, 8, 16], strides = [1, 1, 1, 1, 1]} : vector<4x5x2x8x16xf32> to vector<4x4x1x8x16xf32>
    %169 = vector.shape_cast %168 : vector<4x4x1x8x16xf32> to vector<4x4x8x16xf32>
    %170 = vector.shape_cast %169 : vector<4x4x8x16xf32> to vector<128x16xf32>
    %171 = vector.extract_strided_slice %4 {offsets = [2, 2, 0, 0], sizes = [1, 1, 16, 10], strides = [1, 1, 1, 1]} : vector<3x3x16x10xf32> to vector<1x1x16x10xf32>
    %172 = vector.shape_cast %171 : vector<1x1x16x10xf32> to vector<16x10xf32>
    %cst_65 = arith.constant dense<0.000000e+00> : vector<128x10xf32>
    %173 = tpu.matmul %170, %172, %cst_65 {dimension_numbers = #tpu.dot_dimension_numbers<[1], [0], [0], [1], [0, 0, 1, 1], [], []>} : vector<128x16xf32>, vector<16x10xf32>, vector<128x10xf32> -> vector<128x10xf32>
    %174 = arith.addf %167, %173 : vector<128x10xf32>
    %175 = vector.broadcast %5 : vector<1x10xf32> to vector<128x10xf32>
    %176 = arith.addf %174, %175 : vector<128x10xf32>
    %cst_66 = arith.constant 0.000000e+00 : f32
    %177 = vector.broadcast %cst_66 : f32 to vector<128x10xf32>
    %178 = arith.maximumf %176, %177 : vector<128x10xf32>
    %179 = vector.shape_cast %178 : vector<128x10xf32> to vector<16x8x10xf32>
    %cst_67 = arith.constant dense<0.000000e+00> : vector<8x10xf32>
    %180 = vector.multi_reduction <add>, %179, %cst_67 [0] : vector<16x8x10xf32> to vector<8x10xf32>
    %cst_68 = arith.constant 1.600000e+01 : f32
    %181 = vector.broadcast %cst_68 : f32 to vector<8x10xf32>
    %182 = arith.divf %180, %181 : vector<8x10xf32>
    %c0_69 = arith.constant 0 : index
    %c0_70 = arith.constant 0 : index
    %183 = vector.load %arg8[%c0_69, %c0_70] : memref<8x10xf32, #tpu.memory_space<vmem>>, vector<8x10xf32>
    tpu.vector_store %arg8[%c0_69, %c0_70], %182 {strides = array<i32>} : memref<8x10xf32, #tpu.memory_space<vmem>>, vector<8x10xf32>,
    return
  }
  func.func @transform_0(%arg0: i32) -> (i32, i32, i32, i32) {
    %c0_i32 = arith.constant 0 : i32
    %c0_i32_0 = arith.constant 0 : i32
    %c0_i32_1 = arith.constant 0 : i32
    %c0_i32_2 = arith.constant 0 : i32
    return %c0_i32, %c0_i32_0, %arg0, %c0_i32_1 : i32, i32, i32, i32
  }
  func.func @transform_1(%arg0: i32) -> (i32, i32) {
    %c0_i32 = arith.constant 0 : i32
    %c0_i32_0 = arith.constant 0 : i32
    %c0_i32_1 = arith.constant 0 : i32
    return %c0_i32, %c0_i32_0 : i32, i32
  }
  func.func @transform_2(%arg0: i32) -> (i32, i32) {
    %c0_i32 = arith.constant 0 : i32
    %c0_i32_0 = arith.constant 0 : i32
    %c0_i32_1 = arith.constant 0 : i32
    return %c0_i32, %c0_i32_0 : i32, i32
  }
  func.func @transform_3(%arg0: i32) -> (i32, i32, i32, i32) {
    %c0_i32 = arith.constant 0 : i32
    %c0_i32_0 = arith.constant 0 : i32
    %c0_i32_1 = arith.constant 0 : i32
    %c0_i32_2 = arith.constant 0 : i32
    %c0_i32_3 = arith.constant 0 : i32
    return %c0_i32, %c0_i32_0, %c0_i32_1, %c0_i32_2 : i32, i32, i32, i32
  }
  func.func @transform_4(%arg0: i32) -> (i32, i32) {
    %c0_i32 = arith.constant 0 : i32
    %c0_i32_0 = arith.constant 0 : i32
    %c0_i32_1 = arith.constant 0 : i32
    return %c0_i32, %c0_i32_0 : i32, i32
  }
  func.func @transform_5(%arg0: i32) -> (i32, i32, i32, i32) {
    %c0_i32 = arith.constant 0 : i32
    %c0_i32_0 = arith.constant 0 : i32
    %c0_i32_1 = arith.constant 0 : i32
    %c0_i32_2 = arith.constant 0 : i32
    %c0_i32_3 = arith.constant 0 : i32
    return %c0_i32, %c0_i32_0, %c0_i32_1, %c0_i32_2 : i32, i32, i32, i32
  }
  func.func @transform_6(%arg0: i32) -> (i32, i32) {
    %c0_i32 = arith.constant 0 : i32
    %c0_i32_0 = arith.constant 0 : i32
    %c0_i32_1 = arith.constant 0 : i32
    return %c0_i32, %c0_i32_0 : i32, i32
  }
  func.func @transform_7(%arg0: i32) -> (i32, i32) {
    %c0_i32 = arith.constant 0 : i32
    %c0_i32_0 = arith.constant 0 : i32
    return %arg0, %c0_i32 : i32, i32
  }
}

</mosaic_0001>

<llo_original>
// kernel: my_model_forward.1
$region0: #{my_model_forward.1}
  #allocation0 [shape = 'u32[]', space=smem, size = 0x4, offset = 0x4, fixed_abs, tag = 'smem constant byte address 0x4 - core index']
  #allocation1 [shape = 'u32[72,128]{1,0:T(1,128)}', space=vmem, size = 0x9000, scoped, tag = 'internal scratch']
  #allocation2 [shape = 'f32[16,16,8,16]{3,2,1,0:T(8,128)}', space=vmem, size = 0x100000, scoped, tag = 'scratch operand']
  #allocation3 [shape = 'f32[10,10,8,16]{3,2,1,0:T(8,128)}', space=vmem, size = 0x64000, scoped, tag = 'scratch operand']
  %s0 = inlined_call_operand.vmem [shape: f32[14,14,8,9], index: 0, kind: input, shape index: {}]
  %s1 = inlined_call_operand.vmem [shape: f32[9,16], index: 1, kind: input, shape index: {}]
  %s2 = inlined_call_operand.vmem [shape: f32[1,16], index: 2, kind: input, shape index: {}]
  %s3 = inlined_call_operand.vmem [shape: f32[3,3,16,16], index: 3, kind: input, shape index: {}]
  %s4 = inlined_call_operand.vmem [shape: f32[1,16], index: 4, kind: input, shape index: {}]
  %s5 = inlined_call_operand.vmem [shape: f32[3,3,16,10], index: 5, kind: input, shape index: {}]
  %s6 = inlined_call_operand.vmem [shape: f32[1,10], index: 6, kind: input, shape index: {}]
  %s7 = inlined_call_operand.vmem [shape: f32[8,10], index: 7, kind: output, shape index: {}]
  %s8 = sld [smem:[#allocation0]]
  $region38: #{my_model_forward.1} parent=0
    _
  %s10 = ssub.s32 1, %s8
  %s11 = scalar_select 0, %s10, %s8
  // Predicated region
  $region2: #{my_model_forward.1} parent=0 // pred_check
    _
  $region3: #{my_model_forward.1} parent=0 // pred_check_branch
    %13 = sbr.rel (0) target = $region5
  $region4: #{my_model_forward.1} parent=0 // pred_region
    _
  $region5: #{my_model_forward.1} parent=0 // pred_fallthru
    _
  // Predicated region
  $region6: #{my_model_forward.1} parent=0 // pred_check
    _
  $region7: #{my_model_forward.1} parent=0 // pred_check_branch
    %15 = sbr.rel (0) target = $region9
  $region8: #{my_model_forward.1} parent=0 // pred_region
    _
  $region9: #{my_model_forward.1} parent=0 // pred_fallthru
    _
  // Predicated region
  $region10: #{my_model_forward.1} parent=0 // pred_check
    _
  $region11: #{my_model_forward.1} parent=0 // pred_check_branch
    %17 = sbr.rel (0) target = $region13
  $region12: #{my_model_forward.1} parent=0 // pred_region
    _
  $region13: #{my_model_forward.1} parent=0 // pred_fallthru
    _
  // Predicated region
  $region14: #{my_model_forward.1} parent=0 // pred_check
    _
  $region15: #{my_model_forward.1} parent=0 // pred_check_branch
    %19 = sbr.rel (0) target = $region17
  $region16: #{my_model_forward.1} parent=0 // pred_region
    _
  $region17: #{my_model_forward.1} parent=0 // pred_fallthru
    _
  // Predicated region
  $region18: #{my_model_forward.1} parent=0 // pred_check
    _
  $region19: #{my_model_forward.1} parent=0 // pred_check_branch
    %21 = sbr.rel (0) target = $region21
  $region20: #{my_model_forward.1} parent=0 // pred_region
    _
  $region21: #{my_model_forward.1} parent=0 // pred_fallthru
    _
  // Predicated region
  $region22: #{my_model_forward.1} parent=0 // pred_check
    _
  $region23: #{my_model_forward.1} parent=0 // pred_check_branch
    %23 = sbr.rel (0) target = $region25
  $region24: #{my_model_forward.1} parent=0 // pred_region
    _
  $region25: #{my_model_forward.1} parent=0 // pred_fallthru
    _
  // Predicated region
  $region26: #{my_model_forward.1} parent=0 // pred_check
    _
  $region27: #{my_model_forward.1} parent=0 // pred_check_branch
    %25 = sbr.rel (0) target = $region29
  $region28: #{my_model_forward.1} parent=0 // pred_region
    _
  $region29: #{my_model_forward.1} parent=0 // pred_fallthru
    _
  %v26 = vld [vmem:[%s1] sm:$0xff]
  %v27 = vld [vmem:[%s1 + $0x8] sm:$0x1]
  %v28 = vld [vmem:[%s2] sm:$0x1]
  %v29 = vld [vmem:[%s3] sm:$0xff]
  %v30 = vld [vmem:[%s3 + $0x8] sm:$0xff]
  %v31 = vld [vmem:[%s3 + $0x10] sm:$0xff]
  %v32 = vld [vmem:[%s3 + $0x18] sm:$0xff]
  %v33 = vld [vmem:[%s3 + $0x20] sm:$0xff]
  %v34 = vld [vmem:[%s3 + $0x28] sm:$0xff]
  %v35 = vld [vmem:[%s3 + $0x30] sm:$0xff]
  %v36 = vld [vmem:[%s3 + $0x38] sm:$0xff]
  %v37 = vld [vmem:[%s3 + $0x40] sm:$0xff]
  %v38 = vld [vmem:[%s3 + $0x48] sm:$0xff]
  %v39 = vld [vmem:[%s3 + $0x50] sm:$0xff]
  %v40 = vld [vmem:[%s3 + $0x58] sm:$0xff]
  %v41 = vld [vmem:[%s3 + $0x60] sm:$0xff]
  %v42 = vld [vmem:[%s3 + $0x68] sm:$0xff]
  %v43 = vld [vmem:[%s3 + $0x70] sm:$0xff]
  %v44 = vld [vmem:[%s3 + $0x78] sm:$0xff]
  %v45 = vld [vmem:[%s3 + $0x80] sm:$0xff]
  %v46 = vld [vmem:[%s3 + $0x88] sm:$0xff]
  %v47 = vld [vmem:[%s4] sm:$0x1]
  %v48 = vld [vmem:[%s5] sm:$0xff]
  %v49 = vld [vmem:[%s5 + $0x8] sm:$0xff]
  %v50 = vld [vmem:[%s5 + $0x10] sm:$0xff]
  %v51 = vld [vmem:[%s5 + $0x18] sm:$0xff]
  %v52 = vld [vmem:[%s5 + $0x20] sm:$0xff]
  %v53 = vld [vmem:[%s5 + $0x28] sm:$0xff]
  %v54 = vld [vmem:[%s5 + $0x30] sm:$0xff]
  %v55 = vld [vmem:[%s5 + $0x38] sm:$0xff]
  %v56 = vld [vmem:[%s5 + $0x40] sm:$0xff]
  %v57 = vld [vmem:[%s5 + $0x48] sm:$0xff]
  %v58 = vld [vmem:[%s5 + $0x50] sm:$0xff]
  %v59 = vld [vmem:[%s5 + $0x58] sm:$0xff]
  %v60 = vld [vmem:[%s5 + $0x60] sm:$0xff]
  %v61 = vld [vmem:[%s5 + $0x68] sm:$0xff]
  %v62 = vld [vmem:[%s5 + $0x70] sm:$0xff]
  %v63 = vld [vmem:[%s5 + $0x78] sm:$0xff]
  %v64 = vld [vmem:[%s5 + $0x80] sm:$0xff]
  %v65 = vld [vmem:[%s5 + $0x88] sm:$0xff]
  %v66 = vld [vmem:[%s6] sm:$0x1]
  %v67 = vld [vmem:[%s0] sm:$0xff]
  %v68 = vld [vmem:[%s0 + $0x8] sm:$0xff]
  %v69 = vld [vmem:[%s0 + $0x10] sm:$0xff]
  %v70 = vld [vmem:[%s0 + $0x18] sm:$0xff]
  %v71 = vld [vmem:[%s0 + $0x20] sm:$0xff]
  %v72 = vld [vmem:[%s0 + $0x28] sm:$0xff]
  %v73 = vld [vmem:[%s0 + $0x30] sm:$0xff]
  %v74 = vld [vmem:[%s0 + $0x38] sm:$0xff]
  %v75 = vld [vmem:[%s0 + $0x40] sm:$0xff]
  %v76 = vld [vmem:[%s0 + $0x48] sm:$0xff]
  %v77 = vld [vmem:[%s0 + $0x50] sm:$0xff]
  %v78 = vld [vmem:[%s0 + $0x58] sm:$0xff]
  %v79 = vld [vmem:[%s0 + $0x60] sm:$0xff]
  %v80 = vld [vmem:[%s0 + $0x68] sm:$0xff]
  %v81 = vld [vmem:[%s0 + $0x70] sm:$0xff]
  %v82 = vld [vmem:[%s0 + $0x78] sm:$0xff]
  %v83 = vld [vmem:[%s0 + $0x80] sm:$0xff]
  %v84 = vld [vmem:[%s0 + $0x88] sm:$0xff]
  %v85 = vld [vmem:[%s0 + $0x90] sm:$0xff]
  %v86 = vld [vmem:[%s0 + $0x98] sm:$0xff]
  %v87 = vld [vmem:[%s0 + $0xa0] sm:$0xff]
  %v88 = vld [vmem:[%s0 + $0xa8] sm:$0xff]
  %v89 = vld [vmem:[%s0 + $0xb0] sm:$0xff]
  %v90 = vld [vmem:[%s0 + $0xb8] sm:$0xff]
  %v91 = vld [vmem:[%s0 + $0xc0] sm:$0xff]
  %v92 = vld [vmem:[%s0 + $0xc8] sm:$0xff]
  %v93 = vld [vmem:[%s0 + $0xd0] sm:$0xff]
  %v94 = vld [vmem:[%s0 + $0xd8] sm:$0xff]
  %v95 = vld [vmem:[%s0 + $0xe0] sm:$0xff]
  %v96 = vld [vmem:[%s0 + $0xe8] sm:$0xff]
  %v97 = vld [vmem:[%s0 + $0xf0] sm:$0xff]
  %v98 = vld [vmem:[%s0 + $0xf8] sm:$0xff]
  %v99 = vld [vmem:[%s0 + $0x100] sm:$0xff]
  %v100 = vld [vmem:[%s0 + $0x108] sm:$0xff]
  %v101 = vld [vmem:[%s0 + $0x110] sm:$0xff]
  %v102 = vld [vmem:[%s0 + $0x118] sm:$0xff]
  %v103 = vld [vmem:[%s0 + $0x120] sm:$0xff]
  %v104 = vld [vmem:[%s0 + $0x128] sm:$0xff]
  %v105 = vld [vmem:[%s0 + $0x130] sm:$0xff]
  %v106 = vld [vmem:[%s0 + $0x138] sm:$0xff]
  %v107 = vld [vmem:[%s0 + $0x140] sm:$0xff]
  %v108 = vld [vmem:[%s0 + $0x148] sm:$0xff]
  %v109 = vld [vmem:[%s0 + $0x150] sm:$0xff]
  %v110 = vld [vmem:[%s0 + $0x158] sm:$0xff]
  %v111 = vld [vmem:[%s0 + $0x160] sm:$0xff]
  %v112 = vld [vmem:[%s0 + $0x168] sm:$0xff]
  %v113 = vld [vmem:[%s0 + $0x170] sm:$0xff]
  %v114 = vld [vmem:[%s0 + $0x178] sm:$0xff]
  %v115 = vld [vmem:[%s0 + $0x180] sm:$0xff]
  %v116 = vld [vmem:[%s0 + $0x188] sm:$0xff]
  %v117 = vld [vmem:[%s0 + $0x190] sm:$0xff]
  %v118 = vld [vmem:[%s0 + $0x198] sm:$0xff]
  %v119 = vld [vmem:[%s0 + $0x1a0] sm:$0xff]
  %v120 = vld [vmem:[%s0 + $0x1a8] sm:$0xff]
  %v121 = vld [vmem:[%s0 + $0x1b0] sm:$0xff]
  %v122 = vld [vmem:[%s0 + $0x1b8] sm:$0xff]
  %v123 = vld [vmem:[%s0 + $0x1c0] sm:$0xff]
  %v124 = vld [vmem:[%s0 + $0x1c8] sm:$0xff]
  %v125 = vld [vmem:[%s0 + $0x1d0] sm:$0xff]
  %v126 = vld [vmem:[%s0 + $0x1d8] sm:$0xff]
  %v127 = vld [vmem:[%s0 + $0x1e0] sm:$0xff]
  %v128 = vld [vmem:[%s0 + $0x1e8] sm:$0xff]
  %v129 = vld [vmem:[%s0 + $0x1f0] sm:$0xff]
  %v130 = vld [vmem:[%s0 + $0x1f8] sm:$0xff]
  %v131 = vld [vmem:[%s0 + $0x200] sm:$0xff]
  %v132 = vld [vmem:[%s0 + $0x208] sm:$0xff]
  %v133 = vld [vmem:[%s0 + $0x210] sm:$0xff]
  %v134 = vld [vmem:[%s0 + $0x218] sm:$0xff]
  %v135 = vld [vmem:[%s0 + $0x220] sm:$0xff]
  %v136 = vld [vmem:[%s0 + $0x228] sm:$0xff]
  %v137 = vld [vmem:[%s0 + $0x230] sm:$0xff]
  %v138 = vld [vmem:[%s0 + $0x238] sm:$0xff]
  %v139 = vld [vmem:[%s0 + $0x240] sm:$0xff]
  %v140 = vld [vmem:[%s0 + $0x248] sm:$0xff]
  %v141 = vld [vmem:[%s0 + $0x250] sm:$0xff]
  %v142 = vld [vmem:[%s0 + $0x258] sm:$0xff]
  %v143 = vld [vmem:[%s0 + $0x260] sm:$0xff]
  %v144 = vld [vmem:[%s0 + $0x268] sm:$0xff]
  %v145 = vld [vmem:[%s0 + $0x270] sm:$0xff]
  %v146 = vld [vmem:[%s0 + $0x278] sm:$0xff]
  %v147 = vld [vmem:[%s0 + $0x280] sm:$0xff]
  %v148 = vld [vmem:[%s0 + $0x288] sm:$0xff]
  %v149 = vld [vmem:[%s0 + $0x290] sm:$0xff]
  %v150 = vld [vmem:[%s0 + $0x298] sm:$0xff]
  %v151 = vld [vmem:[%s0 + $0x2a0] sm:$0xff]
  %v152 = vld [vmem:[%s0 + $0x2a8] sm:$0xff]
  %v153 = vld [vmem:[%s0 + $0x2b0] sm:$0xff]
  %v154 = vld [vmem:[%s0 + $0x2b8] sm:$0xff]
  %v155 = vld [vmem:[%s0 + $0x2c0] sm:$0xff]
  %v156 = vld [vmem:[%s0 + $0x2c8] sm:$0xff]
  %v157 = vld [vmem:[%s0 + $0x2d0] sm:$0xff]
  %v158 = vld [vmem:[%s0 + $0x2d8] sm:$0xff]
  %v159 = vld [vmem:[%s0 + $0x2e0] sm:$0xff]
  %v160 = vld [vmem:[%s0 + $0x2e8] sm:$0xff]
  %v161 = vld [vmem:[%s0 + $0x2f0] sm:$0xff]
  %v162 = vld [vmem:[%s0 + $0x2f8] sm:$0xff]
  %v163 = vld [vmem:[%s0 + $0x300] sm:$0xff]
  %v164 = vld [vmem:[%s0 + $0x308] sm:$0xff]
  %v165 = vld [vmem:[%s0 + $0x310] sm:$0xff]
  %v166 = vld [vmem:[%s0 + $0x318] sm:$0xff]
  %v167 = vld [vmem:[%s0 + $0x320] sm:$0xff]
  %v168 = vld [vmem:[%s0 + $0x328] sm:$0xff]
  %v169 = vld [vmem:[%s0 + $0x330] sm:$0xff]
  %v170 = vld [vmem:[%s0 + $0x338] sm:$0xff]
  %v171 = vld [vmem:[%s0 + $0x340] sm:$0xff]
  %v172 = vld [vmem:[%s0 + $0x348] sm:$0xff]
  %v173 = vld [vmem:[%s0 + $0x350] sm:$0xff]
  %v174 = vld [vmem:[%s0 + $0x358] sm:$0xff]
  %v175 = vld [vmem:[%s0 + $0x360] sm:$0xff]
  %v176 = vld [vmem:[%s0 + $0x368] sm:$0xff]
  %v177 = vld [vmem:[%s0 + $0x370] sm:$0xff]
  %v178 = vld [vmem:[%s0 + $0x378] sm:$0xff]
  %v179 = vld [vmem:[%s0 + $0x380] sm:$0xff]
  %v180 = vld [vmem:[%s0 + $0x388] sm:$0xff]
  %v181 = vld [vmem:[%s0 + $0x390] sm:$0xff]
  %v182 = vld [vmem:[%s0 + $0x398] sm:$0xff]
  %v183 = vld [vmem:[%s0 + $0x3a0] sm:$0xff]
  %v184 = vld [vmem:[%s0 + $0x3a8] sm:$0xff]
  %v185 = vld [vmem:[%s0 + $0x3b0] sm:$0xff]
  %v186 = vld [vmem:[%s0 + $0x3b8] sm:$0xff]
  %v187 = vld [vmem:[%s0 + $0x3c0] sm:$0xff]
  %v188 = vld [vmem:[%s0 + $0x3c8] sm:$0xff]
  %v189 = vld [vmem:[%s0 + $0x3d0] sm:$0xff]
  %v190 = vld [vmem:[%s0 + $0x3d8] sm:$0xff]
  %v191 = vld [vmem:[%s0 + $0x3e0] sm:$0xff]
  %v192 = vld [vmem:[%s0 + $0x3e8] sm:$0xff]
  %v193 = vld [vmem:[%s0 + $0x3f0] sm:$0xff]
  %v194 = vld [vmem:[%s0 + $0x3f8] sm:$0xff]
  %v195 = vld [vmem:[%s0 + $0x400] sm:$0xff]
  %v196 = vld [vmem:[%s0 + $0x408] sm:$0xff]
  %v197 = vld [vmem:[%s0 + $0x410] sm:$0xff]
  %v198 = vld [vmem:[%s0 + $0x418] sm:$0xff]
  %v199 = vld [vmem:[%s0 + $0x420] sm:$0xff]
  %v200 = vld [vmem:[%s0 + $0x428] sm:$0xff]
  %v201 = vld [vmem:[%s0 + $0x430] sm:$0xff]
  %v202 = vld [vmem:[%s0 + $0x438] sm:$0xff]
  %v203 = vld [vmem:[%s0 + $0x440] sm:$0xff]
  %v204 = vld [vmem:[%s0 + $0x448] sm:$0xff]
  %v205 = vld [vmem:[%s0 + $0x450] sm:$0xff]
  %v206 = vld [vmem:[%s0 + $0x458] sm:$0xff]
  %v207 = vld [vmem:[%s0 + $0x460] sm:$0xff]
  %v208 = vld [vmem:[%s0 + $0x468] sm:$0xff]
  %v209 = vld [vmem:[%s0 + $0x470] sm:$0xff]
  %v210 = vld [vmem:[%s0 + $0x478] sm:$0xff]
  %v211 = vld [vmem:[%s0 + $0x480] sm:$0xff]
  %v212 = vld [vmem:[%s0 + $0x488] sm:$0xff]
  %v213 = vld [vmem:[%s0 + $0x490] sm:$0xff]
  %v214 = vld [vmem:[%s0 + $0x498] sm:$0xff]
  %v215 = vld [vmem:[%s0 + $0x4a0] sm:$0xff]
  %v216 = vld [vmem:[%s0 + $0x4a8] sm:$0xff]
  %v217 = vld [vmem:[%s0 + $0x4b0] sm:$0xff]
  %v218 = vld [vmem:[%s0 + $0x4b8] sm:$0xff]
  %v219 = vld [vmem:[%s0 + $0x4c0] sm:$0xff]
  %v220 = vld [vmem:[%s0 + $0x4c8] sm:$0xff]
  %v221 = vld [vmem:[%s0 + $0x4d0] sm:$0xff]
  %v222 = vld [vmem:[%s0 + $0x4d8] sm:$0xff]
  %v223 = vld [vmem:[%s0 + $0x4e0] sm:$0xff]
  %v224 = vld [vmem:[%s0 + $0x4e8] sm:$0xff]
  %v225 = vld [vmem:[%s0 + $0x4f0] sm:$0xff]
  %v226 = vld [vmem:[%s0 + $0x4f8] sm:$0xff]
  %v227 = vld [vmem:[%s0 + $0x500] sm:$0xff]
  %v228 = vld [vmem:[%s0 + $0x508] sm:$0xff]
  %v229 = vld [vmem:[%s0 + $0x510] sm:$0xff]
  %v230 = vld [vmem:[%s0 + $0x518] sm:$0xff]
  %v231 = vld [vmem:[%s0 + $0x520] sm:$0xff]
  %v232 = vld [vmem:[%s0 + $0x528] sm:$0xff]
  %v233 = vld [vmem:[%s0 + $0x530] sm:$0xff]
  %v234 = vld [vmem:[%s0 + $0x538] sm:$0xff]
  %v235 = vld [vmem:[%s0 + $0x540] sm:$0xff]
  %v236 = vld [vmem:[%s0 + $0x548] sm:$0xff]
  %v237 = vld [vmem:[%s0 + $0x550] sm:$0xff]
  %v238 = vld [vmem:[%s0 + $0x558] sm:$0xff]
  %v239 = vld [vmem:[%s0 + $0x560] sm:$0xff]
  %v240 = vld [vmem:[%s0 + $0x568] sm:$0xff]
  %v241 = vld [vmem:[%s0 + $0x570] sm:$0xff]
  %v242 = vld [vmem:[%s0 + $0x578] sm:$0xff]
  %v243 = vld [vmem:[%s0 + $0x580] sm:$0xff]
  %v244 = vld [vmem:[%s0 + $0x588] sm:$0xff]
  %v245 = vld [vmem:[%s0 + $0x590] sm:$0xff]
  %v246 = vld [vmem:[%s0 + $0x598] sm:$0xff]
  %v247 = vld [vmem:[%s0 + $0x5a0] sm:$0xff]
  %v248 = vld [vmem:[%s0 + $0x5a8] sm:$0xff]
  %v249 = vld [vmem:[%s0 + $0x5b0] sm:$0xff]
  %v250 = vld [vmem:[%s0 + $0x5b8] sm:$0xff]
  %v251 = vld [vmem:[%s0 + $0x5c0] sm:$0xff]
  %v252 = vld [vmem:[%s0 + $0x5c8] sm:$0xff]
  %v253 = vld [vmem:[%s0 + $0x5d0] sm:$0xff]
  %v254 = vld [vmem:[%s0 + $0x5d8] sm:$0xff]
  %v255 = vld [vmem:[%s0 + $0x5e0] sm:$0xff]
  %v256 = vld [vmem:[%s0 + $0x5e8] sm:$0xff]
  %v257 = vld [vmem:[%s0 + $0x5f0] sm:$0xff]
  %v258 = vld [vmem:[%s0 + $0x5f8] sm:$0xff]
  %v259 = vld [vmem:[%s0 + $0x600] sm:$0xff]
  %v260 = vld [vmem:[%s0 + $0x608] sm:$0xff]
  %v261 = vld [vmem:[%s0 + $0x610] sm:$0xff]
  %v262 = vld [vmem:[%s0 + $0x618] sm:$0xff]
  %v264 = vperm.slane %v28, 0
  %vm266 = vcmask 72704
  %v268 = vsel %vm266, %v67, 0
  %v271 = vsel %vm266, %v68, 0
  %v274 = vsel %vm266, %v69, 0
  %v277 = vsel %vm266, %v70, 0
  %v280 = vsel %vm266, %v71, 0
  %v283 = vsel %vm266, %v72, 0
  %v286 = vsel %vm266, %v73, 0
  %v289 = vsel %vm266, %v74, 0
  %v292 = vsel %vm266, %v75, 0
  %v295 = vsel %vm266, %v76, 0
  %v298 = vsel %vm266, %v77, 0
  %v301 = vsel %vm266, %v78, 0
  %v304 = vsel %vm266, %v79, 0
  %v307 = vsel %vm266, %v80, 0
  %v310 = vsel %vm266, %v81, 0
  %v313 = vsel %vm266, %v82, 0
  %v316 = vsel %vm266, %v83, 0
  %v319 = vsel %vm266, %v84, 0
  %v322 = vsel %vm266, %v85, 0
  %v325 = vsel %vm266, %v86, 0
  %v328 = vsel %vm266, %v87, 0
  %v331 = vsel %vm266, %v88, 0
  %v334 = vsel %vm266, %v89, 0
  %v337 = vsel %vm266, %v90, 0
  %v340 = vsel %vm266, %v91, 0
  %v343 = vsel %vm266, %v92, 0
  %v346 = vsel %vm266, %v93, 0
  %v349 = vsel %vm266, %v94, 0
  %v352 = vsel %vm266, %v95, 0
  %v355 = vsel %vm266, %v96, 0
  %v358 = vsel %vm266, %v97, 0
  %v361 = vsel %vm266, %v98, 0
  %v364 = vsel %vm266, %v99, 0
  %v367 = vsel %vm266, %v100, 0
  %v370 = vsel %vm266, %v101, 0
  %v373 = vsel %vm266, %v102, 0
  %v376 = vsel %vm266, %v103, 0
  %v379 = vsel %vm266, %v104, 0
  %v382 = vsel %vm266, %v105, 0
  %v385 = vsel %vm266, %v106, 0
  %v388 = vsel %vm266, %v107, 0
  %v391 = vsel %vm266, %v108, 0
  %v394 = vsel %vm266, %v109, 0
  %v397 = vsel %vm266, %v110, 0
  %v400 = vsel %vm266, %v111, 0
  %v403 = vsel %vm266, %v112, 0
  %v406 = vsel %vm266, %v113, 0
  %v409 = vsel %vm266, %v114, 0
  %v412 = vsel %vm266, %v115, 0
  %v415 = vsel %vm266, %v116, 0
  %v418 = vsel %vm266, %v117, 0
  %v421 = vsel %vm266, %v118, 0
  %v424 = vsel %vm266, %v119, 0
  %v427 = vsel %vm266, %v120, 0
  %v430 = vsel %vm266, %v121, 0
  %v433 = vsel %vm266, %v122, 0
  %v436 = vsel %vm266, %v123, 0
  %v439 = vsel %vm266, %v124, 0
  %v442 = vsel %vm266, %v125, 0
  %v445 = vsel %vm266, %v126, 0
  %v448 = vsel %vm266, %v127, 0
  %v451 = vsel %vm266, %v128, 0
  %v454 = vsel %vm266, %v129, 0
  %v457 = vsel %vm266, %v130, 0
  %v460 = vsel %vm266, %v131, 0
  %v463 = vsel %vm266, %v132, 0
  %v466 = vsel %vm266, %v133, 0
  %v469 = vsel %vm266, %v134, 0
  %v472 = vsel %vm266, %v135, 0
  %v475 = vsel %vm266, %v136, 0
  %v478 = vsel %vm266, %v137, 0
  %v481 = vsel %vm266, %v138, 0
  %v484 = vsel %vm266, %v139, 0
  %v487 = vsel %vm266, %v140, 0
  %v490 = vsel %vm266, %v141, 0
  %v493 = vsel %vm266, %v142, 0
  %v496 = vsel %vm266, %v143, 0
  %v499 = vsel %vm266, %v144, 0
  %v502 = vsel %vm266, %v145, 0
  %v505 = vsel %vm266, %v146, 0
  %v508 = vsel %vm266, %v147, 0
  %v511 = vsel %vm266, %v148, 0
  %v514 = vsel %vm266, %v149, 0
  %v517 = vsel %vm266, %v150, 0
  %v520 = vsel %vm266, %v151, 0
  %v523 = vsel %vm266, %v152, 0
  %v526 = vsel %vm266, %v153, 0
  %v529 = vsel %vm266, %v154, 0
  %v532 = vsel %vm266, %v155, 0
  %v535 = vsel %vm266, %v156, 0
  %v538 = vsel %vm266, %v157, 0
  %v541 = vsel %vm266, %v158, 0
  %v544 = vsel %vm266, %v159, 0
  %v547 = vsel %vm266, %v160, 0
  %v550 = vsel %vm266, %v161, 0
  %v553 = vsel %vm266, %v162, 0
  %v556 = vsel %vm266, %v163, 0
  %v559 = vsel %vm266, %v164, 0
  %v562 = vsel %vm266, %v165, 0
  %v565 = vsel %vm266, %v166, 0
  %v568 = vsel %vm266, %v167, 0
  %v571 = vsel %vm266, %v168, 0
  %v574 = vsel %vm266, %v169, 0
  %v577 = vsel %vm266, %v170, 0
  %v580 = vsel %vm266, %v171, 0
  %v583 = vsel %vm266, %v172, 0
  %v586 = vsel %vm266, %v173, 0
  %v589 = vsel %vm266, %v174, 0
  %v592 = vsel %vm266, %v175, 0
  %v595 = vsel %vm266, %v176, 0
  %v598 = vsel %vm266, %v177, 0
  %v601 = vsel %vm266, %v178, 0
  %v604 = vsel %vm266, %v179, 0
  %v607 = vsel %vm266, %v180, 0
  %v610 = vsel %vm266, %v181, 0
  %v613 = vsel %vm266, %v182, 0
  %v616 = vsel %vm266, %v183, 0
  %v619 = vsel %vm266, %v184, 0
  %v622 = vsel %vm266, %v185, 0
  %v625 = vsel %vm266, %v186, 0
  %v628 = vsel %vm266, %v187, 0
  %v631 = vsel %vm266, %v188, 0
  %v634 = vsel %vm266, %v189, 0
  %v637 = vsel %vm266, %v190, 0
  %v640 = vsel %vm266, %v191, 0
  %v643 = vsel %vm266, %v192, 0
  %v646 = vsel %vm266, %v193, 0
  %v649 = vsel %vm266, %v194, 0
  %v652 = vsel %vm266, %v195, 0
  %v655 = vsel %vm266, %v196, 0
  %v658 = vsel %vm266, %v197, 0
  %v661 = vsel %vm266, %v198, 0
  %v664 = vsel %vm266, %v199, 0
  %v667 = vsel %vm266, %v200, 0
  %v670 = vsel %vm266, %v201, 0
  %v673 = vsel %vm266, %v202, 0
  %v676 = vsel %vm266, %v203, 0
  %v679 = vsel %vm266, %v204, 0
  %v682 = vsel %vm266, %v205, 0
  %v685 = vsel %vm266, %v206, 0
  %v688 = vsel %vm266, %v207, 0
  %v691 = vsel %vm266, %v208, 0
  %v694 = vsel %vm266, %v209, 0
  %v697 = vsel %vm266, %v210, 0
  %v700 = vsel %vm266, %v211, 0
  %v703 = vsel %vm266, %v212, 0
  %v706 = vsel %vm266, %v213, 0
  %v709 = vsel %vm266, %v214, 0
  %v712 = vsel %vm266, %v215, 0
  %v715 = vsel %vm266, %v216, 0
  %v718 = vsel %vm266, %v217, 0
  %v721 = vsel %vm266, %v218, 0
  %v724 = vsel %vm266, %v219, 0
  %v727 = vsel %vm266, %v220, 0
  %v730 = vsel %vm266, %v221, 0
  %v733 = vsel %vm266, %v222, 0
  %v736 = vsel %vm266, %v223, 0
  %v739 = vsel %vm266, %v224, 0
  %v742 = vsel %vm266, %v225, 0
  %v745 = vsel %vm266, %v226, 0
  %v748 = vsel %vm266, %v227, 0
  %v751 = vsel %vm266, %v228, 0
  %v754 = vsel %vm266, %v229, 0
  %v757 = vsel %vm266, %v230, 0
  %v760 = vsel %vm266, %v231, 0
  %v763 = vsel %vm266, %v232, 0
  %v766 = vsel %vm266, %v233, 0
  %v769 = vsel %vm266, %v234, 0
  %v772 = vsel %vm266, %v235, 0
  %v775 = vsel %vm266, %v236, 0
  %v778 = vsel %vm266, %v237, 0
  %v781 = vsel %vm266, %v238, 0
  %v784 = vsel %vm266, %v239, 0
  %v787 = vsel %vm266, %v240, 0
  %v790 = vsel %vm266, %v241, 0
  %v793 = vsel %vm266, %v242, 0
  %v796 = vsel %vm266, %v243, 0
  %v799 = vsel %vm266, %v244, 0
  %v802 = vsel %vm266, %v245, 0
  %v805 = vsel %vm266, %v246, 0
  %v808 = vsel %vm266, %v247, 0
  %v811 = vsel %vm266, %v248, 0
  %v814 = vsel %vm266, %v249, 0
  %v817 = vsel %vm266, %v250, 0
  %v820 = vsel %vm266, %v251, 0
  %v823 = vsel %vm266, %v252, 0
  %v826 = vsel %vm266, %v253, 0
  %v829 = vsel %vm266, %v254, 0
  %v832 = vsel %vm266, %v255, 0
  %v835 = vsel %vm266, %v256, 0
  %v838 = vsel %vm266, %v257, 0
  %v841 = vsel %vm266, %v258, 0
  %v844 = vsel %vm266, %v259, 0
  %v847 = vsel %vm266, %v260, 0
  %v850 = vsel %vm266, %v261, 0
  %v853 = vsel %vm266, %v262, 0
  %vm855 = vcmask 1040384
  %v857 = vsel %vm855, %v27, 0
  %859 = vmatpush.msra.mxu0 0.0
  %860 = vmatpush.msra.mxu0 0.0
  %861 = vmatpush.msra.mxu0 0.0
  %862 = vmatpush.msra.mxu0 0.0
  %863 = vmatpush.msra.mxu0 0.0
  %864 = vmatpush.msra.mxu0 0.0
  %865 = vmatpush.msra.mxu0 0.0
  %866 = vmatpush.msra.mxu0 0.0
  %867 = vmatpush.msra.mxu0 0.0
  %868 = vmatpush.msra.mxu0 0.0
  %869 = vmatpush.msra.mxu0 0.0
  %870 = vmatpush.msra.mxu0 0.0
  %871 = vmatpush.msra.mxu0 0.0
  %872 = vmatpush.msra.mxu0 0.0
  %873 = vmatpush.msra.mxu0 %v857
  %874 = vmatpush.msra.mxu0 %v26
  %875 = vmatmul.f32.gmra.mxu0 %v268
  %v876 = vpop.f32.mrf.mxu0
  %v877 = vadd.f32 %v264, %v876
  %878 = vmatmul.f32.gmra.mxu0 %v271
  %v879 = vpop.f32.mrf.mxu0
  %v880 = vadd.f32 %v264, %v879
  %881 = vmatmul.f32.gmra.mxu0 %v274
  %v882 = vpop.f32.mrf.mxu0
  %v883 = vadd.f32 %v264, %v882
  %884 = vmatmul.f32.gmra.mxu0 %v277
  %v885 = vpop.f32.mrf.mxu0
  %v886 = vadd.f32 %v264, %v885
  %887 = vmatmul.f32.gmra.mxu0 %v280
  %v888 = vpop.f32.mrf.mxu0
  %v889 = vadd.f32 %v264, %v888
  %890 = vmatmul.f32.gmra.mxu0 %v283
  %v891 = vpop.f32.mrf.mxu0
  %v892 = vadd.f32 %v264, %v891
  %893 = vmatmul.f32.gmra.mxu0 %v286
  %v894 = vpop.f32.mrf.mxu0
  %v895 = vadd.f32 %v264, %v894
  %896 = vmatmul.f32.gmra.mxu0 %v289
  %v897 = vpop.f32.mrf.mxu0
  %v898 = vadd.f32 %v264, %v897
  %899 = vmatmul.f32.gmra.mxu0 %v292
  %v900 = vpop.f32.mrf.mxu0
  %v901 = vadd.f32 %v264, %v900
  %902 = vmatmul.f32.gmra.mxu0 %v295
  %v903 = vpop.f32.mrf.mxu0
  %v904 = vadd.f32 %v264, %v903
  %905 = vmatmul.f32.gmra.mxu0 %v298
  %v906 = vpop.f32.mrf.mxu0
  %v907 = vadd.f32 %v264, %v906
  %908 = vmatmul.f32.gmra.mxu0 %v301
  %v909 = vpop.f32.mrf.mxu0
  %v910 = vadd.f32 %v264, %v909
  %911 = vmatmul.f32.gmra.mxu0 %v304
  %v912 = vpop.f32.mrf.mxu0
  %v913 = vadd.f32 %v264, %v912
  %914 = vmatmul.f32.gmra.mxu0 %v307
  %v915 = vpop.f32.mrf.mxu0
  %v916 = vadd.f32 %v264, %v915
  %917 = vmatmul.f32.gmra.mxu0 %v310
  %v918 = vpop.f32.mrf.mxu0
  %v919 = vadd.f32 %v264, %v918
  %920 = vmatmul.f32.gmra.mxu0 %v313
  %v921 = vpop.f32.mrf.mxu0
  %v922 = vadd.f32 %v264, %v921
  %923 = vmatmul.f32.gmra.mxu0 %v316
  %v924 = vpop.f32.mrf.mxu0
  %v925 = vadd.f32 %v264, %v924
  %926 = vmatmul.f32.gmra.mxu0 %v319
  %v927 = vpop.f32.mrf.mxu0
  %v928 = vadd.f32 %v264, %v927
  %929 = vmatmul.f32.gmra.mxu0 %v322
  %v930 = vpop.f32.mrf.mxu0
  %v931 = vadd.f32 %v264, %v930
  %932 = vmatmul.f32.gmra.mxu0 %v325
  %v933 = vpop.f32.mrf.mxu0
  %v934 = vadd.f32 %v264, %v933
  %935 = vmatmul.f32.gmra.mxu0 %v328
  %v936 = vpop.f32.mrf.mxu0
  %v937 = vadd.f32 %v264, %v936
  %938 = vmatmul.f32.gmra.mxu0 %v331
  %v939 = vpop.f32.mrf.mxu0
  %v940 = vadd.f32 %v264, %v939
  %941 = vmatmul.f32.gmra.mxu0 %v334
  %v942 = vpop.f32.mrf.mxu0
  %v943 = vadd.f32 %v264, %v942
  %944 = vmatmul.f32.gmra.mxu0 %v337
  %v945 = vpop.f32.mrf.mxu0
  %v946 = vadd.f32 %v264, %v945
  %947 = vmatmul.f32.gmra.mxu0 %v340
  %v948 = vpop.f32.mrf.mxu0
  %v949 = vadd.f32 %v264, %v948
  %950 = vmatmul.f32.gmra.mxu0 %v343
  %v951 = vpop.f32.mrf.mxu0
  %v952 = vadd.f32 %v264, %v951
  %953 = vmatmul.f32.gmra.mxu0 %v346
  %v954 = vpop.f32.mrf.mxu0
  %v955 = vadd.f32 %v264, %v954
  %956 = vmatmul.f32.gmra.mxu0 %v349
  %v957 = vpop.f32.mrf.mxu0
  %v958 = vadd.f32 %v264, %v957
  %959 = vmatmul.f32.gmra.mxu0 %v352
  %v960 = vpop.f32.mrf.mxu0
  %v961 = vadd.f32 %v264, %v960
  %962 = vmatmul.f32.gmra.mxu0 %v355
  %v963 = vpop.f32.mrf.mxu0
  %v964 = vadd.f32 %v264, %v963
  %965 = vmatmul.f32.gmra.mxu0 %v358
  %v966 = vpop.f32.mrf.mxu0
  %v967 = vadd.f32 %v264, %v966
  %968 = vmatmul.f32.gmra.mxu0 %v361
  %v969 = vpop.f32.mrf.mxu0
  %v970 = vadd.f32 %v264, %v969
  %971 = vmatmul.f32.gmra.mxu0 %v364
  %v972 = vpop.f32.mrf.mxu0
  %v973 = vadd.f32 %v264, %v972
  %974 = vmatmul.f32.gmra.mxu0 %v367
  %v975 = vpop.f32.mrf.mxu0
  %v976 = vadd.f32 %v264, %v975
  %977 = vmatmul.f32.gmra.mxu0 %v370
  %v978 = vpop.f32.mrf.mxu0
  %v979 = vadd.f32 %v264, %v978
  %980 = vmatmul.f32.gmra.mxu0 %v373
  %v981 = vpop.f32.mrf.mxu0
  %v982 = vadd.f32 %v264, %v981
  %983 = vmatmul.f32.gmra.mxu0 %v376
  %v984 = vpop.f32.mrf.mxu0
  %v985 = vadd.f32 %v264, %v984
  %986 = vmatmul.f32.gmra.mxu0 %v379
  %v987 = vpop.f32.mrf.mxu0
  %v988 = vadd.f32 %v264, %v987
  %989 = vmatmul.f32.gmra.mxu0 %v382
  %v990 = vpop.f32.mrf.mxu0
  %v991 = vadd.f32 %v264, %v990
  %992 = vmatmul.f32.gmra.mxu0 %v385
  %v993 = vpop.f32.mrf.mxu0
  %v994 = vadd.f32 %v264, %v993
  %995 = vmatmul.f32.gmra.mxu0 %v388
  %v996 = vpop.f32.mrf.mxu0
  %v997 = vadd.f32 %v264, %v996
  %998 = vmatmul.f32.gmra.mxu0 %v391
  %v999 = vpop.f32.mrf.mxu0
  %v1000 = vadd.f32 %v264, %v999
  %1001 = vmatmul.f32.gmra.mxu0 %v394
  %v1002 = vpop.f32.mrf.mxu0
  %v1003 = vadd.f32 %v264, %v1002
  %1004 = vmatmul.f32.gmra.mxu0 %v397
  %v1005 = vpop.f32.mrf.mxu0
  %v1006 = vadd.f32 %v264, %v1005
  %1007 = vmatmul.f32.gmra.mxu0 %v400
  %v1008 = vpop.f32.mrf.mxu0
  %v1009 = vadd.f32 %v264, %v1008
  %1010 = vmatmul.f32.gmra.mxu0 %v403
  %v1011 = vpop.f32.mrf.mxu0
  %v1012 = vadd.f32 %v264, %v1011
  %1013 = vmatmul.f32.gmra.mxu0 %v406
  %v1014 = vpop.f32.mrf.mxu0
  %v1015 = vadd.f32 %v264, %v1014
  %1016 = vmatmul.f32.gmra.mxu0 %v409
  %v1017 = vpop.f32.mrf.mxu0
  %v1018 = vadd.f32 %v264, %v1017
  %1019 = vmatmul.f32.gmra.mxu0 %v412
  %v1020 = vpop.f32.mrf.mxu0
  %v1021 = vadd.f32 %v264, %v1020
  %1022 = vmatmul.f32.gmra.mxu0 %v415
  %v1023 = vpop.f32.mrf.mxu0
  %v1024 = vadd.f32 %v264, %v1023
  %1025 = vmatmul.f32.gmra.mxu0 %v418
  %v1026 = vpop.f32.mrf.mxu0
  %v1027 = vadd.f32 %v264, %v1026
  %1028 = vmatmul.f32.gmra.mxu0 %v421
  %v1029 = vpop.f32.mrf.mxu0
  %v1030 = vadd.f32 %v264, %v1029
  %1031 = vmatmul.f32.gmra.mxu0 %v424
  %v1032 = vpop.f32.mrf.mxu0
  %v1033 = vadd.f32 %v264, %v1032
  %1034 = vmatmul.f32.gmra.mxu0 %v427
  %v1035 = vpop.f32.mrf.mxu0
  %v1036 = vadd.f32 %v264, %v1035
  %1037 = vmatmul.f32.gmra.mxu0 %v430
  %v1038 = vpop.f32.mrf.mxu0
  %v1039 = vadd.f32 %v264, %v1038
  %1040 = vmatmul.f32.gmra.mxu0 %v433
  %v1041 = vpop.f32.mrf.mxu0
  %v1042 = vadd.f32 %v264, %v1041
  %1043 = vmatmul.f32.gmra.mxu0 %v436
  %v1044 = vpop.f32.mrf.mxu0
  %v1045 = vadd.f32 %v264, %v1044
  %1046 = vmatmul.f32.gmra.mxu0 %v439
  %v1047 = vpop.f32.mrf.mxu0
  %v1048 = vadd.f32 %v264, %v1047
  %1049 = vmatmul.f32.gmra.mxu0 %v442
  %v1050 = vpop.f32.mrf.mxu0
  %v1051 = vadd.f32 %v264, %v1050
  %1052 = vmatmul.f32.gmra.mxu0 %v445
  %v1053 = vpop.f32.mrf.mxu0
  %v1054 = vadd.f32 %v264, %v1053
  %1055 = vmatmul.f32.gmra.mxu0 %v448
  %v1056 = vpop.f32.mrf.mxu0
  %v1057 = vadd.f32 %v264, %v1056
  %1058 = vmatmul.f32.gmra.mxu0 %v451
  %v1059 = vpop.f32.mrf.mxu0
  %v1060 = vadd.f32 %v264, %v1059
  %1061 = vmatmul.f32.gmra.mxu0 %v454
  %v1062 = vpop.f32.mrf.mxu0
  %v1063 = vadd.f32 %v264, %v1062
  %1064 = vmatmul.f32.gmra.mxu0 %v457
  %v1065 = vpop.f32.mrf.mxu0
  %v1066 = vadd.f32 %v264, %v1065
  %1067 = vmatmul.f32.gmra.mxu0 %v460
  %v1068 = vpop.f32.mrf.mxu0
  %v1069 = vadd.f32 %v264, %v1068
  %1070 = vmatmul.f32.gmra.mxu0 %v463
  %v1071 = vpop.f32.mrf.mxu0
  %v1072 = vadd.f32 %v264, %v1071
  %1073 = vmatmul.f32.gmra.mxu0 %v466
  %v1074 = vpop.f32.mrf.mxu0
  %v1075 = vadd.f32 %v264, %v1074
  %1076 = vmatmul.f32.gmra.mxu0 %v469
  %v1077 = vpop.f32.mrf.mxu0
  %v1078 = vadd.f32 %v264, %v1077
  %1079 = vmatmul.f32.gmra.mxu0 %v472
  %v1080 = vpop.f32.mrf.mxu0
  %v1081 = vadd.f32 %v264, %v1080
  %1082 = vmatmul.f32.gmra.mxu0 %v475
  %v1083 = vpop.f32.mrf.mxu0
  %v1084 = vadd.f32 %v264, %v1083
  %1085 = vmatmul.f32.gmra.mxu0 %v478
  %v1086 = vpop.f32.mrf.mxu0
  %v1087 = vadd.f32 %v264, %v1086
  %1088 = vmatmul.f32.gmra.mxu0 %v481
  %v1089 = vpop.f32.mrf.mxu0
  %v1090 = vadd.f32 %v264, %v1089
  %1091 = vmatmul.f32.gmra.mxu0 %v484
  %v1092 = vpop.f32.mrf.mxu0
  %v1093 = vadd.f32 %v264, %v1092
  %1094 = vmatmul.f32.gmra.mxu0 %v487
  %v1095 = vpop.f32.mrf.mxu0
  %v1096 = vadd.f32 %v264, %v1095
  %1097 = vmatmul.f32.gmra.mxu0 %v490
  %v1098 = vpop.f32.mrf.mxu0
  %v1099 = vadd.f32 %v264, %v1098
  %1100 = vmatmul.f32.gmra.mxu0 %v493
  %v1101 = vpop.f32.mrf.mxu0
  %v1102 = vadd.f32 %v264, %v1101
  %1103 = vmatmul.f32.gmra.mxu0 %v496
  %v1104 = vpop.f32.mrf.mxu0
  %v1105 = vadd.f32 %v264, %v1104
  %1106 = vmatmul.f32.gmra.mxu0 %v499
  %v1107 = vpop.f32.mrf.mxu0
  %v1108 = vadd.f32 %v264, %v1107
  %1109 = vmatmul.f32.gmra.mxu0 %v502
  %v1110 = vpop.f32.mrf.mxu0
  %v1111 = vadd.f32 %v264, %v1110
  %1112 = vmatmul.f32.gmra.mxu0 %v505
  %v1113 = vpop.f32.mrf.mxu0
  %v1114 = vadd.f32 %v264, %v1113
  %1115 = vmatmul.f32.gmra.mxu0 %v508
  %v1116 = vpop.f32.mrf.mxu0
  %v1117 = vadd.f32 %v264, %v1116
  %1118 = vmatmul.f32.gmra.mxu0 %v511
  %v1119 = vpop.f32.mrf.mxu0
  %v1120 = vadd.f32 %v264, %v1119
  %1121 = vmatmul.f32.gmra.mxu0 %v514
  %v1122 = vpop.f32.mrf.mxu0
  %v1123 = vadd.f32 %v264, %v1122
  %1124 = vmatmul.f32.gmra.mxu0 %v517
  %v1125 = vpop.f32.mrf.mxu0
  %v1126 = vadd.f32 %v264, %v1125
  %1127 = vmatmul.f32.gmra.mxu0 %v520
  %v1128 = vpop.f32.mrf.mxu0
  %v1129 = vadd.f32 %v264, %v1128
  %1130 = vmatmul.f32.gmra.mxu0 %v523
  %v1131 = vpop.f32.mrf.mxu0
  %v1132 = vadd.f32 %v264, %v1131
  %1133 = vmatmul.f32.gmra.mxu0 %v526
  %v1134 = vpop.f32.mrf.mxu0
  %v1135 = vadd.f32 %v264, %v1134
  %1136 = vmatmul.f32.gmra.mxu0 %v529
  %v1137 = vpop.f32.mrf.mxu0
  %v1138 = vadd.f32 %v264, %v1137
  %1139 = vmatmul.f32.gmra.mxu0 %v532
  %v1140 = vpop.f32.mrf.mxu0
  %v1141 = vadd.f32 %v264, %v1140
  %1142 = vmatmul.f32.gmra.mxu0 %v535
  %v1143 = vpop.f32.mrf.mxu0
  %v1144 = vadd.f32 %v264, %v1143
  %1145 = vmatmul.f32.gmra.mxu0 %v538
  %v1146 = vpop.f32.mrf.mxu0
  %v1147 = vadd.f32 %v264, %v1146
  %1148 = vmatmul.f32.gmra.mxu0 %v541
  %v1149 = vpop.f32.mrf.mxu0
  %v1150 = vadd.f32 %v264, %v1149
  %1151 = vmatmul.f32.gmra.mxu0 %v544
  %v1152 = vpop.f32.mrf.mxu0
  %v1153 = vadd.f32 %v264, %v1152
  %1154 = vmatmul.f32.gmra.mxu0 %v547
  %v1155 = vpop.f32.mrf.mxu0
  %v1156 = vadd.f32 %v264, %v1155
  %1157 = vmatmul.f32.gmra.mxu0 %v550
  %v1158 = vpop.f32.mrf.mxu0
  %v1159 = vadd.f32 %v264, %v1158
  %1160 = vmatmul.f32.gmra.mxu0 %v553
  %v1161 = vpop.f32.mrf.mxu0
  %v1162 = vadd.f32 %v264, %v1161
  %1163 = vmatmul.f32.gmra.mxu0 %v556
  %v1164 = vpop.f32.mrf.mxu0
  %v1165 = vadd.f32 %v264, %v1164
  %1166 = vmatmul.f32.gmra.mxu0 %v559
  %v1167 = vpop.f32.mrf.mxu0
  %v1168 = vadd.f32 %v264, %v1167
  %1169 = vmatmul.f32.gmra.mxu0 %v562
  %v1170 = vpop.f32.mrf.mxu0
  %v1171 = vadd.f32 %v264, %v1170
  %1172 = vmatmul.f32.gmra.mxu0 %v565
  %v1173 = vpop.f32.mrf.mxu0
  %v1174 = vadd.f32 %v264, %v1173
  %1175 = vmatmul.f32.gmra.mxu0 %v568
  %v1176 = vpop.f32.mrf.mxu0
  %v1177 = vadd.f32 %v264, %v1176
  %1178 = vmatmul.f32.gmra.mxu0 %v571
  %v1179 = vpop.f32.mrf.mxu0
  %v1180 = vadd.f32 %v264, %v1179
  %1181 = vmatmul.f32.gmra.mxu0 %v574
  %v1182 = vpop.f32.mrf.mxu0
  %v1183 = vadd.f32 %v264, %v1182
  %1184 = vmatmul.f32.gmra.mxu0 %v577
  %v1185 = vpop.f32.mrf.mxu0
  %v1186 = vadd.f32 %v264, %v1185
  %1187 = vmatmul.f32.gmra.mxu0 %v580
  %v1188 = vpop.f32.mrf.mxu0
  %v1189 = vadd.f32 %v264, %v1188
  %1190 = vmatmul.f32.gmra.mxu0 %v583
  %v1191 = vpop.f32.mrf.mxu0
  %v1192 = vadd.f32 %v264, %v1191
  %1193 = vmatmul.f32.gmra.mxu0 %v586
  %v1194 = vpop.f32.mrf.mxu0
  %v1195 = vadd.f32 %v264, %v1194
  %1196 = vmatmul.f32.gmra.mxu0 %v589
  %v1197 = vpop.f32.mrf.mxu0
  %v1198 = vadd.f32 %v264, %v1197
  %1199 = vmatmul.f32.gmra.mxu0 %v592
  %v1200 = vpop.f32.mrf.mxu0
  %v1201 = vadd.f32 %v264, %v1200
  %1202 = vmatmul.f32.gmra.mxu0 %v595
  %v1203 = vpop.f32.mrf.mxu0
  %v1204 = vadd.f32 %v264, %v1203
  %1205 = vmatmul.f32.gmra.mxu0 %v598
  %v1206 = vpop.f32.mrf.mxu0
  %v1207 = vadd.f32 %v264, %v1206
  %1208 = vmatmul.f32.gmra.mxu0 %v601
  %v1209 = vpop.f32.mrf.mxu0
  %v1210 = vadd.f32 %v264, %v1209
  %1211 = vmatmul.f32.gmra.mxu0 %v604
  %v1212 = vpop.f32.mrf.mxu0
  %v1213 = vadd.f32 %v264, %v1212
  %1214 = vmatmul.f32.gmra.mxu0 %v607
  %v1215 = vpop.f32.mrf.mxu0
  %v1216 = vadd.f32 %v264, %v1215
  %1217 = vmatmul.f32.gmra.mxu0 %v610
  %v1218 = vpop.f32.mrf.mxu0
  %v1219 = vadd.f32 %v264, %v1218
  %1220 = vmatmul.f32.gmra.mxu0 %v613
  %v1221 = vpop.f32.mrf.mxu0
  %v1222 = vadd.f32 %v264, %v1221
  %1223 = vmatmul.f32.gmra.mxu0 %v616
  %v1224 = vpop.f32.mrf.mxu0
  %v1225 = vadd.f32 %v264, %v1224
  %1226 = vmatmul.f32.gmra.mxu0 %v619
  %v1227 = vpop.f32.mrf.mxu0
  %v1228 = vadd.f32 %v264, %v1227
  %1229 = vmatmul.f32.gmra.mxu0 %v622
  %v1230 = vpop.f32.mrf.mxu0
  %v1231 = vadd.f32 %v264, %v1230
  %1232 = vmatmul.f32.gmra.mxu0 %v625
  %v1233 = vpop.f32.mrf.mxu0
  %v1234 = vadd.f32 %v264, %v1233
  %1235 = vmatmul.f32.gmra.mxu0 %v628
  %v1236 = vpop.f32.mrf.mxu0
  %v1237 = vadd.f32 %v264, %v1236
  %1238 = vmatmul.f32.gmra.mxu0 %v631
  %v1239 = vpop.f32.mrf.mxu0
  %v1240 = vadd.f32 %v264, %v1239
  %1241 = vmatmul.f32.gmra.mxu0 %v634
  %v1242 = vpop.f32.mrf.mxu0
  %v1243 = vadd.f32 %v264, %v1242
  %1244 = vmatmul.f32.gmra.mxu0 %v637
  %v1245 = vpop.f32.mrf.mxu0
  %v1246 = vadd.f32 %v264, %v1245
  %1247 = vmatmul.f32.gmra.mxu0 %v640
  %v1248 = vpop.f32.mrf.mxu0
  %v1249 = vadd.f32 %v264, %v1248
  %1250 = vmatmul.f32.gmra.mxu0 %v643
  %v1251 = vpop.f32.mrf.mxu0
  %v1252 = vadd.f32 %v264, %v1251
  %1253 = vmatmul.f32.gmra.mxu0 %v646
  %v1254 = vpop.f32.mrf.mxu0
  %v1255 = vadd.f32 %v264, %v1254
  %1256 = vmatmul.f32.gmra.mxu0 %v649
  %v1257 = vpop.f32.mrf.mxu0
  %v1258 = vadd.f32 %v264, %v1257
  %1259 = vmatmul.f32.gmra.mxu0 %v652
  %v1260 = vpop.f32.mrf.mxu0
  %v1261 = vadd.f32 %v264, %v1260
  %1262 = vmatmul.f32.gmra.mxu0 %v655
  %v1263 = vpop.f32.mrf.mxu0
  %v1264 = vadd.f32 %v264, %v1263
  %1265 = vmatmul.f32.gmra.mxu0 %v658
  %v1266 = vpop.f32.mrf.mxu0
  %v1267 = vadd.f32 %v264, %v1266
  %1268 = vmatmul.f32.gmra.mxu0 %v661
  %v1269 = vpop.f32.mrf.mxu0
  %v1270 = vadd.f32 %v264, %v1269
  %1271 = vmatmul.f32.gmra.mxu0 %v664
  %v1272 = vpop.f32.mrf.mxu0
  %v1273 = vadd.f32 %v264, %v1272
  %1274 = vmatmul.f32.gmra.mxu0 %v667
  %v1275 = vpop.f32.mrf.mxu0
  %v1276 = vadd.f32 %v264, %v1275
  %1277 = vmatmul.f32.gmra.mxu0 %v670
  %v1278 = vpop.f32.mrf.mxu0
  %v1279 = vadd.f32 %v264, %v1278
  %1280 = vmatmul.f32.gmra.mxu0 %v673
  %v1281 = vpop.f32.mrf.mxu0
  %v1282 = vadd.f32 %v264, %v1281
  %1283 = vmatmul.f32.gmra.mxu0 %v676
  %v1284 = vpop.f32.mrf.mxu0
  %v1285 = vadd.f32 %v264, %v1284
  %1286 = vmatmul.f32.gmra.mxu0 %v679
  %v1287 = vpop.f32.mrf.mxu0
  %v1288 = vadd.f32 %v264, %v1287
  %1289 = vmatmul.f32.gmra.mxu0 %v682
  %v1290 = vpop.f32.mrf.mxu0
  %v1291 = vadd.f32 %v264, %v1290
  %1292 = vmatmul.f32.gmra.mxu0 %v685
  %v1293 = vpop.f32.mrf.mxu0
  %v1294 = vadd.f32 %v264, %v1293
  %1295 = vmatmul.f32.gmra.mxu0 %v688
  %v1296 = vpop.f32.mrf.mxu0
  %v1297 = vadd.f32 %v264, %v1296
  %1298 = vmatmul.f32.gmra.mxu0 %v691
  %v1299 = vpop.f32.mrf.mxu0
  %v1300 = vadd.f32 %v264, %v1299
  %1301 = vmatmul.f32.gmra.mxu0 %v694
  %v1302 = vpop.f32.mrf.mxu0
  %v1303 = vadd.f32 %v264, %v1302
  %1304 = vmatmul.f32.gmra.mxu0 %v697
  %v1305 = vpop.f32.mrf.mxu0
  %v1306 = vadd.f32 %v264, %v1305
  %1307 = vmatmul.f32.gmra.mxu0 %v700
  %v1308 = vpop.f32.mrf.mxu0
  %v1309 = vadd.f32 %v264, %v1308
  %1310 = vmatmul.f32.gmra.mxu0 %v703
  %v1311 = vpop.f32.mrf.mxu0
  %v1312 = vadd.f32 %v264, %v1311
  %1313 = vmatmul.f32.gmra.mxu0 %v706
  %v1314 = vpop.f32.mrf.mxu0
  %v1315 = vadd.f32 %v264, %v1314
  %1316 = vmatmul.f32.gmra.mxu0 %v709
  %v1317 = vpop.f32.mrf.mxu0
  %v1318 = vadd.f32 %v264, %v1317
  %1319 = vmatmul.f32.gmra.mxu0 %v712
  %v1320 = vpop.f32.mrf.mxu0
  %v1321 = vadd.f32 %v264, %v1320
  %1322 = vmatmul.f32.gmra.mxu0 %v715
  %v1323 = vpop.f32.mrf.mxu0
  %v1324 = vadd.f32 %v264, %v1323
  %1325 = vmatmul.f32.gmra.mxu0 %v718
  %v1326 = vpop.f32.mrf.mxu0
  %v1327 = vadd.f32 %v264, %v1326
  %1328 = vmatmul.f32.gmra.mxu0 %v721
  %v1329 = vpop.f32.mrf.mxu0
  %v1330 = vadd.f32 %v264, %v1329
  %1331 = vmatmul.f32.gmra.mxu0 %v724
  %v1332 = vpop.f32.mrf.mxu0
  %v1333 = vadd.f32 %v264, %v1332
  %1334 = vmatmul.f32.gmra.mxu0 %v727
  %v1335 = vpop.f32.mrf.mxu0
  %v1336 = vadd.f32 %v264, %v1335
  %1337 = vmatmul.f32.gmra.mxu0 %v730
  %v1338 = vpop.f32.mrf.mxu0
  %v1339 = vadd.f32 %v264, %v1338
  %1340 = vmatmul.f32.gmra.mxu0 %v733
  %v1341 = vpop.f32.mrf.mxu0
  %v1342 = vadd.f32 %v264, %v1341
  %1343 = vmatmul.f32.gmra.mxu0 %v736
  %v1344 = vpop.f32.mrf.mxu0
  %v1345 = vadd.f32 %v264, %v1344
  %1346 = vmatmul.f32.gmra.mxu0 %v739
  %v1347 = vpop.f32.mrf.mxu0
  %v1348 = vadd.f32 %v264, %v1347
  %1349 = vmatmul.f32.gmra.mxu0 %v742
  %v1350 = vpop.f32.mrf.mxu0
  %v1351 = vadd.f32 %v264, %v1350
  %1352 = vmatmul.f32.gmra.mxu0 %v745
  %v1353 = vpop.f32.mrf.mxu0
  %v1354 = vadd.f32 %v264, %v1353
  %1355 = vmatmul.f32.gmra.mxu0 %v748
  %v1356 = vpop.f32.mrf.mxu0
  %v1357 = vadd.f32 %v264, %v1356
  %1358 = vmatmul.f32.gmra.mxu0 %v751
  %v1359 = vpop.f32.mrf.mxu0
  %v1360 = vadd.f32 %v264, %v1359
  %1361 = vmatmul.f32.gmra.mxu0 %v754
  %v1362 = vpop.f32.mrf.mxu0
  %v1363 = vadd.f32 %v264, %v1362
  %1364 = vmatmul.f32.gmra.mxu0 %v757
  %v1365 = vpop.f32.mrf.mxu0
  %v1366 = vadd.f32 %v264, %v1365
  %1367 = vmatmul.f32.gmra.mxu0 %v760
  %v1368 = vpop.f32.mrf.mxu0
  %v1369 = vadd.f32 %v264, %v1368
  %1370 = vmatmul.f32.gmra.mxu0 %v763
  %v1371 = vpop.f32.mrf.mxu0
  %v1372 = vadd.f32 %v264, %v1371
  %1373 = vmatmul.f32.gmra.mxu0 %v766
  %v1374 = vpop.f32.mrf.mxu0
  %v1375 = vadd.f32 %v264, %v1374
  %1376 = vmatmul.f32.gmra.mxu0 %v769
  %v1377 = vpop.f32.mrf.mxu0
  %v1378 = vadd.f32 %v264, %v1377
  %1379 = vmatmul.f32.gmra.mxu0 %v772
  %v1380 = vpop.f32.mrf.mxu0
  %v1381 = vadd.f32 %v264, %v1380
  %1382 = vmatmul.f32.gmra.mxu0 %v775
  %v1383 = vpop.f32.mrf.mxu0
  %v1384 = vadd.f32 %v264, %v1383
  %1385 = vmatmul.f32.gmra.mxu0 %v778
  %v1386 = vpop.f32.mrf.mxu0
  %v1387 = vadd.f32 %v264, %v1386
  %1388 = vmatmul.f32.gmra.mxu0 %v781
  %v1389 = vpop.f32.mrf.mxu0
  %v1390 = vadd.f32 %v264, %v1389
  %1391 = vmatmul.f32.gmra.mxu0 %v784
  %v1392 = vpop.f32.mrf.mxu0
  %v1393 = vadd.f32 %v264, %v1392
  %1394 = vmatmul.f32.gmra.mxu0 %v787
  %v1395 = vpop.f32.mrf.mxu0
  %v1396 = vadd.f32 %v264, %v1395
  %1397 = vmatmul.f32.gmra.mxu0 %v790
  %v1398 = vpop.f32.mrf.mxu0
  %v1399 = vadd.f32 %v264, %v1398
  %1400 = vmatmul.f32.gmra.mxu0 %v793
  %v1401 = vpop.f32.mrf.mxu0
  %v1402 = vadd.f32 %v264, %v1401
  %1403 = vmatmul.f32.gmra.mxu0 %v796
  %v1404 = vpop.f32.mrf.mxu0
  %v1405 = vadd.f32 %v264, %v1404
  %1406 = vmatmul.f32.gmra.mxu0 %v799
  %v1407 = vpop.f32.mrf.mxu0
  %v1408 = vadd.f32 %v264, %v1407
  %1409 = vmatmul.f32.gmra.mxu0 %v802
  %v1410 = vpop.f32.mrf.mxu0
  %v1411 = vadd.f32 %v264, %v1410
  %1412 = vmatmul.f32.gmra.mxu0 %v805
  %v1413 = vpop.f32.mrf.mxu0
  %v1414 = vadd.f32 %v264, %v1413
  %1415 = vmatmul.f32.gmra.mxu0 %v808
  %v1416 = vpop.f32.mrf.mxu0
  %v1417 = vadd.f32 %v264, %v1416
  %1418 = vmatmul.f32.gmra.mxu0 %v811
  %v1419 = vpop.f32.mrf.mxu0
  %v1420 = vadd.f32 %v264, %v1419
  %1421 = vmatmul.f32.gmra.mxu0 %v814
  %v1422 = vpop.f32.mrf.mxu0
  %v1423 = vadd.f32 %v264, %v1422
  %1424 = vmatmul.f32.gmra.mxu0 %v817
  %v1425 = vpop.f32.mrf.mxu0
  %v1426 = vadd.f32 %v264, %v1425
  %1427 = vmatmul.f32.gmra.mxu0 %v820
  %v1428 = vpop.f32.mrf.mxu0
  %v1429 = vadd.f32 %v264, %v1428
  %1430 = vmatmul.f32.gmra.mxu0 %v823
  %v1431 = vpop.f32.mrf.mxu0
  %v1432 = vadd.f32 %v264, %v1431
  %1433 = vmatmul.f32.gmra.mxu0 %v826
  %v1434 = vpop.f32.mrf.mxu0
  %v1435 = vadd.f32 %v264, %v1434
  %1436 = vmatmul.f32.gmra.mxu0 %v829
  %v1437 = vpop.f32.mrf.mxu0
  %v1438 = vadd.f32 %v264, %v1437
  %1439 = vmatmul.f32.gmra.mxu0 %v832
  %v1440 = vpop.f32.mrf.mxu0
  %v1441 = vadd.f32 %v264, %v1440
  %1442 = vmatmul.f32.gmra.mxu0 %v835
  %v1443 = vpop.f32.mrf.mxu0
  %v1444 = vadd.f32 %v264, %v1443
  %1445 = vmatmul.f32.gmra.mxu0 %v838
  %v1446 = vpop.f32.mrf.mxu0
  %v1447 = vadd.f32 %v264, %v1446
  %1448 = vmatmul.f32.gmra.mxu0 %v841
  %v1449 = vpop.f32.mrf.mxu0
  %v1450 = vadd.f32 %v264, %v1449
  %1451 = vmatmul.f32.gmra.mxu0 %v844
  %v1452 = vpop.f32.mrf.mxu0
  %v1453 = vadd.f32 %v264, %v1452
  %1454 = vmatmul.f32.gmra.mxu0 %v847
  %v1455 = vpop.f32.mrf.mxu0
  %v1456 = vadd.f32 %v264, %v1455
  %1457 = vmatmul.f32.gmra.mxu0 %v850
  %v1458 = vpop.f32.mrf.mxu0
  %v1459 = vadd.f32 %v264, %v1458
  %1460 = vmatmul.f32.gmra.mxu0 %v853
  %v1461 = vpop.f32.mrf.mxu0
  %v1462 = vadd.f32 %v264, %v1461
  %1463 = vdwg.mxu0
  %v1464 = vmax.f32 %v877, 0.0
  %v1465 = vmax.f32 %v880, 0.0
  %v1466 = vmax.f32 %v883, 0.0
  %v1467 = vmax.f32 %v886, 0.0
  %v1468 = vmax.f32 %v889, 0.0
  %v1469 = vmax.f32 %v892, 0.0
  %v1470 = vmax.f32 %v895, 0.0
  %v1471 = vmax.f32 %v898, 0.0
  %v1472 = vmax.f32 %v901, 0.0
  %v1473 = vmax.f32 %v904, 0.0
  %v1474 = vmax.f32 %v907, 0.0
  %v1475 = vmax.f32 %v910, 0.0
  %v1476 = vmax.f32 %v913, 0.0
  %v1477 = vmax.f32 %v916, 0.0
  %v1478 = vmax.f32 %v919, 0.0
  %v1479 = vmax.f32 %v922, 0.0
  %v1480 = vmax.f32 %v925, 0.0
  %v1481 = vmax.f32 %v928, 0.0
  %v1482 = vmax.f32 %v931, 0.0
  %v1483 = vmax.f32 %v934, 0.0
  %v1484 = vmax.f32 %v937, 0.0
  %v1485 = vmax.f32 %v940, 0.0
  %v1486 = vmax.f32 %v943, 0.0
  %v1487 = vmax.f32 %v946, 0.0
  %v1488 = vmax.f32 %v949, 0.0
  %v1489 = vmax.f32 %v952, 0.0
  %v1490 = vmax.f32 %v955, 0.0
  %v1491 = vmax.f32 %v958, 0.0
  %v1492 = vmax.f32 %v961, 0.0
  %v1493 = vmax.f32 %v964, 0.0
  %v1494 = vmax.f32 %v967, 0.0
  %v1495 = vmax.f32 %v970, 0.0
  %v1496 = vmax.f32 %v973, 0.0
  %v1497 = vmax.f32 %v976, 0.0
  %v1498 = vmax.f32 %v979, 0.0
  %v1499 = vmax.f32 %v982, 0.0
  %v1500 = vmax.f32 %v985, 0.0
  %v1501 = vmax.f32 %v988, 0.0
  %v1502 = vmax.f32 %v991, 0.0
  %v1503 = vmax.f32 %v994, 0.0
  %v1504 = vmax.f32 %v997, 0.0
  %v1505 = vmax.f32 %v1000, 0.0
  %v1506 = vmax.f32 %v1003, 0.0
  %v1507 = vmax.f32 %v1006, 0.0
  %v1508 = vmax.f32 %v1009, 0.0
  %v1509 = vmax.f32 %v1012, 0.0
  %v1510 = vmax.f32 %v1015, 0.0
  %v1511 = vmax.f32 %v1018, 0.0
  %v1512 = vmax.f32 %v1021, 0.0
  %v1513 = vmax.f32 %v1024, 0.0
  %v1514 = vmax.f32 %v1027, 0.0
  %v1515 = vmax.f32 %v1030, 0.0
  %v1516 = vmax.f32 %v1033, 0.0
  %v1517 = vmax.f32 %v1036, 0.0
  %v1518 = vmax.f32 %v1039, 0.0
  %v1519 = vmax.f32 %v1042, 0.0
  %v1520 = vmax.f32 %v1045, 0.0
  %v1521 = vmax.f32 %v1048, 0.0
  %v1522 = vmax.f32 %v1051, 0.0
  %v1523 = vmax.f32 %v1054, 0.0
  %v1524 = vmax.f32 %v1057, 0.0
  %v1525 = vmax.f32 %v1060, 0.0
  %v1526 = vmax.f32 %v1063, 0.0
  %v1527 = vmax.f32 %v1066, 0.0
  %v1528 = vmax.f32 %v1069, 0.0
  %v1529 = vmax.f32 %v1072, 0.0
  %v1530 = vmax.f32 %v1075, 0.0
  %v1531 = vmax.f32 %v1078, 0.0
  %v1532 = vmax.f32 %v1081, 0.0
  %v1533 = vmax.f32 %v1084, 0.0
  %v1534 = vmax.f32 %v1087, 0.0
  %v1535 = vmax.f32 %v1090, 0.0
  %v1536 = vmax.f32 %v1093, 0.0
  %v1537 = vmax.f32 %v1096, 0.0
  %v1538 = vmax.f32 %v1099, 0.0
  %v1539 = vmax.f32 %v1102, 0.0
  %v1540 = vmax.f32 %v1105, 0.0
  %v1541 = vmax.f32 %v1108, 0.0
  %v1542 = vmax.f32 %v1111, 0.0
  %v1543 = vmax.f32 %v1114, 0.0
  %v1544 = vmax.f32 %v1117, 0.0
  %v1545 = vmax.f32 %v1120, 0.0
  %v1546 = vmax.f32 %v1123, 0.0
  %v1547 = vmax.f32 %v1126, 0.0
  %v1548 = vmax.f32 %v1129, 0.0
  %v1549 = vmax.f32 %v1132, 0.0
  %v1550 = vmax.f32 %v1135, 0.0
  %v1551 = vmax.f32 %v1138, 0.0
  %v1552 = vmax.f32 %v1141, 0.0
  %v1553 = vmax.f32 %v1144, 0.0
  %v1554 = vmax.f32 %v1147, 0.0
  %v1555 = vmax.f32 %v1150, 0.0
  %v1556 = vmax.f32 %v1153, 0.0
  %v1557 = vmax.f32 %v1156, 0.0
  %v1558 = vmax.f32 %v1159, 0.0
  %v1559 = vmax.f32 %v1162, 0.0
  %v1560 = vmax.f32 %v1165, 0.0
  %v1561 = vmax.f32 %v1168, 0.0
  %v1562 = vmax.f32 %v1171, 0.0
  %v1563 = vmax.f32 %v1174, 0.0
  %v1564 = vmax.f32 %v1177, 0.0
  %v1565 = vmax.f32 %v1180, 0.0
  %v1566 = vmax.f32 %v1183, 0.0
  %v1567 = vmax.f32 %v1186, 0.0
  %v1568 = vmax.f32 %v1189, 0.0
  %v1569 = vmax.f32 %v1192, 0.0
  %v1570 = vmax.f32 %v1195, 0.0
  %v1571 = vmax.f32 %v1198, 0.0
  %v1572 = vmax.f32 %v1201, 0.0
  %v1573 = vmax.f32 %v1204, 0.0
  %v1574 = vmax.f32 %v1207, 0.0
  %v1575 = vmax.f32 %v1210, 0.0
  %v1576 = vmax.f32 %v1213, 0.0
  %v1577 = vmax.f32 %v1216, 0.0
  %v1578 = vmax.f32 %v1219, 0.0
  %v1579 = vmax.f32 %v1222, 0.0
  %v1580 = vmax.f32 %v1225, 0.0
  %v1581 = vmax.f32 %v1228, 0.0
  %v1582 = vmax.f32 %v1231, 0.0
  %v1583 = vmax.f32 %v1234, 0.0
  %v1584 = vmax.f32 %v1237, 0.0
  %v1585 = vmax.f32 %v1240, 0.0
  %v1586 = vmax.f32 %v1243, 0.0
  %v1587 = vmax.f32 %v1246, 0.0
  %v1588 = vmax.f32 %v1249, 0.0
  %v1589 = vmax.f32 %v1252, 0.0
  %v1590 = vmax.f32 %v1255, 0.0
  %v1591 = vmax.f32 %v1258, 0.0
  %v1592 = vmax.f32 %v1261, 0.0
  %v1593 = vmax.f32 %v1264, 0.0
  %v1594 = vmax.f32 %v1267, 0.0
  %v1595 = vmax.f32 %v1270, 0.0
  %v1596 = vmax.f32 %v1273, 0.0
  %v1597 = vmax.f32 %v1276, 0.0
  %v1598 = vmax.f32 %v1279, 0.0
  %v1599 = vmax.f32 %v1282, 0.0
  %v1600 = vmax.f32 %v1285, 0.0
  %v1601 = vmax.f32 %v1288, 0.0
  %v1602 = vmax.f32 %v1291, 0.0
  %v1603 = vmax.f32 %v1294, 0.0
  %v1604 = vmax.f32 %v1297, 0.0
  %v1605 = vmax.f32 %v1300, 0.0
  %v1606 = vmax.f32 %v1303, 0.0
  %v1607 = vmax.f32 %v1306, 0.0
  %v1608 = vmax.f32 %v1309, 0.0
  %v1609 = vmax.f32 %v1312, 0.0
  %v1610 = vmax.f32 %v1315, 0.0
  %v1611 = vmax.f32 %v1318, 0.0
  %v1612 = vmax.f32 %v1321, 0.0
  %v1613 = vmax.f32 %v1324, 0.0
  %v1614 = vmax.f32 %v1327, 0.0
  %v1615 = vmax.f32 %v1330, 0.0
  %v1616 = vmax.f32 %v1333, 0.0
  %v1617 = vmax.f32 %v1336, 0.0
  %v1618 = vmax.f32 %v1339, 0.0
  %v1619 = vmax.f32 %v1342, 0.0
  %v1620 = vmax.f32 %v1345, 0.0
  %v1621 = vmax.f32 %v1348, 0.0
  %v1622 = vmax.f32 %v1351, 0.0
  %v1623 = vmax.f32 %v1354, 0.0
  %v1624 = vmax.f32 %v1357, 0.0
  %v1625 = vmax.f32 %v1360, 0.0
  %v1626 = vmax.f32 %v1363, 0.0
  %v1627 = vmax.f32 %v1366, 0.0
  %v1628 = vmax.f32 %v1369, 0.0
  %v1629 = vmax.f32 %v1372, 0.0
  %v1630 = vmax.f32 %v1375, 0.0
  %v1631 = vmax.f32 %v1378, 0.0
  %v1632 = vmax.f32 %v1381, 0.0
  %v1633 = vmax.f32 %v1384, 0.0
  %v1634 = vmax.f32 %v1387, 0.0
  %v1635 = vmax.f32 %v1390, 0.0
  %v1636 = vmax.f32 %v1393, 0.0
  %v1637 = vmax.f32 %v1396, 0.0
  %v1638 = vmax.f32 %v1399, 0.0
  %v1639 = vmax.f32 %v1402, 0.0
  %v1640 = vmax.f32 %v1405, 0.0
  %v1641 = vmax.f32 %v1408, 0.0
  %v1642 = vmax.f32 %v1411, 0.0
  %v1643 = vmax.f32 %v1414, 0.0
  %v1644 = vmax.f32 %v1417, 0.0
  %v1645 = vmax.f32 %v1420, 0.0
  %v1646 = vmax.f32 %v1423, 0.0
  %v1647 = vmax.f32 %v1426, 0.0
  %v1648 = vmax.f32 %v1429, 0.0
  %v1649 = vmax.f32 %v1432, 0.0
  %v1650 = vmax.f32 %v1435, 0.0
  %v1651 = vmax.f32 %v1438, 0.0
  %v1652 = vmax.f32 %v1441, 0.0
  %v1653 = vmax.f32 %v1444, 0.0
  %v1654 = vmax.f32 %v1447, 0.0
  %v1655 = vmax.f32 %v1450, 0.0
  %v1656 = vmax.f32 %v1453, 0.0
  %v1657 = vmax.f32 %v1456, 0.0
  %v1658 = vmax.f32 %v1459, 0.0
  %v1659 = vmax.f32 %v1462, 0.0
  %vm1660 = vcmask 130048
  %1661 = vst.msk [vmem:[#allocation2] sm:$0xff] %vm1660, 0.0
  %1662 = vst.msk [vmem:[#allocation2 + $0x8] sm:$0xff] %vm1660, 0.0
  %1663 = vst.msk [vmem:[#allocation2 + $0x10] sm:$0xff] %vm1660, 0.0
  %1664 = vst.msk [vmem:[#allocation2 + $0x18] sm:$0xff] %vm1660, 0.0
  %1665 = vst.msk [vmem:[#allocation2 + $0x20] sm:$0xff] %vm1660, 0.0
  %1666 = vst.msk [vmem:[#allocation2 + $0x28] sm:$0xff] %vm1660, 0.0
  %1667 = vst.msk [vmem:[#allocation2 + $0x30] sm:$0xff] %vm1660, 0.0
  %1668 = vst.msk [vmem:[#allocation2 + $0x38] sm:$0xff] %vm1660, 0.0
  %1669 = vst.msk [vmem:[#allocation2 + $0x40] sm:$0xff] %vm1660, 0.0
  %1670 = vst.msk [vmem:[#allocation2 + $0x48] sm:$0xff] %vm1660, 0.0
  %1671 = vst.msk [vmem:[#allocation2 + $0x50] sm:$0xff] %vm1660, 0.0
  %1672 = vst.msk [vmem:[#allocation2 + $0x58] sm:$0xff] %vm1660, 0.0
  %1673 = vst.msk [vmem:[#allocation2 + $0x60] sm:$0xff] %vm1660, 0.0
  %1674 = vst.msk [vmem:[#allocation2 + $0x68] sm:$0xff] %vm1660, 0.0
  %1675 = vst.msk [vmem:[#allocation2 + $0x70] sm:$0xff] %vm1660, 0.0
  %1676 = vst.msk [vmem:[#allocation2 + $0x78] sm:$0xff] %vm1660, 0.0
  %1677 = vst.msk [vmem:[#allocation2 + $0x80] sm:$0xff] %vm1660, 0.0
  %1678 = vst.msk [vmem:[#allocation2 + $0x88] sm:$0xff] %vm1660, 0.0
  %1679 = vst.msk [vmem:[#allocation2 + $0x90] sm:$0xff] %vm1660, 0.0
  %1680 = vst.msk [vmem:[#allocation2 + $0x98] sm:$0xff] %vm1660, 0.0
  %1681 = vst.msk [vmem:[#allocation2 + $0xa0] sm:$0xff] %vm1660, 0.0
  %1682 = vst.msk [vmem:[#allocation2 + $0xa8] sm:$0xff] %vm1660, 0.0
  %1683 = vst.msk [vmem:[#allocation2 + $0xb0] sm:$0xff] %vm1660, 0.0
  %1684 = vst.msk [vmem:[#allocation2 + $0xb8] sm:$0xff] %vm1660, 0.0
  %1685 = vst.msk [vmem:[#allocation2 + $0xc0] sm:$0xff] %vm1660, 0.0
  %1686 = vst.msk [vmem:[#allocation2 + $0xc8] sm:$0xff] %vm1660, 0.0
  %1687 = vst.msk [vmem:[#allocation2 + $0xd0] sm:$0xff] %vm1660, 0.0
  %1688 = vst.msk [vmem:[#allocation2 + $0xd8] sm:$0xff] %vm1660, 0.0
  %1689 = vst.msk [vmem:[#allocation2 + $0xe0] sm:$0xff] %vm1660, 0.0
  %1690 = vst.msk [vmem:[#allocation2 + $0xe8] sm:$0xff] %vm1660, 0.0
  %1691 = vst.msk [vmem:[#allocation2 + $0xf0] sm:$0xff] %vm1660, 0.0
  %1692 = vst.msk [vmem:[#allocation2 + $0xf8] sm:$0xff] %vm1660, 0.0
  %1693 = vst.msk [vmem:[#allocation2 + $0x100] sm:$0xff] %vm1660, 0.0
  %1694 = vst.msk [vmem:[#allocation2 + $0x108] sm:$0xff] %vm1660, 0.0
  %1695 = vst.msk [vmem:[#allocation2 + $0x110] sm:$0xff] %vm1660, 0.0
  %1696 = vst.msk [vmem:[#allocation2 + $0x118] sm:$0xff] %vm1660, 0.0
  %1697 = vst.msk [vmem:[#allocation2 + $0x120] sm:$0xff] %vm1660, 0.0
  %1698 = vst.msk [vmem:[#allocation2 + $0x128] sm:$0xff] %vm1660, 0.0
  %1699 = vst.msk [vmem:[#allocation2 + $0x130] sm:$0xff] %vm1660, 0.0
  %1700 = vst.msk [vmem:[#allocation2 + $0x138] sm:$0xff] %vm1660, 0.0
  %1701 = vst.msk [vmem:[#allocation2 + $0x140] sm:$0xff] %vm1660, 0.0
  %1702 = vst.msk [vmem:[#allocation2 + $0x148] sm:$0xff] %vm1660, 0.0
  %1703 = vst.msk [vmem:[#allocation2 + $0x150] sm:$0xff] %vm1660, 0.0
  %1704 = vst.msk [vmem:[#allocation2 + $0x158] sm:$0xff] %vm1660, 0.0
  %1705 = vst.msk [vmem:[#allocation2 + $0x160] sm:$0xff] %vm1660, 0.0
  %1706 = vst.msk [vmem:[#allocation2 + $0x168] sm:$0xff] %vm1660, 0.0
  %1707 = vst.msk [vmem:[#allocation2 + $0x170] sm:$0xff] %vm1660, 0.0
  %1708 = vst.msk [vmem:[#allocation2 + $0x178] sm:$0xff] %vm1660, 0.0
  %1709 = vst.msk [vmem:[#allocation2 + $0x180] sm:$0xff] %vm1660, 0.0
  %1710 = vst.msk [vmem:[#allocation2 + $0x188] sm:$0xff] %vm1660, 0.0
  %1711 = vst.msk [vmem:[#allocation2 + $0x190] sm:$0xff] %vm1660, 0.0
  %1712 = vst.msk [vmem:[#allocation2 + $0x198] sm:$0xff] %vm1660, 0.0
  %1713 = vst.msk [vmem:[#allocation2 + $0x1a0] sm:$0xff] %vm1660, 0.0
  %1714 = vst.msk [vmem:[#allocation2 + $0x1a8] sm:$0xff] %vm1660, 0.0
  %1715 = vst.msk [vmem:[#allocation2 + $0x1b0] sm:$0xff] %vm1660, 0.0
  %1716 = vst.msk [vmem:[#allocation2 + $0x1b8] sm:$0xff] %vm1660, 0.0
  %1717 = vst.msk [vmem:[#allocation2 + $0x1c0] sm:$0xff] %vm1660, 0.0
  %1718 = vst.msk [vmem:[#allocation2 + $0x1c8] sm:$0xff] %vm1660, 0.0
  %1719 = vst.msk [vmem:[#allocation2 + $0x1d0] sm:$0xff] %vm1660, 0.0
  %1720 = vst.msk [vmem:[#allocation2 + $0x1d8] sm:$0xff] %vm1660, 0.0
  %1721 = vst.msk [vmem:[#allocation2 + $0x1e0] sm:$0xff] %vm1660, 0.0
  %1722 = vst.msk [vmem:[#allocation2 + $0x1e8] sm:$0xff] %vm1660, 0.0
  %1723 = vst.msk [vmem:[#allocation2 + $0x1f0] sm:$0xff] %vm1660, 0.0
  %1724 = vst.msk [vmem:[#allocation2 + $0x1f8] sm:$0xff] %vm1660, 0.0
  %1725 = vst.msk [vmem:[#allocation2 + $0x200] sm:$0xff] %vm1660, 0.0
  %1726 = vst.msk [vmem:[#allocation2 + $0x208] sm:$0xff] %vm1660, 0.0
  %1727 = vst.msk [vmem:[#allocation2 + $0x210] sm:$0xff] %vm1660, 0.0
  %1728 = vst.msk [vmem:[#allocation2 + $0x218] sm:$0xff] %vm1660, 0.0
  %1729 = vst.msk [vmem:[#allocation2 + $0x220] sm:$0xff] %vm1660, 0.0
  %1730 = vst.msk [vmem:[#allocation2 + $0x228] sm:$0xff] %vm1660, 0.0
  %1731 = vst.msk [vmem:[#allocation2 + $0x230] sm:$0xff] %vm1660, 0.0
  %1732 = vst.msk [vmem:[#allocation2 + $0x238] sm:$0xff] %vm1660, 0.0
  %1733 = vst.msk [vmem:[#allocation2 + $0x240] sm:$0xff] %vm1660, 0.0
  %1734 = vst.msk [vmem:[#allocation2 + $0x248] sm:$0xff] %vm1660, 0.0
  %1735 = vst.msk [vmem:[#allocation2 + $0x250] sm:$0xff] %vm1660, 0.0
  %1736 = vst.msk [vmem:[#allocation2 + $0x258] sm:$0xff] %vm1660, 0.0
  %1737 = vst.msk [vmem:[#allocation2 + $0x260] sm:$0xff] %vm1660, 0.0
  %1738 = vst.msk [vmem:[#allocation2 + $0x268] sm:$0xff] %vm1660, 0.0
  %1739 = vst.msk [vmem:[#allocation2 + $0x270] sm:$0xff] %vm1660, 0.0
  %1740 = vst.msk [vmem:[#allocation2 + $0x278] sm:$0xff] %vm1660, 0.0
  %1741 = vst.msk [vmem:[#allocation2 + $0x280] sm:$0xff] %vm1660, 0.0
  %1742 = vst.msk [vmem:[#allocation2 + $0x288] sm:$0xff] %vm1660, 0.0
  %1743 = vst.msk [vmem:[#allocation2 + $0x290] sm:$0xff] %vm1660, 0.0
  %1744 = vst.msk [vmem:[#allocation2 + $0x298] sm:$0xff] %vm1660, 0.0
  %1745 = vst.msk [vmem:[#allocation2 + $0x2a0] sm:$0xff] %vm1660, 0.0
  %1746 = vst.msk [vmem:[#allocation2 + $0x2a8] sm:$0xff] %vm1660, 0.0
  %1747 = vst.msk [vmem:[#allocation2 + $0x2b0] sm:$0xff] %vm1660, 0.0
  %1748 = vst.msk [vmem:[#allocation2 + $0x2b8] sm:$0xff] %vm1660, 0.0
  %1749 = vst.msk [vmem:[#allocation2 + $0x2c0] sm:$0xff] %vm1660, 0.0
  %1750 = vst.msk [vmem:[#allocation2 + $0x2c8] sm:$0xff] %vm1660, 0.0
  %1751 = vst.msk [vmem:[#allocation2 + $0x2d0] sm:$0xff] %vm1660, 0.0
  %1752 = vst.msk [vmem:[#allocation2 + $0x2d8] sm:$0xff] %vm1660, 0.0
  %1753 = vst.msk [vmem:[#allocation2 + $0x2e0] sm:$0xff] %vm1660, 0.0
  %1754 = vst.msk [vmem:[#allocation2 + $0x2e8] sm:$0xff] %vm1660, 0.0
  %1755 = vst.msk [vmem:[#allocation2 + $0x2f0] sm:$0xff] %vm1660, 0.0
  %1756 = vst.msk [vmem:[#allocation2 + $0x2f8] sm:$0xff] %vm1660, 0.0
  %1757 = vst.msk [vmem:[#allocation2 + $0x300] sm:$0xff] %vm1660, 0.0
  %1758 = vst.msk [vmem:[#allocation2 + $0x308] sm:$0xff] %vm1660, 0.0
  %1759 = vst.msk [vmem:[#allocation2 + $0x310] sm:$0xff] %vm1660, 0.0
  %1760 = vst.msk [vmem:[#allocation2 + $0x318] sm:$0xff] %vm1660, 0.0
  %1761 = vst.msk [vmem:[#allocation2 + $0x320] sm:$0xff] %vm1660, 0.0
  %1762 = vst.msk [vmem:[#allocation2 + $0x328] sm:$0xff] %vm1660, 0.0
  %1763 = vst.msk [vmem:[#allocation2 + $0x330] sm:$0xff] %vm1660, 0.0
  %1764 = vst.msk [vmem:[#allocation2 + $0x338] sm:$0xff] %vm1660, 0.0
  %1765 = vst.msk [vmem:[#allocation2 + $0x340] sm:$0xff] %vm1660, 0.0
  %1766 = vst.msk [vmem:[#allocation2 + $0x348] sm:$0xff] %vm1660, 0.0
  %1767 = vst.msk [vmem:[#allocation2 + $0x350] sm:$0xff] %vm1660, 0.0
  %1768 = vst.msk [vmem:[#allocation2 + $0x358] sm:$0xff] %vm1660, 0.0
  %1769 = vst.msk [vmem:[#allocation2 + $0x360] sm:$0xff] %vm1660, 0.0
  %1770 = vst.msk [vmem:[#allocation2 + $0x368] sm:$0xff] %vm1660, 0.0
  %1771 = vst.msk [vmem:[#allocation2 + $0x370] sm:$0xff] %vm1660, 0.0
  %1772 = vst.msk [vmem:[#allocation2 + $0x378] sm:$0xff] %vm1660, 0.0
  %1773 = vst.msk [vmem:[#allocation2 + $0x380] sm:$0xff] %vm1660, 0.0
  %1774 = vst.msk [vmem:[#allocation2 + $0x388] sm:$0xff] %vm1660, 0.0
  %1775 = vst.msk [vmem:[#allocation2 + $0x390] sm:$0xff] %vm1660, 0.0
  %1776 = vst.msk [vmem:[#allocation2 + $0x398] sm:$0xff] %vm1660, 0.0
  %1777 = vst.msk [vmem:[#allocation2 + $0x3a0] sm:$0xff] %vm1660, 0.0
  %1778 = vst.msk [vmem:[#allocation2 + $0x3a8] sm:$0xff] %vm1660, 0.0
  %1779 = vst.msk [vmem:[#allocation2 + $0x3b0] sm:$0xff] %vm1660, 0.0
  %1780 = vst.msk [vmem:[#allocation2 + $0x3b8] sm:$0xff] %vm1660, 0.0
  %1781 = vst.msk [vmem:[#allocation2 + $0x3c0] sm:$0xff] %vm1660, 0.0
  %1782 = vst.msk [vmem:[#allocation2 + $0x3c8] sm:$0xff] %vm1660, 0.0
  %1783 = vst.msk [vmem:[#allocation2 + $0x3d0] sm:$0xff] %vm1660, 0.0
  %1784 = vst.msk [vmem:[#allocation2 + $0x3d8] sm:$0xff] %vm1660, 0.0
  %1785 = vst.msk [vmem:[#allocation2 + $0x3e0] sm:$0xff] %vm1660, 0.0
  %1786 = vst.msk [vmem:[#allocation2 + $0x3e8] sm:$0xff] %vm1660, 0.0
  %1787 = vst.msk [vmem:[#allocation2 + $0x3f0] sm:$0xff] %vm1660, 0.0
  %1788 = vst.msk [vmem:[#allocation2 + $0x3f8] sm:$0xff] %vm1660, 0.0
  %1789 = vst.msk [vmem:[#allocation2 + $0x400] sm:$0xff] %vm1660, 0.0
  %1790 = vst.msk [vmem:[#allocation2 + $0x408] sm:$0xff] %vm1660, 0.0
  %1791 = vst.msk [vmem:[#allocation2 + $0x410] sm:$0xff] %vm1660, 0.0
  %1792 = vst.msk [vmem:[#allocation2 + $0x418] sm:$0xff] %vm1660, 0.0
  %1793 = vst.msk [vmem:[#allocation2 + $0x420] sm:$0xff] %vm1660, 0.0
  %1794 = vst.msk [vmem:[#allocation2 + $0x428] sm:$0xff] %vm1660, 0.0
  %1795 = vst.msk [vmem:[#allocation2 + $0x430] sm:$0xff] %vm1660, 0.0
  %1796 = vst.msk [vmem:[#allocation2 + $0x438] sm:$0xff] %vm1660, 0.0
  %1797 = vst.msk [vmem:[#allocation2 + $0x440] sm:$0xff] %vm1660, 0.0
  %1798 = vst.msk [vmem:[#allocation2 + $0x448] sm:$0xff] %vm1660, 0.0
  %1799 = vst.msk [vmem:[#allocation2 + $0x450] sm:$0xff] %vm1660, 0.0
  %1800 = vst.msk [vmem:[#allocation2 + $0x458] sm:$0xff] %vm1660, 0.0
  %1801 = vst.msk [vmem:[#allocation2 + $0x460] sm:$0xff] %vm1660, 0.0
  %1802 = vst.msk [vmem:[#allocation2 + $0x468] sm:$0xff] %vm1660, 0.0
  %1803 = vst.msk [vmem:[#allocation2 + $0x470] sm:$0xff] %vm1660, 0.0
  %1804 = vst.msk [vmem:[#allocation2 + $0x478] sm:$0xff] %vm1660, 0.0
  %1805 = vst.msk [vmem:[#allocation2 + $0x480] sm:$0xff] %vm1660, 0.0
  %1806 = vst.msk [vmem:[#allocation2 + $0x488] sm:$0xff] %vm1660, 0.0
  %1807 = vst.msk [vmem:[#allocation2 + $0x490] sm:$0xff] %vm1660, 0.0
  %1808 = vst.msk [vmem:[#allocation2 + $0x498] sm:$0xff] %vm1660, 0.0
  %1809 = vst.msk [vmem:[#allocation2 + $0x4a0] sm:$0xff] %vm1660, 0.0
  %1810 = vst.msk [vmem:[#allocation2 + $0x4a8] sm:$0xff] %vm1660, 0.0
  %1811 = vst.msk [vmem:[#allocation2 + $0x4b0] sm:$0xff] %vm1660, 0.0
  %1812 = vst.msk [vmem:[#allocation2 + $0x4b8] sm:$0xff] %vm1660, 0.0
  %1813 = vst.msk [vmem:[#allocation2 + $0x4c0] sm:$0xff] %vm1660, 0.0
  %1814 = vst.msk [vmem:[#allocation2 + $0x4c8] sm:$0xff] %vm1660, 0.0
  %1815 = vst.msk [vmem:[#allocation2 + $0x4d0] sm:$0xff] %vm1660, 0.0
  %1816 = vst.msk [vmem:[#allocation2 + $0x4d8] sm:$0xff] %vm1660, 0.0
  %1817 = vst.msk [vmem:[#allocation2 + $0x4e0] sm:$0xff] %vm1660, 0.0
  %1818 = vst.msk [vmem:[#allocation2 + $0x4e8] sm:$0xff] %vm1660, 0.0
  %1819 = vst.msk [vmem:[#allocation2 + $0x4f0] sm:$0xff] %vm1660, 0.0
  %1820 = vst.msk [vmem:[#allocation2 + $0x4f8] sm:$0xff] %vm1660, 0.0
  %1821 = vst.msk [vmem:[#allocation2 + $0x500] sm:$0xff] %vm1660, 0.0
  %1822 = vst.msk [vmem:[#allocation2 + $0x508] sm:$0xff] %vm1660, 0.0
  %1823 = vst.msk [vmem:[#allocation2 + $0x510] sm:$0xff] %vm1660, 0.0
  %1824 = vst.msk [vmem:[#allocation2 + $0x518] sm:$0xff] %vm1660, 0.0
  %1825 = vst.msk [vmem:[#allocation2 + $0x520] sm:$0xff] %vm1660, 0.0
  %1826 = vst.msk [vmem:[#allocation2 + $0x528] sm:$0xff] %vm1660, 0.0
  %1827 = vst.msk [vmem:[#allocation2 + $0x530] sm:$0xff] %vm1660, 0.0
  %1828 = vst.msk [vmem:[#allocation2 + $0x538] sm:$0xff] %vm1660, 0.0
  %1829 = vst.msk [vmem:[#allocation2 + $0x540] sm:$0xff] %vm1660, 0.0
  %1830 = vst.msk [vmem:[#allocation2 + $0x548] sm:$0xff] %vm1660, 0.0
  %1831 = vst.msk [vmem:[#allocation2 + $0x550] sm:$0xff] %vm1660, 0.0
  %1832 = vst.msk [vmem:[#allocation2 + $0x558] sm:$0xff] %vm1660, 0.0
  %1833 = vst.msk [vmem:[#allocation2 + $0x560] sm:$0xff] %vm1660, 0.0
  %1834 = vst.msk [vmem:[#allocation2 + $0x568] sm:$0xff] %vm1660, 0.0
  %1835 = vst.msk [vmem:[#allocation2 + $0x570] sm:$0xff] %vm1660, 0.0
  %1836 = vst.msk [vmem:[#allocation2 + $0x578] sm:$0xff] %vm1660, 0.0
  %1837 = vst.msk [vmem:[#allocation2 + $0x580] sm:$0xff] %vm1660, 0.0
  %1838 = vst.msk [vmem:[#allocation2 + $0x588] sm:$0xff] %vm1660, 0.0
  %1839 = vst.msk [vmem:[#allocation2 + $0x590] sm:$0xff] %vm1660, 0.0
  %1840 = vst.msk [vmem:[#allocation2 + $0x598] sm:$0xff] %vm1660, 0.0
  %1841 = vst.msk [vmem:[#allocation2 + $0x5a0] sm:$0xff] %vm1660, 0.0
  %1842 = vst.msk [vmem:[#allocation2 + $0x5a8] sm:$0xff] %vm1660, 0.0
  %1843 = vst.msk [vmem:[#allocation2 + $0x5b0] sm:$0xff] %vm1660, 0.0
  %1844 = vst.msk [vmem:[#allocation2 + $0x5b8] sm:$0xff] %vm1660, 0.0
  %1845 = vst.msk [vmem:[#allocation2 + $0x5c0] sm:$0xff] %vm1660, 0.0
  %1846 = vst.msk [vmem:[#allocation2 + $0x5c8] sm:$0xff] %vm1660, 0.0
  %1847 = vst.msk [vmem:[#allocation2 + $0x5d0] sm:$0xff] %vm1660, 0.0
  %1848 = vst.msk [vmem:[#allocation2 + $0x5d8] sm:$0xff] %vm1660, 0.0
  %1849 = vst.msk [vmem:[#allocation2 + $0x5e0] sm:$0xff] %vm1660, 0.0
  %1850 = vst.msk [vmem:[#allocation2 + $0x5e8] sm:$0xff] %vm1660, 0.0
  %1851 = vst.msk [vmem:[#allocation2 + $0x5f0] sm:$0xff] %vm1660, 0.0
  %1852 = vst.msk [vmem:[#allocation2 + $0x5f8] sm:$0xff] %vm1660, 0.0
  %1853 = vst.msk [vmem:[#allocation2 + $0x600] sm:$0xff] %vm1660, 0.0
  %1854 = vst.msk [vmem:[#allocation2 + $0x608] sm:$0xff] %vm1660, 0.0
  %1855 = vst.msk [vmem:[#allocation2 + $0x610] sm:$0xff] %vm1660, 0.0
  %1856 = vst.msk [vmem:[#allocation2 + $0x618] sm:$0xff] %vm1660, 0.0
  %1857 = vst.msk [vmem:[#allocation2 + $0x620] sm:$0xff] %vm1660, 0.0
  %1858 = vst.msk [vmem:[#allocation2 + $0x628] sm:$0xff] %vm1660, 0.0
  %1859 = vst.msk [vmem:[#allocation2 + $0x630] sm:$0xff] %vm1660, 0.0
  %1860 = vst.msk [vmem:[#allocation2 + $0x638] sm:$0xff] %vm1660, 0.0
  %1861 = vst.msk [vmem:[#allocation2 + $0x640] sm:$0xff] %vm1660, 0.0
  %1862 = vst.msk [vmem:[#allocation2 + $0x648] sm:$0xff] %vm1660, 0.0
  %1863 = vst.msk [vmem:[#allocation2 + $0x650] sm:$0xff] %vm1660, 0.0
  %1864 = vst.msk [vmem:[#allocation2 + $0x658] sm:$0xff] %vm1660, 0.0
  %1865 = vst.msk [vmem:[#allocation2 + $0x660] sm:$0xff] %vm1660, 0.0
  %1866 = vst.msk [vmem:[#allocation2 + $0x668] sm:$0xff] %vm1660, 0.0
  %1867 = vst.msk [vmem:[#allocation2 + $0x670] sm:$0xff] %vm1660, 0.0
  %1868 = vst.msk [vmem:[#allocation2 + $0x678] sm:$0xff] %vm1660, 0.0
  %1869 = vst.msk [vmem:[#allocation2 + $0x680] sm:$0xff] %vm1660, 0.0
  %1870 = vst.msk [vmem:[#allocation2 + $0x688] sm:$0xff] %vm1660, 0.0
  %1871 = vst.msk [vmem:[#allocation2 + $0x690] sm:$0xff] %vm1660, 0.0
  %1872 = vst.msk [vmem:[#allocation2 + $0x698] sm:$0xff] %vm1660, 0.0
  %1873 = vst.msk [vmem:[#allocation2 + $0x6a0] sm:$0xff] %vm1660, 0.0
  %1874 = vst.msk [vmem:[#allocation2 + $0x6a8] sm:$0xff] %vm1660, 0.0
  %1875 = vst.msk [vmem:[#allocation2 + $0x6b0] sm:$0xff] %vm1660, 0.0
  %1876 = vst.msk [vmem:[#allocation2 + $0x6b8] sm:$0xff] %vm1660, 0.0
  %1877 = vst.msk [vmem:[#allocation2 + $0x6c0] sm:$0xff] %vm1660, 0.0
  %1878 = vst.msk [vmem:[#allocation2 + $0x6c8] sm:$0xff] %vm1660, 0.0
  %1879 = vst.msk [vmem:[#allocation2 + $0x6d0] sm:$0xff] %vm1660, 0.0
  %1880 = vst.msk [vmem:[#allocation2 + $0x6d8] sm:$0xff] %vm1660, 0.0
  %1881 = vst.msk [vmem:[#allocation2 + $0x6e0] sm:$0xff] %vm1660, 0.0
  %1882 = vst.msk [vmem:[#allocation2 + $0x6e8] sm:$0xff] %vm1660, 0.0
  %1883 = vst.msk [vmem:[#allocation2 + $0x6f0] sm:$0xff] %vm1660, 0.0
  %1884 = vst.msk [vmem:[#allocation2 + $0x6f8] sm:$0xff] %vm1660, 0.0
  %1885 = vst.msk [vmem:[#allocation2 + $0x700] sm:$0xff] %vm1660, 0.0
  %1886 = vst.msk [vmem:[#allocation2 + $0x708] sm:$0xff] %vm1660, 0.0
  %1887 = vst.msk [vmem:[#allocation2 + $0x710] sm:$0xff] %vm1660, 0.0
  %1888 = vst.msk [vmem:[#allocation2 + $0x718] sm:$0xff] %vm1660, 0.0
  %1889 = vst.msk [vmem:[#allocation2 + $0x720] sm:$0xff] %vm1660, 0.0
  %1890 = vst.msk [vmem:[#allocation2 + $0x728] sm:$0xff] %vm1660, 0.0
  %1891 = vst.msk [vmem:[#allocation2 + $0x730] sm:$0xff] %vm1660, 0.0
  %1892 = vst.msk [vmem:[#allocation2 + $0x738] sm:$0xff] %vm1660, 0.0
  %1893 = vst.msk [vmem:[#allocation2 + $0x740] sm:$0xff] %vm1660, 0.0
  %1894 = vst.msk [vmem:[#allocation2 + $0x748] sm:$0xff] %vm1660, 0.0
  %1895 = vst.msk [vmem:[#allocation2 + $0x750] sm:$0xff] %vm1660, 0.0
  %1896 = vst.msk [vmem:[#allocation2 + $0x758] sm:$0xff] %vm1660, 0.0
  %1897 = vst.msk [vmem:[#allocation2 + $0x760] sm:$0xff] %vm1660, 0.0
  %1898 = vst.msk [vmem:[#allocation2 + $0x768] sm:$0xff] %vm1660, 0.0
  %1899 = vst.msk [vmem:[#allocation2 + $0x770] sm:$0xff] %vm1660, 0.0
  %1900 = vst.msk [vmem:[#allocation2 + $0x778] sm:$0xff] %vm1660, 0.0
  %1901 = vst.msk [vmem:[#allocation2 + $0x780] sm:$0xff] %vm1660, 0.0
  %1902 = vst.msk [vmem:[#allocation2 + $0x788] sm:$0xff] %vm1660, 0.0
  %1903 = vst.msk [vmem:[#allocation2 + $0x790] sm:$0xff] %vm1660, 0.0
  %1904 = vst.msk [vmem:[#allocation2 + $0x798] sm:$0xff] %vm1660, 0.0
  %1905 = vst.msk [vmem:[#allocation2 + $0x7a0] sm:$0xff] %vm1660, 0.0
  %1906 = vst.msk [vmem:[#allocation2 + $0x7a8] sm:$0xff] %vm1660, 0.0
  %1907 = vst.msk [vmem:[#allocation2 + $0x7b0] sm:$0xff] %vm1660, 0.0
  %1908 = vst.msk [vmem:[#allocation2 + $0x7b8] sm:$0xff] %vm1660, 0.0
  %1909 = vst.msk [vmem:[#allocation2 + $0x7c0] sm:$0xff] %vm1660, 0.0
  %1910 = vst.msk [vmem:[#allocation2 + $0x7c8] sm:$0xff] %vm1660, 0.0
  %1911 = vst.msk [vmem:[#allocation2 + $0x7d0] sm:$0xff] %vm1660, 0.0
  %1912 = vst.msk [vmem:[#allocation2 + $0x7d8] sm:$0xff] %vm1660, 0.0
  %1913 = vst.msk [vmem:[#allocation2 + $0x7e0] sm:$0xff] %vm1660, 0.0
  %1914 = vst.msk [vmem:[#allocation2 + $0x7e8] sm:$0xff] %vm1660, 0.0
  %1915 = vst.msk [vmem:[#allocation2 + $0x7f0] sm:$0xff] %vm1660, 0.0
  %1916 = vst.msk [vmem:[#allocation2 + $0x7f8] sm:$0xff] %vm1660, 0.0
  %s1917 = scalar_lea.vmem [#allocation2], 136
  %1918 = vst.msk [vmem:[%s1917] sm:$0xff] %vm1660, %v1464
  %1919 = vst.msk [vmem:[%s1917 + $0x8] sm:$0xff] %vm1660, %v1465
  %1920 = vst.msk [vmem:[%s1917 + $0x10] sm:$0xff] %vm1660, %v1466
  %1921 = vst.msk [vmem:[%s1917 + $0x18] sm:$0xff] %vm1660, %v1467
  %1922 = vst.msk [vmem:[%s1917 + $0x20] sm:$0xff] %vm1660, %v1468
  %1923 = vst.msk [vmem:[%s1917 + $0x28] sm:$0xff] %vm1660, %v1469
  %1924 = vst.msk [vmem:[%s1917 + $0x30] sm:$0xff] %vm1660, %v1470
  %1925 = vst.msk [vmem:[%s1917 + $0x38] sm:$0xff] %vm1660, %v1471
  %1926 = vst.msk [vmem:[%s1917 + $0x40] sm:$0xff] %vm1660, %v1472
  %1927 = vst.msk [vmem:[%s1917 + $0x48] sm:$0xff] %vm1660, %v1473
  %1928 = vst.msk [vmem:[%s1917 + $0x50] sm:$0xff] %vm1660, %v1474
  %1929 = vst.msk [vmem:[%s1917 + $0x58] sm:$0xff] %vm1660, %v1475
  %1930 = vst.msk [vmem:[%s1917 + $0x60] sm:$0xff] %vm1660, %v1476
  %1931 = vst.msk [vmem:[%s1917 + $0x68] sm:$0xff] %vm1660, %v1477
  %1932 = vst.msk [vmem:[%s1917 + $0x80] sm:$0xff] %vm1660, %v1478
  %1933 = vst.msk [vmem:[%s1917 + $0x88] sm:$0xff] %vm1660, %v1479
  %1934 = vst.msk [vmem:[%s1917 + $0x90] sm:$0xff] %vm1660, %v1480
  %1935 = vst.msk [vmem:[%s1917 + $0x98] sm:$0xff] %vm1660, %v1481
  %1936 = vst.msk [vmem:[%s1917 + $0xa0] sm:$0xff] %vm1660, %v1482
  %1937 = vst.msk [vmem:[%s1917 + $0xa8] sm:$0xff] %vm1660, %v1483
  %1938 = vst.msk [vmem:[%s1917 + $0xb0] sm:$0xff] %vm1660, %v1484
  %1939 = vst.msk [vmem:[%s1917 + $0xb8] sm:$0xff] %vm1660, %v1485
  %1940 = vst.msk [vmem:[%s1917 + $0xc0] sm:$0xff] %vm1660, %v1486
  %1941 = vst.msk [vmem:[%s1917 + $0xc8] sm:$0xff] %vm1660, %v1487
  %1942 = vst.msk [vmem:[%s1917 + $0xd0] sm:$0xff] %vm1660, %v1488
  %1943 = vst.msk [vmem:[%s1917 + $0xd8] sm:$0xff] %vm1660, %v1489
  %1944 = vst.msk [vmem:[%s1917 + $0xe0] sm:$0xff] %vm1660, %v1490
  %1945 = vst.msk [vmem:[%s1917 + $0xe8] sm:$0xff] %vm1660, %v1491
  %1946 = vst.msk [vmem:[%s1917 + $0x100] sm:$0xff] %vm1660, %v1492
  %1947 = vst.msk [vmem:[%s1917 + $0x108] sm:$0xff] %vm1660, %v1493
  %1948 = vst.msk [vmem:[%s1917 + $0x110] sm:$0xff] %vm1660, %v1494
  %1949 = vst.msk [vmem:[%s1917 + $0x118] sm:$0xff] %vm1660, %v1495
  %1950 = vst.msk [vmem:[%s1917 + $0x120] sm:$0xff] %vm1660, %v1496
  %1951 = vst.msk [vmem:[%s1917 + $0x128] sm:$0xff] %vm1660, %v1497
  %1952 = vst.msk [vmem:[%s1917 + $0x130] sm:$0xff] %vm1660, %v1498
  %1953 = vst.msk [vmem:[%s1917 + $0x138] sm:$0xff] %vm1660, %v1499
  %1954 = vst.msk [vmem:[%s1917 + $0x140] sm:$0xff] %vm1660, %v1500
  %1955 = vst.msk [vmem:[%s1917 + $0x148] sm:$0xff] %vm1660, %v1501
  %1956 = vst.msk [vmem:[%s1917 + $0x150] sm:$0xff] %vm1660, %v1502
  %1957 = vst.msk [vmem:[%s1917 + $0x158] sm:$0xff] %vm1660, %v1503
  %1958 = vst.msk [vmem:[%s1917 + $0x160] sm:$0xff] %vm1660, %v1504
  %1959 = vst.msk [vmem:[%s1917 + $0x168] sm:$0xff] %vm1660, %v1505
  %1960 = vst.msk [vmem:[%s1917 + $0x180] sm:$0xff] %vm1660, %v1506
  %1961 = vst.msk [vmem:[%s1917 + $0x188] sm:$0xff] %vm1660, %v1507
  %1962 = vst.msk [vmem:[%s1917 + $0x190] sm:$0xff] %vm1660, %v1508
  %1963 = vst.msk [vmem:[%s1917 + $0x198] sm:$0xff] %vm1660, %v1509
  %1964 = vst.msk [vmem:[%s1917 + $0x1a0] sm:$0xff] %vm1660, %v1510
  %1965 = vst.msk [vmem:[%s1917 + $0x1a8] sm:$0xff] %vm1660, %v1511
  %1966 = vst.msk [vmem:[%s1917 + $0x1b0] sm:$0xff] %vm1660, %v1512
  %1967 = vst.msk [vmem:[%s1917 + $0x1b8] sm:$0xff] %vm1660, %v1513
  %1968 = vst.msk [vmem:[%s1917 + $0x1c0] sm:$0xff] %vm1660, %v1514
  %1969 = vst.msk [vmem:[%s1917 + $0x1c8] sm:$0xff] %vm1660, %v1515
  %1970 = vst.msk [vmem:[%s1917 + $0x1d0] sm:$0xff] %vm1660, %v1516
  %1971 = vst.msk [vmem:[%s1917 + $0x1d8] sm:$0xff] %vm1660, %v1517
  %1972 = vst.msk [vmem:[%s1917 + $0x1e0] sm:$0xff] %vm1660, %v1518
  %1973 = vst.msk [vmem:[%s1917 + $0x1e8] sm:$0xff] %vm1660, %v1519
  %1974 = vst.msk [vmem:[%s1917 + $0x200] sm:$0xff] %vm1660, %v1520
  %1975 = vst.msk [vmem:[%s1917 + $0x208] sm:$0xff] %vm1660, %v1521
  %1976 = vst.msk [vmem:[%s1917 + $0x210] sm:$0xff] %vm1660, %v1522
  %1977 = vst.msk [vmem:[%s1917 + $0x218] sm:$0xff] %vm1660, %v1523
  %1978 = vst.msk [vmem:[%s1917 + $0x220] sm:$0xff] %vm1660, %v1524
  %1979 = vst.msk [vmem:[%s1917 + $0x228] sm:$0xff] %vm1660, %v1525
  %1980 = vst.msk [vmem:[%s1917 + $0x230] sm:$0xff] %vm1660, %v1526
  %1981 = vst.msk [vmem:[%s1917 + $0x238] sm:$0xff] %vm1660, %v1527
  %1982 = vst.msk [vmem:[%s1917 + $0x240] sm:$0xff] %vm1660, %v1528
  %1983 = vst.msk [vmem:[%s1917 + $0x248] sm:$0xff] %vm1660, %v1529
  %1984 = vst.msk [vmem:[%s1917 + $0x250] sm:$0xff] %vm1660, %v1530
  %1985 = vst.msk [vmem:[%s1917 + $0x258] sm:$0xff] %vm1660, %v1531
  %1986 = vst.msk [vmem:[%s1917 + $0x260] sm:$0xff] %vm1660, %v1532
  %1987 = vst.msk [vmem:[%s1917 + $0x268] sm:$0xff] %vm1660, %v1533
  %1988 = vst.msk [vmem:[%s1917 + $0x280] sm:$0xff] %vm1660, %v1534
  %1989 = vst.msk [vmem:[%s1917 + $0x288] sm:$0xff] %vm1660, %v1535
  %1990 = vst.msk [vmem:[%s1917 + $0x290] sm:$0xff] %vm1660, %v1536
  %1991 = vst.msk [vmem:[%s1917 + $0x298] sm:$0xff] %vm1660, %v1537
  %1992 = vst.msk [vmem:[%s1917 + $0x2a0] sm:$0xff] %vm1660, %v1538
  %1993 = vst.msk [vmem:[%s1917 + $0x2a8] sm:$0xff] %vm1660, %v1539
  %1994 = vst.msk [vmem:[%s1917 + $0x2b0] sm:$0xff] %vm1660, %v1540
  %1995 = vst.msk [vmem:[%s1917 + $0x2b8] sm:$0xff] %vm1660, %v1541
  %1996 = vst.msk [vmem:[%s1917 + $0x2c0] sm:$0xff] %vm1660, %v1542
  %1997 = vst.msk [vmem:[%s1917 + $0x2c8] sm:$0xff] %vm1660, %v1543
  %1998 = vst.msk [vmem:[%s1917 + $0x2d0] sm:$0xff] %vm1660, %v1544
  %1999 = vst.msk [vmem:[%s1917 + $0x2d8] sm:$0xff] %vm1660, %v1545
  %2000 = vst.msk [vmem:[%s1917 + $0x2e0] sm:$0xff] %vm1660, %v1546
  %2001 = vst.msk [vmem:[%s1917 + $0x2e8] sm:$0xff] %vm1660, %v1547
  %2002 = vst.msk [vmem:[%s1917 + $0x300] sm:$0xff] %vm1660, %v1548
  %2003 = vst.msk [vmem:[%s1917 + $0x308] sm:$0xff] %vm1660, %v1549
  %2004 = vst.msk [vmem:[%s1917 + $0x310] sm:$0xff] %vm1660, %v1550
  %2005 = vst.msk [vmem:[%s1917 + $0x318] sm:$0xff] %vm1660, %v1551
  %2006 = vst.msk [vmem:[%s1917 + $0x320] sm:$0xff] %vm1660, %v1552
  %2007 = vst.msk [vmem:[%s1917 + $0x328] sm:$0xff] %vm1660, %v1553
  %2008 = vst.msk [vmem:[%s1917 + $0x330] sm:$0xff] %vm1660, %v1554
  %2009 = vst.msk [vmem:[%s1917 + $0x338] sm:$0xff] %vm1660, %v1555
  %2010 = vst.msk [vmem:[%s1917 + $0x340] sm:$0xff] %vm1660, %v1556
  %2011 = vst.msk [vmem:[%s1917 + $0x348] sm:$0xff] %vm1660, %v1557
  %2012 = vst.msk [vmem:[%s1917 + $0x350] sm:$0xff] %vm1660, %v1558
  %2013 = vst.msk [vmem:[%s1917 + $0x358] sm:$0xff] %vm1660, %v1559
  %2014 = vst.msk [vmem:[%s1917 + $0x360] sm:$0xff] %vm1660, %v1560
  %2015 = vst.msk [vmem:[%s1917 + $0x368] sm:$0xff] %vm1660, %v1561
  %2016 = vst.msk [vmem:[%s1917 + $0x380] sm:$0xff] %vm1660, %v1562
  %2017 = vst.msk [vmem:[%s1917 + $0x388] sm:$0xff] %vm1660, %v1563
  %2018 = vst.msk [vmem:[%s1917 + $0x390] sm:$0xff] %vm1660, %v1564
  %2019 = vst.msk [vmem:[%s1917 + $0x398] sm:$0xff] %vm1660, %v1565
  %2020 = vst.msk [vmem:[%s1917 + $0x3a0] sm:$0xff] %vm1660, %v1566
  %2021 = vst.msk [vmem:[%s1917 + $0x3a8] sm:$0xff] %vm1660, %v1567
  %2022 = vst.msk [vmem:[%s1917 + $0x3b0] sm:$0xff] %vm1660, %v1568
  %2023 = vst.msk [vmem:[%s1917 + $0x3b8] sm:$0xff] %vm1660, %v1569
  %2024 = vst.msk [vmem:[%s1917 + $0x3c0] sm:$0xff] %vm1660, %v1570
  %2025 = vst.msk [vmem:[%s1917 + $0x3c8] sm:$0xff] %vm1660, %v1571
  %2026 = vst.msk [vmem:[%s1917 + $0x3d0] sm:$0xff] %vm1660, %v1572
  %2027 = vst.msk [vmem:[%s1917 + $0x3d8] sm:$0xff] %vm1660, %v1573
  %2028 = vst.msk [vmem:[%s1917 + $0x3e0] sm:$0xff] %vm1660, %v1574
  %2029 = vst.msk [vmem:[%s1917 + $0x3e8] sm:$0xff] %vm1660, %v1575
  %2030 = vst.msk [vmem:[%s1917 + $0x400] sm:$0xff] %vm1660, %v1576
  %2031 = vst.msk [vmem:[%s1917 + $0x408] sm:$0xff] %vm1660, %v1577
  %2032 = vst.msk [vmem:[%s1917 + $0x410] sm:$0xff] %vm1660, %v1578
  %2033 = vst.msk [vmem:[%s1917 + $0x418] sm:$0xff] %vm1660, %v1579
  %2034 = vst.msk [vmem:[%s1917 + $0x420] sm:$0xff] %vm1660, %v1580
  %2035 = vst.msk [vmem:[%s1917 + $0x428] sm:$0xff] %vm1660, %v1581
  %2036 = vst.msk [vmem:[%s1917 + $0x430] sm:$0xff] %vm1660, %v1582
  %2037 = vst.msk [vmem:[%s1917 + $0x438] sm:$0xff] %vm1660, %v1583
  %2038 = vst.msk [vmem:[%s1917 + $0x440] sm:$0xff] %vm1660, %v1584
  %2039 = vst.msk [vmem:[%s1917 + $0x448] sm:$0xff] %vm1660, %v1585
  %2040 = vst.msk [vmem:[%s1917 + $0x450] sm:$0xff] %vm1660, %v1586
  %2041 = vst.msk [vmem:[%s1917 + $0x458] sm:$0xff] %vm1660, %v1587
  %2042 = vst.msk [vmem:[%s1917 + $0x460] sm:$0xff] %vm1660, %v1588
  %2043 = vst.msk [vmem:[%s1917 + $0x468] sm:$0xff] %vm1660, %v1589
  %2044 = vst.msk [vmem:[%s1917 + $0x480] sm:$0xff] %vm1660, %v1590
  %2045 = vst.msk [vmem:[%s1917 + $0x488] sm:$0xff] %vm1660, %v1591
  %2046 = vst.msk [vmem:[%s1917 + $0x490] sm:$0xff] %vm1660, %v1592
  %2047 = vst.msk [vmem:[%s1917 + $0x498] sm:$0xff] %vm1660, %v1593
  %2048 = vst.msk [vmem:[%s1917 + $0x4a0] sm:$0xff] %vm1660, %v1594
  %2049 = vst.msk [vmem:[%s1917 + $0x4a8] sm:$0xff] %vm1660, %v1595
  %2050 = vst.msk [vmem:[%s1917 + $0x4b0] sm:$0xff] %vm1660, %v1596
  %2051 = vst.msk [vmem:[%s1917 + $0x4b8] sm:$0xff] %vm1660, %v1597
  %2052 = vst.msk [vmem:[%s1917 + $0x4c0] sm:$0xff] %vm1660, %v1598
  %2053 = vst.msk [vmem:[%s1917 + $0x4c8] sm:$0xff] %vm1660, %v1599
  %2054 = vst.msk [vmem:[%s1917 + $0x4d0] sm:$0xff] %vm1660, %v1600
  %2055 = vst.msk [vmem:[%s1917 + $0x4d8] sm:$0xff] %vm1660, %v1601
  %2056 = vst.msk [vmem:[%s1917 + $0x4e0] sm:$0xff] %vm1660, %v1602
  %2057 = vst.msk [vmem:[%s1917 + $0x4e8] sm:$0xff] %vm1660, %v1603
  %2058 = vst.msk [vmem:[%s1917 + $0x500] sm:$0xff] %vm1660, %v1604
  %2059 = vst.msk [vmem:[%s1917 + $0x508] sm:$0xff] %vm1660, %v1605
  %2060 = vst.msk [vmem:[%s1917 + $0x510] sm:$0xff] %vm1660, %v1606
  %2061 = vst.msk [vmem:[%s1917 + $0x518] sm:$0xff] %vm1660, %v1607
  %2062 = vst.msk [vmem:[%s1917 + $0x520] sm:$0xff] %vm1660, %v1608
  %2063 = vst.msk [vmem:[%s1917 + $0x528] sm:$0xff] %vm1660, %v1609
  %2064 = vst.msk [vmem:[%s1917 + $0x530] sm:$0xff] %vm1660, %v1610
  %2065 = vst.msk [vmem:[%s1917 + $0x538] sm:$0xff] %vm1660, %v1611
  %2066 = vst.msk [vmem:[%s1917 + $0x540] sm:$0xff] %vm1660, %v1612
  %2067 = vst.msk [vmem:[%s1917 + $0x548] sm:$0xff] %vm1660, %v1613
  %2068 = vst.msk [vmem:[%s1917 + $0x550] sm:$0xff] %vm1660, %v1614
  %2069 = vst.msk [vmem:[%s1917 + $0x558] sm:$0xff] %vm1660, %v1615
  %2070 = vst.msk [vmem:[%s1917 + $0x560] sm:$0xff] %vm1660, %v1616
  %2071 = vst.msk [vmem:[%s1917 + $0x568] sm:$0xff] %vm1660, %v1617
  %2072 = vst.msk [vmem:[%s1917 + $0x580] sm:$0xff] %vm1660, %v1618
  %2073 = vst.msk [vmem:[%s1917 + $0x588] sm:$0xff] %vm1660, %v1619
  %2074 = vst.msk [vmem:[%s1917 + $0x590] sm:$0xff] %vm1660, %v1620
  %2075 = vst.msk [vmem:[%s1917 + $0x598] sm:$0xff] %vm1660, %v1621
  %2076 = vst.msk [vmem:[%s1917 + $0x5a0] sm:$0xff] %vm1660, %v1622
  %2077 = vst.msk [vmem:[%s1917 + $0x5a8] sm:$0xff] %vm1660, %v1623
  %2078 = vst.msk [vmem:[%s1917 + $0x5b0] sm:$0xff] %vm1660, %v1624
  %2079 = vst.msk [vmem:[%s1917 + $0x5b8] sm:$0xff] %vm1660, %v1625
  %2080 = vst.msk [vmem:[%s1917 + $0x5c0] sm:$0xff] %vm1660, %v1626
  %2081 = vst.msk [vmem:[%s1917 + $0x5c8] sm:$0xff] %vm1660, %v1627
  %2082 = vst.msk [vmem:[%s1917 + $0x5d0] sm:$0xff] %vm1660, %v1628
  %2083 = vst.msk [vmem:[%s1917 + $0x5d8] sm:$0xff] %vm1660, %v1629
  %2084 = vst.msk [vmem:[%s1917 + $0x5e0] sm:$0xff] %vm1660, %v1630
  %2085 = vst.msk [vmem:[%s1917 + $0x5e8] sm:$0xff] %vm1660, %v1631
  %2086 = vst.msk [vmem:[%s1917 + $0x600] sm:$0xff] %vm1660, %v1632
  %2087 = vst.msk [vmem:[%s1917 + $0x608] sm:$0xff] %vm1660, %v1633
  %2088 = vst.msk [vmem:[%s1917 + $0x610] sm:$0xff] %vm1660, %v1634
  %2089 = vst.msk [vmem:[%s1917 + $0x618] sm:$0xff] %vm1660, %v1635
  %2090 = vst.msk [vmem:[%s1917 + $0x620] sm:$0xff] %vm1660, %v1636
  %2091 = vst.msk [vmem:[%s1917 + $0x628] sm:$0xff] %vm1660, %v1637
  %2092 = vst.msk [vmem:[%s1917 + $0x630] sm:$0xff] %vm1660, %v1638
  %2093 = vst.msk [vmem:[%s1917 + $0x638] sm:$0xff] %vm1660, %v1639
  %2094 = vst.msk [vmem:[%s1917 + $0x640] sm:$0xff] %vm1660, %v1640
  %2095 = vst.msk [vmem:[%s1917 + $0x648] sm:$0xff] %vm1660, %v1641
  %2096 = vst.msk [vmem:[%s1917 + $0x650] sm:$0xff] %vm1660, %v1642
  %2097 = vst.msk [vmem:[%s1917 + $0x658] sm:$0xff] %vm1660, %v1643
  %2098 = vst.msk [vmem:[%s1917 + $0x660] sm:$0xff] %vm1660, %v1644
  %2099 = vst.msk [vmem:[%s1917 + $0x668] sm:$0xff] %vm1660, %v1645
  %2100 = vst.msk [vmem:[%s1917 + $0x680] sm:$0xff] %vm1660, %v1646
  %2101 = vst.msk [vmem:[%s1917 + $0x688] sm:$0xff] %vm1660, %v1647
  %2102 = vst.msk [vmem:[%s1917 + $0x690] sm:$0xff] %vm1660, %v1648
  %2103 = vst.msk [vmem:[%s1917 + $0x698] sm:$0xff] %vm1660, %v1649
  %2104 = vst.msk [vmem:[%s1917 + $0x6a0] sm:$0xff] %vm1660, %v1650
  %2105 = vst.msk [vmem:[%s1917 + $0x6a8] sm:$0xff] %vm1660, %v1651
  %2106 = vst.msk [vmem:[%s1917 + $0x6b0] sm:$0xff] %vm1660, %v1652
  %2107 = vst.msk [vmem:[%s1917 + $0x6b8] sm:$0xff] %vm1660, %v1653
  %2108 = vst.msk [vmem:[%s1917 + $0x6c0] sm:$0xff] %vm1660, %v1654
  %2109 = vst.msk [vmem:[%s1917 + $0x6c8] sm:$0xff] %vm1660, %v1655
  %2110 = vst.msk [vmem:[%s1917 + $0x6d0] sm:$0xff] %vm1660, %v1656
  %2111 = vst.msk [vmem:[%s1917 + $0x6d8] sm:$0xff] %vm1660, %v1657
  %2112 = vst.msk [vmem:[%s1917 + $0x6e0] sm:$0xff] %vm1660, %v1658
  %2113 = vst.msk [vmem:[%s1917 + $0x6e8] sm:$0xff] %vm1660, %v1659
  %v2114 = vld [vmem:[#allocation2] sm:$0xff]
  %v2115 = vld [vmem:[#allocation2 + $0x8] sm:$0xff]
  %v2116 = vld [vmem:[#allocation2 + $0x10] sm:$0xff]
  %v2117 = vld [vmem:[#allocation2 + $0x18] sm:$0xff]
  %v2118 = vld [vmem:[#allocation2 + $0x20] sm:$0xff]
  %v2119 = vld [vmem:[#allocation2 + $0x28] sm:$0xff]
  %v2120 = vld [vmem:[#allocation2 + $0x30] sm:$0xff]
  %v2121 = vld [vmem:[#allocation2 + $0x38] sm:$0xff]
  %v2122 = vld [vmem:[#allocation2 + $0x40] sm:$0xff]
  %v2123 = vld [vmem:[#allocation2 + $0x48] sm:$0xff]
  %v2124 = vld [vmem:[#allocation2 + $0x50] sm:$0xff]
  %v2125 = vld [vmem:[#allocation2 + $0x58] sm:$0xff]
  %v2126 = vld [vmem:[#allocation2 + $0x60] sm:$0xff]
  %v2127 = vld [vmem:[#allocation2 + $0x68] sm:$0xff]
  %v2128 = vld [vmem:[#allocation2 + $0x70] sm:$0xff]
  %v2129 = vld [vmem:[#allocation2 + $0x80] sm:$0xff]
  %v2130 = vld [vmem:[#allocation2 + $0x88] sm:$0xff]
  %v2131 = vld [vmem:[#allocation2 + $0x90] sm:$0xff]
  %v2132 = vld [vmem:[#allocation2 + $0x98] sm:$0xff]
  %v2133 = vld [vmem:[#allocation2 + $0xa0] sm:$0xff]
  %v2134 = vld [vmem:[#allocation2 + $0xa8] sm:$0xff]
  %v2135 = vld [vmem:[#allocation2 + $0xb0] sm:$0xff]
  %v2136 = vld [vmem:[#allocation2 + $0xb8] sm:$0xff]
  %v2137 = vld [vmem:[#allocation2 + $0xc0] sm:$0xff]
  %v2138 = vld [vmem:[#allocation2 + $0xc8] sm:$0xff]
  %v2139 = vld [vmem:[#allocation2 + $0xd0] sm:$0xff]
  %v2140 = vld [vmem:[#allocation2 + $0xd8] sm:$0xff]
  %v2141 = vld [vmem:[#allocation2 + $0xe0] sm:$0xff]
  %v2142 = vld [vmem:[#allocation2 + $0xe8] sm:$0xff]
  %v2143 = vld [vmem:[#allocation2 + $0xf0] sm:$0xff]
  %v2144 = vld [vmem:[#allocation2 + $0x100] sm:$0xff]
  %v2145 = vld [vmem:[#allocation2 + $0x108] sm:$0xff]
  %v2146 = vld [vmem:[#allocation2 + $0x110] sm:$0xff]
  %v2147 = vld [vmem:[#allocation2 + $0x118] sm:$0xff]
  %v2148 = vld [vmem:[#allocation2 + $0x120] sm:$0xff]
  %v2149 = vld [vmem:[#allocation2 + $0x128] sm:$0xff]
  %v2150 = vld [vmem:[#allocation2 + $0x130] sm:$0xff]
  %v2151 = vld [vmem:[#allocation2 + $0x138] sm:$0xff]
  %v2152 = vld [vmem:[#allocation2 + $0x140] sm:$0xff]
  %v2153 = vld [vmem:[#allocation2 + $0x148] sm:$0xff]
  %v2154 = vld [vmem:[#allocation2 + $0x150] sm:$0xff]
  %v2155 = vld [vmem:[#allocation2 + $0x158] sm:$0xff]
  %v2156 = vld [vmem:[#allocation2 + $0x160] sm:$0xff]
  %v2157 = vld [vmem:[#allocation2 + $0x168] sm:$0xff]
  %v2158 = vld [vmem:[#allocation2 + $0x170] sm:$0xff]
  %v2159 = vld [vmem:[#allocation2 + $0x180] sm:$0xff]
  %v2160 = vld [vmem:[#allocation2 + $0x188] sm:$0xff]
  %v2161 = vld [vmem:[#allocation2 + $0x190] sm:$0xff]
  %v2162 = vld [vmem:[#allocation2 + $0x198] sm:$0xff]
  %v2163 = vld [vmem:[#allocation2 + $0x1a0] sm:$0xff]
  %v2164 = vld [vmem:[#allocation2 + $0x1a8] sm:$0xff]
  %v2165 = vld [vmem:[#allocation2 + $0x1b0] sm:$0xff]
  %v2166 = vld [vmem:[#allocation2 + $0x1b8] sm:$0xff]
  %v2167 = vld [vmem:[#allocation2 + $0x1c0] sm:$0xff]
  %v2168 = vld [vmem:[#allocation2 + $0x1c8] sm:$0xff]
  %v2169 = vld [vmem:[#allocation2 + $0x1d0] sm:$0xff]
  %v2170 = vld [vmem:[#allocation2 + $0x1d8] sm:$0xff]
  %v2171 = vld [vmem:[#allocation2 + $0x1e0] sm:$0xff]
  %v2172 = vld [vmem:[#allocation2 + $0x1e8] sm:$0xff]
  %v2173 = vld [vmem:[#allocation2 + $0x1f0] sm:$0xff]
  %v2174 = vld [vmem:[#allocation2 + $0x200] sm:$0xff]
  %v2175 = vld [vmem:[#allocation2 + $0x208] sm:$0xff]
  %v2176 = vld [vmem:[#allocation2 + $0x210] sm:$0xff]
  %v2177 = vld [vmem:[#allocation2 + $0x218] sm:$0xff]
  %v2178 = vld [vmem:[#allocation2 + $0x220] sm:$0xff]
  %v2179 = vld [vmem:[#allocation2 + $0x228] sm:$0xff]
  %v2180 = vld [vmem:[#allocation2 + $0x230] sm:$0xff]
  %v2181 = vld [vmem:[#allocation2 + $0x238] sm:$0xff]
  %v2182 = vld [vmem:[#allocation2 + $0x240] sm:$0xff]
  %v2183 = vld [vmem:[#allocation2 + $0x248] sm:$0xff]
  %v2184 = vld [vmem:[#allocation2 + $0x250] sm:$0xff]
  %v2185 = vld [vmem:[#allocation2 + $0x258] sm:$0xff]
  %v2186 = vld [vmem:[#allocation2 + $0x260] sm:$0xff]
  %v2187 = vld [vmem:[#allocation2 + $0x268] sm:$0xff]
  %v2188 = vld [vmem:[#allocation2 + $0x270] sm:$0xff]
  %v2189 = vld [vmem:[#allocation2 + $0x280] sm:$0xff]
  %v2190 = vld [vmem:[#allocation2 + $0x288] sm:$0xff]
  %v2191 = vld [vmem:[#allocation2 + $0x290] sm:$0xff]
  %v2192 = vld [vmem:[#allocation2 + $0x298] sm:$0xff]
  %v2193 = vld [vmem:[#allocation2 + $0x2a0] sm:$0xff]
  %v2194 = vld [vmem:[#allocation2 + $0x2a8] sm:$0xff]
  %v2195 = vld [vmem:[#allocation2 + $0x2b0] sm:$0xff]
  %v2196 = vld [vmem:[#allocation2 + $0x2b8] sm:$0xff]
  %v2197 = vld [vmem:[#allocation2 + $0x2c0] sm:$0xff]
  %v2198 = vld [vmem:[#allocation2 + $0x2c8] sm:$0xff]
  %v2199 = vld [vmem:[#allocation2 + $0x2d0] sm:$0xff]
  %v2200 = vld [vmem:[#allocation2 + $0x2d8] sm:$0xff]
  %v2201 = vld [vmem:[#allocation2 + $0x2e0] sm:$0xff]
  %v2202 = vld [vmem:[#allocation2 + $0x2e8] sm:$0xff]
  %v2203 = vld [vmem:[#allocation2 + $0x2f0] sm:$0xff]
  %v2204 = vld [vmem:[#allocation2 + $0x300] sm:$0xff]
  %v2205 = vld [vmem:[#allocation2 + $0x308] sm:$0xff]
  %v2206 = vld [vmem:[#allocation2 + $0x310] sm:$0xff]
  %v2207 = vld [vmem:[#allocation2 + $0x318] sm:$0xff]
  %v2208 = vld [vmem:[#allocation2 + $0x320] sm:$0xff]
  %v2209 = vld [vmem:[#allocation2 + $0x328] sm:$0xff]
  %v2210 = vld [vmem:[#allocation2 + $0x330] sm:$0xff]
  %v2211 = vld [vmem:[#allocation2 + $0x338] sm:$0xff]
  %v2212 = vld [vmem:[#allocation2 + $0x340] sm:$0xff]
  %v2213 = vld [vmem:[#allocation2 + $0x348] sm:$0xff]
  %v2214 = vld [vmem:[#allocation2 + $0x350] sm:$0xff]
  %v2215 = vld [vmem:[#allocation2 + $0x358] sm:$0xff]
  %v2216 = vld [vmem:[#allocation2 + $0x360] sm:$0xff]
  %v2217 = vld [vmem:[#allocation2 + $0x368] sm:$0xff]
  %v2218 = vld [vmem:[#allocation2 + $0x370] sm:$0xff]
  %v2219 = vld [vmem:[#allocation2 + $0x380] sm:$0xff]
  %v2220 = vld [vmem:[#allocation2 + $0x388] sm:$0xff]
  %v2221 = vld [vmem:[#allocation2 + $0x390] sm:$0xff]
  %v2222 = vld [vmem:[#allocation2 + $0x398] sm:$0xff]
  %v2223 = vld [vmem:[#allocation2 + $0x3a0] sm:$0xff]
  %v2224 = vld [vmem:[#allocation2 + $0x3a8] sm:$0xff]
  %v2225 = vld [vmem:[#allocation2 + $0x3b0] sm:$0xff]
  %v2226 = vld [vmem:[#allocation2 + $0x3b8] sm:$0xff]
  %v2227 = vld [vmem:[#allocation2 + $0x3c0] sm:$0xff]
  %v2228 = vld [vmem:[#allocation2 + $0x3c8] sm:$0xff]
  %v2229 = vld [vmem:[#allocation2 + $0x3d0] sm:$0xff]
  %v2230 = vld [vmem:[#allocation2 + $0x3d8] sm:$0xff]
  %v2231 = vld [vmem:[#allocation2 + $0x3e0] sm:$0xff]
  %v2232 = vld [vmem:[#allocation2 + $0x3e8] sm:$0xff]
  %v2233 = vld [vmem:[#allocation2 + $0x3f0] sm:$0xff]
  %v2234 = vld [vmem:[#allocation2 + $0x400] sm:$0xff]
  %v2235 = vld [vmem:[#allocation2 + $0x408] sm:$0xff]
  %v2236 = vld [vmem:[#allocation2 + $0x410] sm:$0xff]
  %v2237 = vld [vmem:[#allocation2 + $0x418] sm:$0xff]
  %v2238 = vld [vmem:[#allocation2 + $0x420] sm:$0xff]
  %v2239 = vld [vmem:[#allocation2 + $0x428] sm:$0xff]
  %v2240 = vld [vmem:[#allocation2 + $0x430] sm:$0xff]
  %v2241 = vld [vmem:[#allocation2 + $0x438] sm:$0xff]
  %v2242 = vld [vmem:[#allocation2 + $0x440] sm:$0xff]
  %v2243 = vld [vmem:[#allocation2 + $0x448] sm:$0xff]
  %v2244 = vld [vmem:[#allocation2 + $0x450] sm:$0xff]
  %v2245 = vld [vmem:[#allocation2 + $0x458] sm:$0xff]
  %v2246 = vld [vmem:[#allocation2 + $0x460] sm:$0xff]
  %v2247 = vld [vmem:[#allocation2 + $0x468] sm:$0xff]
  %v2248 = vld [vmem:[#allocation2 + $0x470] sm:$0xff]
  %v2249 = vld [vmem:[#allocation2 + $0x480] sm:$0xff]
  %v2250 = vld [vmem:[#allocation2 + $0x488] sm:$0xff]
  %v2251 = vld [vmem:[#allocation2 + $0x490] sm:$0xff]
  %v2252 = vld [vmem:[#allocation2 + $0x498] sm:$0xff]
  %v2253 = vld [vmem:[#allocation2 + $0x4a0] sm:$0xff]
  %v2254 = vld [vmem:[#allocation2 + $0x4a8] sm:$0xff]
  %v2255 = vld [vmem:[#allocation2 + $0x4b0] sm:$0xff]
  %v2256 = vld [vmem:[#allocation2 + $0x4b8] sm:$0xff]
  %v2257 = vld [vmem:[#allocation2 + $0x4c0] sm:$0xff]
  %v2258 = vld [vmem:[#allocation2 + $0x4c8] sm:$0xff]
  %v2259 = vld [vmem:[#allocation2 + $0x4d0] sm:$0xff]
  %v2260 = vld [vmem:[#allocation2 + $0x4d8] sm:$0xff]
  %v2261 = vld [vmem:[#allocation2 + $0x4e0] sm:$0xff]
  %v2262 = vld [vmem:[#allocation2 + $0x4e8] sm:$0xff]
  %v2263 = vld [vmem:[#allocation2 + $0x4f0] sm:$0xff]
  %v2264 = vld [vmem:[#allocation2 + $0x500] sm:$0xff]
  %v2265 = vld [vmem:[#allocation2 + $0x508] sm:$0xff]
  %v2266 = vld [vmem:[#allocation2 + $0x510] sm:$0xff]
  %v2267 = vld [vmem:[#allocation2 + $0x518] sm:$0xff]
  %v2268 = vld [vmem:[#allocation2 + $0x520] sm:$0xff]
  %v2269 = vld [vmem:[#allocation2 + $0x528] sm:$0xff]
  %v2270 = vld [vmem:[#allocation2 + $0x530] sm:$0xff]
  %v2271 = vld [vmem:[#allocation2 + $0x538] sm:$0xff]
  %v2272 = vld [vmem:[#allocation2 + $0x540] sm:$0xff]
  %v2273 = vld [vmem:[#allocation2 + $0x548] sm:$0xff]
  %v2274 = vld [vmem:[#allocation2 + $0x550] sm:$0xff]
  %v2275 = vld [vmem:[#allocation2 + $0x558] sm:$0xff]
  %v2276 = vld [vmem:[#allocation2 + $0x560] sm:$0xff]
  %v2277 = vld [vmem:[#allocation2 + $0x568] sm:$0xff]
  %v2278 = vld [vmem:[#allocation2 + $0x570] sm:$0xff]
  %v2279 = vld [vmem:[#allocation2 + $0x580] sm:$0xff]
  %v2280 = vld [vmem:[#allocation2 + $0x588] sm:$0xff]
  %v2281 = vld [vmem:[#allocation2 + $0x590] sm:$0xff]
  %v2282 = vld [vmem:[#allocation2 + $0x598] sm:$0xff]
  %v2283 = vld [vmem:[#allocation2 + $0x5a0] sm:$0xff]
  %v2284 = vld [vmem:[#allocation2 + $0x5a8] sm:$0xff]
  %v2285 = vld [vmem:[#allocation2 + $0x5b0] sm:$0xff]
  %v2286 = vld [vmem:[#allocation2 + $0x5b8] sm:$0xff]
  %v2287 = vld [vmem:[#allocation2 + $0x5c0] sm:$0xff]
  %v2288 = vld [vmem:[#allocation2 + $0x5c8] sm:$0xff]
  %v2289 = vld [vmem:[#allocation2 + $0x5d0] sm:$0xff]
  %v2290 = vld [vmem:[#allocation2 + $0x5d8] sm:$0xff]
  %v2291 = vld [vmem:[#allocation2 + $0x5e0] sm:$0xff]
  %v2292 = vld [vmem:[#allocation2 + $0x5e8] sm:$0xff]
  %v2293 = vld [vmem:[#allocation2 + $0x5f0] sm:$0xff]
  %v2294 = vld [vmem:[#allocation2 + $0x600] sm:$0xff]
  %v2295 = vld [vmem:[#allocation2 + $0x608] sm:$0xff]
  %v2296 = vld [vmem:[#allocation2 + $0x610] sm:$0xff]
  %v2297 = vld [vmem:[#allocation2 + $0x618] sm:$0xff]
  %v2298 = vld [vmem:[#allocation2 + $0x620] sm:$0xff]
  %v2299 = vld [vmem:[#allocation2 + $0x628] sm:$0xff]
  %v2300 = vld [vmem:[#allocation2 + $0x630] sm:$0xff]
  %v2301 = vld [vmem:[#allocation2 + $0x638] sm:$0xff]
  %v2302 = vld [vmem:[#allocation2 + $0x640] sm:$0xff]
  %v2303 = vld [vmem:[#allocation2 + $0x648] sm:$0xff]
  %v2304 = vld [vmem:[#allocation2 + $0x650] sm:$0xff]
  %v2305 = vld [vmem:[#allocation2 + $0x658] sm:$0xff]
  %v2306 = vld [vmem:[#allocation2 + $0x660] sm:$0xff]
  %v2307 = vld [vmem:[#allocation2 + $0x668] sm:$0xff]
  %v2308 = vld [vmem:[#allocation2 + $0x670] sm:$0xff]
  %v2309 = vld [vmem:[#allocation2 + $0x680] sm:$0xff]
  %v2310 = vld [vmem:[#allocation2 + $0x688] sm:$0xff]
  %v2311 = vld [vmem:[#allocation2 + $0x690] sm:$0xff]
  %v2312 = vld [vmem:[#allocation2 + $0x698] sm:$0xff]
  %v2313 = vld [vmem:[#allocation2 + $0x6a0] sm:$0xff]
  %v2314 = vld [vmem:[#allocation2 + $0x6a8] sm:$0xff]
  %v2315 = vld [vmem:[#allocation2 + $0x6b0] sm:$0xff]
  %v2316 = vld [vmem:[#allocation2 + $0x6b8] sm:$0xff]
  %v2317 = vld [vmem:[#allocation2 + $0x6c0] sm:$0xff]
  %v2318 = vld [vmem:[#allocation2 + $0x6c8] sm:$0xff]
  %v2319 = vld [vmem:[#allocation2 + $0x6d0] sm:$0xff]
  %v2320 = vld [vmem:[#allocation2 + $0x6d8] sm:$0xff]
  %v2321 = vld [vmem:[#allocation2 + $0x6e0] sm:$0xff]
  %v2322 = vld [vmem:[#allocation2 + $0x6e8] sm:$0xff]
  %v2323 = vld [vmem:[#allocation2 + $0x6f0] sm:$0xff]
  %v2324 = vld [vmem:[#allocation2 + $0x700] sm:$0xff]
  %v2325 = vld [vmem:[#allocation2 + $0x708] sm:$0xff]
  %v2326 = vld [vmem:[#allocation2 + $0x710] sm:$0xff]
  %v2327 = vld [vmem:[#allocation2 + $0x718] sm:$0xff]
  %v2328 = vld [vmem:[#allocation2 + $0x720] sm:$0xff]
  %v2329 = vld [vmem:[#allocation2 + $0x728] sm:$0xff]
  %v2330 = vld [vmem:[#allocation2 + $0x730] sm:$0xff]
  %v2331 = vld [vmem:[#allocation2 + $0x738] sm:$0xff]
  %v2332 = vld [vmem:[#allocation2 + $0x740] sm:$0xff]
  %v2333 = vld [vmem:[#allocation2 + $0x748] sm:$0xff]
  %v2334 = vld [vmem:[#allocation2 + $0x750] sm:$0xff]
  %v2335 = vld [vmem:[#allocation2 + $0x758] sm:$0xff]
  %v2336 = vld [vmem:[#allocation2 + $0x760] sm:$0xff]
  %v2337 = vld [vmem:[#allocation2 + $0x768] sm:$0xff]
  %v2338 = vld [vmem:[#allocation2 + $0x770] sm:$0xff]
  %v2340 = vsel %vm1660, %v2115, 0
  %v2343 = vsel %vm1660, %v2117, 0
  %v2346 = vsel %vm1660, %v2119, 0
  %v2349 = vsel %vm1660, %v2121, 0
  %v2352 = vsel %vm1660, %v2123, 0
  %v2355 = vsel %vm1660, %v2125, 0
  %v2358 = vsel %vm1660, %v2127, 0
  %v2361 = vsel %vm1660, %v2145, 0
  %v2364 = vsel %vm1660, %v2147, 0
  %v2367 = vsel %vm1660, %v2149, 0
  %v2370 = vsel %vm1660, %v2151, 0
  %v2373 = vsel %vm1660, %v2153, 0
  %v2376 = vsel %vm1660, %v2155, 0
  %v2379 = vsel %vm1660, %v2157, 0
  %v2382 = vsel %vm1660, %v2175, 0
  %v2385 = vsel %vm1660, %v2177, 0
  %v2388 = vsel %vm1660, %v2179, 0
  %v2391 = vsel %vm1660, %v2181, 0
  %v2394 = vsel %vm1660, %v2183, 0
  %v2397 = vsel %vm1660, %v2185, 0
  %v2400 = vsel %vm1660, %v2187, 0
  %v2403 = vsel %vm1660, %v2205, 0
  %v2406 = vsel %vm1660, %v2207, 0
  %v2409 = vsel %vm1660, %v2209, 0
  %v2412 = vsel %vm1660, %v2211, 0
  %v2415 = vsel %vm1660, %v2213, 0
  %v2418 = vsel %vm1660, %v2215, 0
  %v2421 = vsel %vm1660, %v2217, 0
  %v2424 = vsel %vm1660, %v2235, 0
  %v2427 = vsel %vm1660, %v2237, 0
  %v2430 = vsel %vm1660, %v2239, 0
  %v2433 = vsel %vm1660, %v2241, 0
  %v2436 = vsel %vm1660, %v2243, 0
  %v2439 = vsel %vm1660, %v2245, 0
  %v2442 = vsel %vm1660, %v2247, 0
  %v2445 = vsel %vm1660, %v2265, 0
  %v2448 = vsel %vm1660, %v2267, 0
  %v2451 = vsel %vm1660, %v2269, 0
  %v2454 = vsel %vm1660, %v2271, 0
  %v2457 = vsel %vm1660, %v2273, 0
  %v2460 = vsel %vm1660, %v2275, 0
  %v2463 = vsel %vm1660, %v2277, 0
  %v2466 = vsel %vm1660, %v2295, 0
  %v2469 = vsel %vm1660, %v2297, 0
  %v2472 = vsel %vm1660, %v2299, 0
  %v2475 = vsel %vm1660, %v2301, 0
  %v2478 = vsel %vm1660, %v2303, 0
  %v2481 = vsel %vm1660, %v2305, 0
  %v2484 = vsel %vm1660, %v2307, 0
  %2486 = vmatpush.msra.mxu0 0.0
  %2487 = vmatpush.msra.mxu0 0.0
  %2488 = vmatpush.msra.mxu0 0.0
  %2489 = vmatpush.msra.mxu0 0.0
  %2490 = vmatpush.msra.mxu0 0.0
  %2491 = vmatpush.msra.mxu0 0.0
  %2492 = vmatpush.msra.mxu0 0.0
  %2493 = vmatpush.msra.mxu0 0.0
  %2494 = vmatpush.msra.mxu0 0.0
  %2495 = vmatpush.msra.mxu0 0.0
  %2496 = vmatpush.msra.mxu0 0.0
  %2497 = vmatpush.msra.mxu0 0.0
  %2498 = vmatpush.msra.mxu0 0.0
  %2499 = vmatpush.msra.mxu0 0.0
  %2500 = vmatpush.msra.mxu0 %v32
  %2501 = vmatpush.msra.mxu0 %v31
  %2502 = vmatmul.f32.gmra.mxu0 %v2340
  %v2503 = vpop.f32.mrf.mxu0
  %v2504 = vadd.f32 0.0, %v2503
  %2505 = vmatmul.f32.gmra.mxu0 %v2343
  %v2506 = vpop.f32.mrf.mxu0
  %v2507 = vadd.f32 0.0, %v2506
  %2508 = vmatmul.f32.gmra.mxu0 %v2346
  %v2509 = vpop.f32.mrf.mxu0
  %v2510 = vadd.f32 0.0, %v2509
  %2511 = vmatmul.f32.gmra.mxu0 %v2349
  %v2512 = vpop.f32.mrf.mxu0
  %v2513 = vadd.f32 0.0, %v2512
  %2514 = vmatmul.f32.gmra.mxu0 %v2352
  %v2515 = vpop.f32.mrf.mxu0
  %v2516 = vadd.f32 0.0, %v2515
  %2517 = vmatmul.f32.gmra.mxu0 %v2355
  %v2518 = vpop.f32.mrf.mxu0
  %v2519 = vadd.f32 0.0, %v2518
  %2520 = vmatmul.f32.gmra.mxu0 %v2358
  %v2521 = vpop.f32.mrf.mxu0
  %v2522 = vadd.f32 0.0, %v2521
  %2523 = vmatmul.f32.gmra.mxu0 %v2361
  %v2524 = vpop.f32.mrf.mxu0
  %v2525 = vadd.f32 0.0, %v2524
  %2526 = vmatmul.f32.gmra.mxu0 %v2364
  %v2527 = vpop.f32.mrf.mxu0
  %v2528 = vadd.f32 0.0, %v2527
  %2529 = vmatmul.f32.gmra.mxu0 %v2367
  %v2530 = vpop.f32.mrf.mxu0
  %v2531 = vadd.f32 0.0, %v2530
  %2532 = vmatmul.f32.gmra.mxu0 %v2370
  %v2533 = vpop.f32.mrf.mxu0
  %v2534 = vadd.f32 0.0, %v2533
  %2535 = vmatmul.f32.gmra.mxu0 %v2373
  %v2536 = vpop.f32.mrf.mxu0
  %v2537 = vadd.f32 0.0, %v2536
  %2538 = vmatmul.f32.gmra.mxu0 %v2376
  %v2539 = vpop.f32.mrf.mxu0
  %v2540 = vadd.f32 0.0, %v2539
  %2541 = vmatmul.f32.gmra.mxu0 %v2379
  %v2542 = vpop.f32.mrf.mxu0
  %v2543 = vadd.f32 0.0, %v2542
  %2544 = vmatmul.f32.gmra.mxu0 %v2382
  %v2545 = vpop.f32.mrf.mxu0
  %v2546 = vadd.f32 0.0, %v2545
  %2547 = vmatmul.f32.gmra.mxu0 %v2385
  %v2548 = vpop.f32.mrf.mxu0
  %v2549 = vadd.f32 0.0, %v2548
  %2550 = vmatmul.f32.gmra.mxu0 %v2388
  %v2551 = vpop.f32.mrf.mxu0
  %v2552 = vadd.f32 0.0, %v2551
  %2553 = vmatmul.f32.gmra.mxu0 %v2391
  %v2554 = vpop.f32.mrf.mxu0
  %v2555 = vadd.f32 0.0, %v2554
  %2556 = vmatmul.f32.gmra.mxu0 %v2394
  %v2557 = vpop.f32.mrf.mxu0
  %v2558 = vadd.f32 0.0, %v2557
  %2559 = vmatmul.f32.gmra.mxu0 %v2397
  %v2560 = vpop.f32.mrf.mxu0
  %v2561 = vadd.f32 0.0, %v2560
  %2562 = vmatmul.f32.gmra.mxu0 %v2400
  %v2563 = vpop.f32.mrf.mxu0
  %v2564 = vadd.f32 0.0, %v2563
  %2565 = vmatmul.f32.gmra.mxu0 %v2403
  %v2566 = vpop.f32.mrf.mxu0
  %v2567 = vadd.f32 0.0, %v2566
  %2568 = vmatmul.f32.gmra.mxu0 %v2406
  %v2569 = vpop.f32.mrf.mxu0
  %v2570 = vadd.f32 0.0, %v2569
  %2571 = vmatmul.f32.gmra.mxu0 %v2409
  %v2572 = vpop.f32.mrf.mxu0
  %v2573 = vadd.f32 0.0, %v2572
  %2574 = vmatmul.f32.gmra.mxu0 %v2412
  %v2575 = vpop.f32.mrf.mxu0
  %v2576 = vadd.f32 0.0, %v2575
  %2577 = vmatmul.f32.gmra.mxu0 %v2415
  %v2578 = vpop.f32.mrf.mxu0
  %v2579 = vadd.f32 0.0, %v2578
  %2580 = vmatmul.f32.gmra.mxu0 %v2418
  %v2581 = vpop.f32.mrf.mxu0
  %v2582 = vadd.f32 0.0, %v2581
  %2583 = vmatmul.f32.gmra.mxu0 %v2421
  %v2584 = vpop.f32.mrf.mxu0
  %v2585 = vadd.f32 0.0, %v2584
  %2586 = vmatmul.f32.gmra.mxu0 %v2424
  %v2587 = vpop.f32.mrf.mxu0
  %v2588 = vadd.f32 0.0, %v2587
  %2589 = vmatmul.f32.gmra.mxu0 %v2427
  %v2590 = vpop.f32.mrf.mxu0
  %v2591 = vadd.f32 0.0, %v2590
  %2592 = vmatmul.f32.gmra.mxu0 %v2430
  %v2593 = vpop.f32.mrf.mxu0
  %v2594 = vadd.f32 0.0, %v2593
  %2595 = vmatmul.f32.gmra.mxu0 %v2433
  %v2596 = vpop.f32.mrf.mxu0
  %v2597 = vadd.f32 0.0, %v2596
  %2598 = vmatmul.f32.gmra.mxu0 %v2436
  %v2599 = vpop.f32.mrf.mxu0
  %v2600 = vadd.f32 0.0, %v2599
  %2601 = vmatmul.f32.gmra.mxu0 %v2439
  %v2602 = vpop.f32.mrf.mxu0
  %v2603 = vadd.f32 0.0, %v2602
  %2604 = vmatmul.f32.gmra.mxu0 %v2442
  %v2605 = vpop.f32.mrf.mxu0
  %v2606 = vadd.f32 0.0, %v2605
  %2607 = vmatmul.f32.gmra.mxu0 %v2445
  %v2608 = vpop.f32.mrf.mxu0
  %v2609 = vadd.f32 0.0, %v2608
  %2610 = vmatmul.f32.gmra.mxu0 %v2448
  %v2611 = vpop.f32.mrf.mxu0
  %v2612 = vadd.f32 0.0, %v2611
  %2613 = vmatmul.f32.gmra.mxu0 %v2451
  %v2614 = vpop.f32.mrf.mxu0
  %v2615 = vadd.f32 0.0, %v2614
  %2616 = vmatmul.f32.gmra.mxu0 %v2454
  %v2617 = vpop.f32.mrf.mxu0
  %v2618 = vadd.f32 0.0, %v2617
  %2619 = vmatmul.f32.gmra.mxu0 %v2457
  %v2620 = vpop.f32.mrf.mxu0
  %v2621 = vadd.f32 0.0, %v2620
  %2622 = vmatmul.f32.gmra.mxu0 %v2460
  %v2623 = vpop.f32.mrf.mxu0
  %v2624 = vadd.f32 0.0, %v2623
  %2625 = vmatmul.f32.gmra.mxu0 %v2463
  %v2626 = vpop.f32.mrf.mxu0
  %v2627 = vadd.f32 0.0, %v2626
  %2628 = vmatmul.f32.gmra.mxu0 %v2466
  %v2629 = vpop.f32.mrf.mxu0
  %v2630 = vadd.f32 0.0, %v2629
  %2631 = vmatmul.f32.gmra.mxu0 %v2469
  %v2632 = vpop.f32.mrf.mxu0
  %v2633 = vadd.f32 0.0, %v2632
  %2634 = vmatmul.f32.gmra.mxu0 %v2472
  %v2635 = vpop.f32.mrf.mxu0
  %v2636 = vadd.f32 0.0, %v2635
  %2637 = vmatmul.f32.gmra.mxu0 %v2475
  %v2638 = vpop.f32.mrf.mxu0
  %v2639 = vadd.f32 0.0, %v2638
  %2640 = vmatmul.f32.gmra.mxu0 %v2478
  %v2641 = vpop.f32.mrf.mxu0
  %v2642 = vadd.f32 0.0, %v2641
  %2643 = vmatmul.f32.gmra.mxu0 %v2481
  %v2644 = vpop.f32.mrf.mxu0
  %v2645 = vadd.f32 0.0, %v2644
  %2646 = vmatmul.f32.gmra.mxu0 %v2484
  %v2647 = vpop.f32.mrf.mxu0
  %v2648 = vadd.f32 0.0, %v2647
  %2649 = vdwg.mxu0
  %v2651 = vsel %vm1660, %v2114, 0
  %v2654 = vsel %vm1660, %v2116, 0
  %v2657 = vsel %vm1660, %v2118, 0
  %v2660 = vsel %vm1660, %v2120, 0
  %v2663 = vsel %vm1660, %v2122, 0
  %v2666 = vsel %vm1660, %v2124, 0
  %v2669 = vsel %vm1660, %v2126, 0
  %v2672 = vsel %vm1660, %v2144, 0
  %v2675 = vsel %vm1660, %v2146, 0
  %v2678 = vsel %vm1660, %v2148, 0
  %v2681 = vsel %vm1660, %v2150, 0
  %v2684 = vsel %vm1660, %v2152, 0
  %v2687 = vsel %vm1660, %v2154, 0
  %v2690 = vsel %vm1660, %v2156, 0
  %v2693 = vsel %vm1660, %v2174, 0
  %v2696 = vsel %vm1660, %v2176, 0
  %v2699 = vsel %vm1660, %v2178, 0
  %v2702 = vsel %vm1660, %v2180, 0
  %v2705 = vsel %vm1660, %v2182, 0
  %v2708 = vsel %vm1660, %v2184, 0
  %v2711 = vsel %vm1660, %v2186, 0
  %v2714 = vsel %vm1660, %v2204, 0
  %v2717 = vsel %vm1660, %v2206, 0
  %v2720 = vsel %vm1660, %v2208, 0
  %v2723 = vsel %vm1660, %v2210, 0
  %v2726 = vsel %vm1660, %v2212, 0
  %v2729 = vsel %vm1660, %v2214, 0
  %v2732 = vsel %vm1660, %v2216, 0
  %v2735 = vsel %vm1660, %v2234, 0
  %v2738 = vsel %vm1660, %v2236, 0
  %v2741 = vsel %vm1660, %v2238, 0
  %v2744 = vsel %vm1660, %v2240, 0
  %v2747 = vsel %vm1660, %v2242, 0
  %v2750 = vsel %vm1660, %v2244, 0
  %v2753 = vsel %vm1660, %v2246, 0
  %v2756 = vsel %vm1660, %v2264, 0
  %v2759 = vsel %vm1660, %v2266, 0
  %v2762 = vsel %vm1660, %v2268, 0
  %v2765 = vsel %vm1660, %v2270, 0
  %v2768 = vsel %vm1660, %v2272, 0
  %v2771 = vsel %vm1660, %v2274, 0
  %v2774 = vsel %vm1660, %v2276, 0
  %v2777 = vsel %vm1660, %v2294, 0
  %v2780 = vsel %vm1660, %v2296, 0
  %v2783 = vsel %vm1660, %v2298, 0
  %v2786 = vsel %vm1660, %v2300, 0
  %v2789 = vsel %vm1660, %v2302, 0
  %v2792 = vsel %vm1660, %v2304, 0
  %v2795 = vsel %vm1660, %v2306, 0
  %2797 = vmatpush.msra.mxu0 0.0
  %2798 = vmatpush.msra.mxu0 0.0
  %2799 = vmatpush.msra.mxu0 0.0
  %2800 = vmatpush.msra.mxu0 0.0
  %2801 = vmatpush.msra.mxu0 0.0
  %2802 = vmatpush.msra.mxu0 0.0
  %2803 = vmatpush.msra.mxu0 0.0
  %2804 = vmatpush.msra.mxu0 0.0
  %2805 = vmatpush.msra.mxu0 0.0
  %2806 = vmatpush.msra.mxu0 0.0
  %2807 = vmatpush.msra.mxu0 0.0
  %2808 = vmatpush.msra.mxu0 0.0
  %2809 = vmatpush.msra.mxu0 0.0
  %2810 = vmatpush.msra.mxu0 0.0
  %2811 = vmatpush.msra.mxu0 %v30
  %2812 = vmatpush.msra.mxu0 %v29
  %2813 = vmatmul.f32.gmra.mxu0 %v2651
  %v2814 = vpop.f32.mrf.mxu0
  %v2815 = vadd.f32 %v2504, %v2814
  %2816 = vmatmul.f32.gmra.mxu0 %v2654
  %v2817 = vpop.f32.mrf.mxu0
  %v2818 = vadd.f32 %v2507, %v2817
  %2819 = vmatmul.f32.gmra.mxu0 %v2657
  %v2820 = vpop.f32.mrf.mxu0
  %v2821 = vadd.f32 %v2510, %v2820
  %2822 = vmatmul.f32.gmra.mxu0 %v2660
  %v2823 = vpop.f32.mrf.mxu0
  %v2824 = vadd.f32 %v2513, %v2823
  %2825 = vmatmul.f32.gmra.mxu0 %v2663
  %v2826 = vpop.f32.mrf.mxu0
  %v2827 = vadd.f32 %v2516, %v2826
  %2828 = vmatmul.f32.gmra.mxu0 %v2666
  %v2829 = vpop.f32.mrf.mxu0
  %v2830 = vadd.f32 %v2519, %v2829
  %2831 = vmatmul.f32.gmra.mxu0 %v2669
  %v2832 = vpop.f32.mrf.mxu0
  %v2833 = vadd.f32 %v2522, %v2832
  %2834 = vmatmul.f32.gmra.mxu0 %v2672
  %v2835 = vpop.f32.mrf.mxu0
  %v2836 = vadd.f32 %v2525, %v2835
  %2837 = vmatmul.f32.gmra.mxu0 %v2675
  %v2838 = vpop.f32.mrf.mxu0
  %v2839 = vadd.f32 %v2528, %v2838
  %2840 = vmatmul.f32.gmra.mxu0 %v2678
  %v2841 = vpop.f32.mrf.mxu0
  %v2842 = vadd.f32 %v2531, %v2841
  %2843 = vmatmul.f32.gmra.mxu0 %v2681
  %v2844 = vpop.f32.mrf.mxu0
  %v2845 = vadd.f32 %v2534, %v2844
  %2846 = vmatmul.f32.gmra.mxu0 %v2684
  %v2847 = vpop.f32.mrf.mxu0
  %v2848 = vadd.f32 %v2537, %v2847
  %2849 = vmatmul.f32.gmra.mxu0 %v2687
  %v2850 = vpop.f32.mrf.mxu0
  %v2851 = vadd.f32 %v2540, %v2850
  %2852 = vmatmul.f32.gmra.mxu0 %v2690
  %v2853 = vpop.f32.mrf.mxu0
  %v2854 = vadd.f32 %v2543, %v2853
  %2855 = vmatmul.f32.gmra.mxu0 %v2693
  %v2856 = vpop.f32.mrf.mxu0
  %v2857 = vadd.f32 %v2546, %v2856
  %2858 = vmatmul.f32.gmra.mxu0 %v2696
  %v2859 = vpop.f32.mrf.mxu0
  %v2860 = vadd.f32 %v2549, %v2859
  %2861 = vmatmul.f32.gmra.mxu0 %v2699
  %v2862 = vpop.f32.mrf.mxu0
  %v2863 = vadd.f32 %v2552, %v2862
  %2864 = vmatmul.f32.gmra.mxu0 %v2702
  %v2865 = vpop.f32.mrf.mxu0
  %v2866 = vadd.f32 %v2555, %v2865
  %2867 = vmatmul.f32.gmra.mxu0 %v2705
  %v2868 = vpop.f32.mrf.mxu0
  %v2869 = vadd.f32 %v2558, %v2868
  %2870 = vmatmul.f32.gmra.mxu0 %v2708
  %v2871 = vpop.f32.mrf.mxu0
  %v2872 = vadd.f32 %v2561, %v2871
  %2873 = vmatmul.f32.gmra.mxu0 %v2711
  %v2874 = vpop.f32.mrf.mxu0
  %v2875 = vadd.f32 %v2564, %v2874
  %2876 = vmatmul.f32.gmra.mxu0 %v2714
  %v2877 = vpop.f32.mrf.mxu0
  %v2878 = vadd.f32 %v2567, %v2877
  %2879 = vmatmul.f32.gmra.mxu0 %v2717
  %v2880 = vpop.f32.mrf.mxu0
  %v2881 = vadd.f32 %v2570, %v2880
  %2882 = vmatmul.f32.gmra.mxu0 %v2720
  %v2883 = vpop.f32.mrf.mxu0
  %v2884 = vadd.f32 %v2573, %v2883
  %2885 = vmatmul.f32.gmra.mxu0 %v2723
  %v2886 = vpop.f32.mrf.mxu0
  %v2887 = vadd.f32 %v2576, %v2886
  %2888 = vmatmul.f32.gmra.mxu0 %v2726
  %v2889 = vpop.f32.mrf.mxu0
  %v2890 = vadd.f32 %v2579, %v2889
  %2891 = vmatmul.f32.gmra.mxu0 %v2729
  %v2892 = vpop.f32.mrf.mxu0
  %v2893 = vadd.f32 %v2582, %v2892
  %2894 = vmatmul.f32.gmra.mxu0 %v2732
  %v2895 = vpop.f32.mrf.mxu0
  %v2896 = vadd.f32 %v2585, %v2895
  %2897 = vmatmul.f32.gmra.mxu0 %v2735
  %v2898 = vpop.f32.mrf.mxu0
  %v2899 = vadd.f32 %v2588, %v2898
  %2900 = vmatmul.f32.gmra.mxu0 %v2738
  %v2901 = vpop.f32.mrf.mxu0
  %v2902 = vadd.f32 %v2591, %v2901
  %2903 = vmatmul.f32.gmra.mxu0 %v2741
  %v2904 = vpop.f32.mrf.mxu0
  %v2905 = vadd.f32 %v2594, %v2904
  %2906 = vmatmul.f32.gmra.mxu0 %v2744
  %v2907 = vpop.f32.mrf.mxu0
  %v2908 = vadd.f32 %v2597, %v2907
  %2909 = vmatmul.f32.gmra.mxu0 %v2747
  %v2910 = vpop.f32.mrf.mxu0
  %v2911 = vadd.f32 %v2600, %v2910
  %2912 = vmatmul.f32.gmra.mxu0 %v2750
  %v2913 = vpop.f32.mrf.mxu0
  %v2914 = vadd.f32 %v2603, %v2913
  %2915 = vmatmul.f32.gmra.mxu0 %v2753
  %v2916 = vpop.f32.mrf.mxu0
  %v2917 = vadd.f32 %v2606, %v2916
  %2918 = vmatmul.f32.gmra.mxu0 %v2756
  %v2919 = vpop.f32.mrf.mxu0
  %v2920 = vadd.f32 %v2609, %v2919
  %2921 = vmatmul.f32.gmra.mxu0 %v2759
  %v2922 = vpop.f32.mrf.mxu0
  %v2923 = vadd.f32 %v2612, %v2922
  %2924 = vmatmul.f32.gmra.mxu0 %v2762
  %v2925 = vpop.f32.mrf.mxu0
  %v2926 = vadd.f32 %v2615, %v2925
  %2927 = vmatmul.f32.gmra.mxu0 %v2765
  %v2928 = vpop.f32.mrf.mxu0
  %v2929 = vadd.f32 %v2618, %v2928
  %2930 = vmatmul.f32.gmra.mxu0 %v2768
  %v2931 = vpop.f32.mrf.mxu0
  %v2932 = vadd.f32 %v2621, %v2931
  %2933 = vmatmul.f32.gmra.mxu0 %v2771
  %v2934 = vpop.f32.mrf.mxu0
  %v2935 = vadd.f32 %v2624, %v2934
  %2936 = vmatmul.f32.gmra.mxu0 %v2774
  %v2937 = vpop.f32.mrf.mxu0
  %v2938 = vadd.f32 %v2627, %v2937
  %2939 = vmatmul.f32.gmra.mxu0 %v2777
  %v2940 = vpop.f32.mrf.mxu0
  %v2941 = vadd.f32 %v2630, %v2940
  %2942 = vmatmul.f32.gmra.mxu0 %v2780
  %v2943 = vpop.f32.mrf.mxu0
  %v2944 = vadd.f32 %v2633, %v2943
  %2945 = vmatmul.f32.gmra.mxu0 %v2783
  %v2946 = vpop.f32.mrf.mxu0
  %v2947 = vadd.f32 %v2636, %v2946
  %2948 = vmatmul.f32.gmra.mxu0 %v2786
  %v2949 = vpop.f32.mrf.mxu0
  %v2950 = vadd.f32 %v2639, %v2949
  %2951 = vmatmul.f32.gmra.mxu0 %v2789
  %v2952 = vpop.f32.mrf.mxu0
  %v2953 = vadd.f32 %v2642, %v2952
  %2954 = vmatmul.f32.gmra.mxu0 %v2792
  %v2955 = vpop.f32.mrf.mxu0
  %v2956 = vadd.f32 %v2645, %v2955
  %2957 = vmatmul.f32.gmra.mxu0 %v2795
  %v2958 = vpop.f32.mrf.mxu0
  %v2959 = vadd.f32 %v2648, %v2958
  %2960 = vdwg.mxu0
  %v2962 = vsel %vm1660, %v2128, 0
  %v2965 = vsel %vm1660, %v2158, 0
  %v2968 = vsel %vm1660, %v2188, 0
  %v2971 = vsel %vm1660, %v2218, 0
  %v2974 = vsel %vm1660, %v2248, 0
  %v2977 = vsel %vm1660, %v2278, 0
  %v2980 = vsel %vm1660, %v2308, 0
  %2982 = vmatpush.msra.mxu0 0.0
  %2983 = vmatpush.msra.mxu0 0.0
  %2984 = vmatpush.msra.mxu0 0.0
  %2985 = vmatpush.msra.mxu0 0.0
  %2986 = vmatpush.msra.mxu0 0.0
  %2987 = vmatpush.msra.mxu0 0.0
  %2988 = vmatpush.msra.mxu0 0.0
  %2989 = vmatpush.msra.mxu0 0.0
  %2990 = vmatpush.msra.mxu0 0.0
  %2991 = vmatpush.msra.mxu0 0.0
  %2992 = vmatpush.msra.mxu0 0.0
  %2993 = vmatpush.msra.mxu0 0.0
  %2994 = vmatpush.msra.mxu0 0.0
  %2995 = vmatpush.msra.mxu0 0.0
  %2996 = vmatpush.msra.mxu0 %v34
  %2997 = vmatpush.msra.mxu0 %v33
  %2998 = vmatmul.f32.gmra.mxu0 %v2654
  %v2999 = vpop.f32.mrf.mxu0
  %v3000 = vadd.f32 0.0, %v2999
  %3001 = vmatmul.f32.gmra.mxu0 %v2657
  %v3002 = vpop.f32.mrf.mxu0
  %v3003 = vadd.f32 0.0, %v3002
  %3004 = vmatmul.f32.gmra.mxu0 %v2660
  %v3005 = vpop.f32.mrf.mxu0
  %v3006 = vadd.f32 0.0, %v3005
  %3007 = vmatmul.f32.gmra.mxu0 %v2663
  %v3008 = vpop.f32.mrf.mxu0
  %v3009 = vadd.f32 0.0, %v3008
  %3010 = vmatmul.f32.gmra.mxu0 %v2666
  %v3011 = vpop.f32.mrf.mxu0
  %v3012 = vadd.f32 0.0, %v3011
  %3013 = vmatmul.f32.gmra.mxu0 %v2669
  %v3014 = vpop.f32.mrf.mxu0
  %v3015 = vadd.f32 0.0, %v3014
  %3016 = vmatmul.f32.gmra.mxu0 %v2962
  %v3017 = vpop.f32.mrf.mxu0
  %v3018 = vadd.f32 0.0, %v3017
  %3019 = vmatmul.f32.gmra.mxu0 %v2675
  %v3020 = vpop.f32.mrf.mxu0
  %v3021 = vadd.f32 0.0, %v3020
  %3022 = vmatmul.f32.gmra.mxu0 %v2678
  %v3023 = vpop.f32.mrf.mxu0
  %v3024 = vadd.f32 0.0, %v3023
  %3025 = vmatmul.f32.gmra.mxu0 %v2681
  %v3026 = vpop.f32.mrf.mxu0
  %v3027 = vadd.f32 0.0, %v3026
  %3028 = vmatmul.f32.gmra.mxu0 %v2684
  %v3029 = vpop.f32.mrf.mxu0
  %v3030 = vadd.f32 0.0, %v3029
  %3031 = vmatmul.f32.gmra.mxu0 %v2687
  %v3032 = vpop.f32.mrf.mxu0
  %v3033 = vadd.f32 0.0, %v3032
  %3034 = vmatmul.f32.gmra.mxu0 %v2690
  %v3035 = vpop.f32.mrf.mxu0
  %v3036 = vadd.f32 0.0, %v3035
  %3037 = vmatmul.f32.gmra.mxu0 %v2965
  %v3038 = vpop.f32.mrf.mxu0
  %v3039 = vadd.f32 0.0, %v3038
  %3040 = vmatmul.f32.gmra.mxu0 %v2696
  %v3041 = vpop.f32.mrf.mxu0
  %v3042 = vadd.f32 0.0, %v3041
  %3043 = vmatmul.f32.gmra.mxu0 %v2699
  %v3044 = vpop.f32.mrf.mxu0
  %v3045 = vadd.f32 0.0, %v3044
  %3046 = vmatmul.f32.gmra.mxu0 %v2702
  %v3047 = vpop.f32.mrf.mxu0
  %v3048 = vadd.f32 0.0, %v3047
  %3049 = vmatmul.f32.gmra.mxu0 %v2705
  %v3050 = vpop.f32.mrf.mxu0
  %v3051 = vadd.f32 0.0, %v3050
  %3052 = vmatmul.f32.gmra.mxu0 %v2708
  %v3053 = vpop.f32.mrf.mxu0
  %v3054 = vadd.f32 0.0, %v3053
  %3055 = vmatmul.f32.gmra.mxu0 %v2711
  %v3056 = vpop.f32.mrf.mxu0
  %v3057 = vadd.f32 0.0, %v3056
  %3058 = vmatmul.f32.gmra.mxu0 %v2968
  %v3059 = vpop.f32.mrf.mxu0
  %v3060 = vadd.f32 0.0, %v3059
  %3061 = vmatmul.f32.gmra.mxu0 %v2717
  %v3062 = vpop.f32.mrf.mxu0
  %v3063 = vadd.f32 0.0, %v3062
  %3064 = vmatmul.f32.gmra.mxu0 %v2720
  %v3065 = vpop.f32.mrf.mxu0
  %v3066 = vadd.f32 0.0, %v3065
  %3067 = vmatmul.f32.gmra.mxu0 %v2723
  %v3068 = vpop.f32.mrf.mxu0
  %v3069 = vadd.f32 0.0, %v3068
  %3070 = vmatmul.f32.gmra.mxu0 %v2726
  %v3071 = vpop.f32.mrf.mxu0
  %v3072 = vadd.f32 0.0, %v3071
  %3073 = vmatmul.f32.gmra.mxu0 %v2729
  %v3074 = vpop.f32.mrf.mxu0
  %v3075 = vadd.f32 0.0, %v3074
  %3076 = vmatmul.f32.gmra.mxu0 %v2732
  %v3077 = vpop.f32.mrf.mxu0
  %v3078 = vadd.f32 0.0, %v3077
  %3079 = vmatmul.f32.gmra.mxu0 %v2971
  %v3080 = vpop.f32.mrf.mxu0
  %v3081 = vadd.f32 0.0, %v3080
  %3082 = vmatmul.f32.gmra.mxu0 %v2738
  %v3083 = vpop.f32.mrf.mxu0
  %v3084 = vadd.f32 0.0, %v3083
  %3085 = vmatmul.f32.gmra.mxu0 %v2741
  %v3086 = vpop.f32.mrf.mxu0
  %v3087 = vadd.f32 0.0, %v3086
  %3088 = vmatmul.f32.gmra.mxu0 %v2744
  %v3089 = vpop.f32.mrf.mxu0
  %v3090 = vadd.f32 0.0, %v3089
  %3091 = vmatmul.f32.gmra.mxu0 %v2747
  %v3092 = vpop.f32.mrf.mxu0
  %v3093 = vadd.f32 0.0, %v3092
  %3094 = vmatmul.f32.gmra.mxu0 %v2750
  %v3095 = vpop.f32.mrf.mxu0
  %v3096 = vadd.f32 0.0, %v3095
  %3097 = vmatmul.f32.gmra.mxu0 %v2753
  %v3098 = vpop.f32.mrf.mxu0
  %v3099 = vadd.f32 0.0, %v3098
  %3100 = vmatmul.f32.gmra.mxu0 %v2974
  %v3101 = vpop.f32.mrf.mxu0
  %v3102 = vadd.f32 0.0, %v3101
  %3103 = vmatmul.f32.gmra.mxu0 %v2759
  %v3104 = vpop.f32.mrf.mxu0
  %v3105 = vadd.f32 0.0, %v3104
  %3106 = vmatmul.f32.gmra.mxu0 %v2762
  %v3107 = vpop.f32.mrf.mxu0
  %v3108 = vadd.f32 0.0, %v3107
  %3109 = vmatmul.f32.gmra.mxu0 %v2765
  %v3110 = vpop.f32.mrf.mxu0
  %v3111 = vadd.f32 0.0, %v3110
  %3112 = vmatmul.f32.gmra.mxu0 %v2768
  %v3113 = vpop.f32.mrf.mxu0
  %v3114 = vadd.f32 0.0, %v3113
  %3115 = vmatmul.f32.gmra.mxu0 %v2771
  %v3116 = vpop.f32.mrf.mxu0
  %v3117 = vadd.f32 0.0, %v3116
  %3118 = vmatmul.f32.gmra.mxu0 %v2774
  %v3119 = vpop.f32.mrf.mxu0
  %v3120 = vadd.f32 0.0, %v3119
  %3121 = vmatmul.f32.gmra.mxu0 %v2977
  %v3122 = vpop.f32.mrf.mxu0
  %v3123 = vadd.f32 0.0, %v3122
  %3124 = vmatmul.f32.gmra.mxu0 %v2780
  %v3125 = vpop.f32.mrf.mxu0
  %v3126 = vadd.f32 0.0, %v3125
  %3127 = vmatmul.f32.gmra.mxu0 %v2783
  %v3128 = vpop.f32.mrf.mxu0
  %v3129 = vadd.f32 0.0, %v3128
  %3130 = vmatmul.f32.gmra.mxu0 %v2786
  %v3131 = vpop.f32.mrf.mxu0
  %v3132 = vadd.f32 0.0, %v3131
  %3133 = vmatmul.f32.gmra.mxu0 %v2789
  %v3134 = vpop.f32.mrf.mxu0
  %v3135 = vadd.f32 0.0, %v3134
  %3136 = vmatmul.f32.gmra.mxu0 %v2792
  %v3137 = vpop.f32.mrf.mxu0
  %v3138 = vadd.f32 0.0, %v3137
  %3139 = vmatmul.f32.gmra.mxu0 %v2795
  %v3140 = vpop.f32.mrf.mxu0
  %v3141 = vadd.f32 0.0, %v3140
  %3142 = vmatmul.f32.gmra.mxu0 %v2980
  %v3143 = vpop.f32.mrf.mxu0
  %v3144 = vadd.f32 0.0, %v3143
  %3145 = vdwg.mxu0
  %v3146 = vadd.f32 %v2815, %v3000
  %v3147 = vadd.f32 %v2818, %v3003
  %v3148 = vadd.f32 %v2821, %v3006
  %v3149 = vadd.f32 %v2824, %v3009
  %v3150 = vadd.f32 %v2827, %v3012
  %v3151 = vadd.f32 %v2830, %v3015
  %v3152 = vadd.f32 %v2833, %v3018
  %v3153 = vadd.f32 %v2836, %v3021
  %v3154 = vadd.f32 %v2839, %v3024
  %v3155 = vadd.f32 %v2842, %v3027
  %v3156 = vadd.f32 %v2845, %v3030
  %v3157 = vadd.f32 %v2848, %v3033
  %v3158 = vadd.f32 %v2851, %v3036
  %v3159 = vadd.f32 %v2854, %v3039
  %v3160 = vadd.f32 %v2857, %v3042
  %v3161 = vadd.f32 %v2860, %v3045
  %v3162 = vadd.f32 %v2863, %v3048
  %v3163 = vadd.f32 %v2866, %v3051
  %v3164 = vadd.f32 %v2869, %v3054
  %v3165 = vadd.f32 %v2872, %v3057
  %v3166 = vadd.f32 %v2875, %v3060
  %v3167 = vadd.f32 %v2878, %v3063
  %v3168 = vadd.f32 %v2881, %v3066
  %v3169 = vadd.f32 %v2884, %v3069
  %v3170 = vadd.f32 %v2887, %v3072
  %v3171 = vadd.f32 %v2890, %v3075
  %v3172 = vadd.f32 %v2893, %v3078
  %v3173 = vadd.f32 %v2896, %v3081
  %v3174 = vadd.f32 %v2899, %v3084
  %v3175 = vadd.f32 %v2902, %v3087
  %v3176 = vadd.f32 %v2905, %v3090
  %v3177 = vadd.f32 %v2908, %v3093
  %v3178 = vadd.f32 %v2911, %v3096
  %v3179 = vadd.f32 %v2914, %v3099
  %v3180 = vadd.f32 %v2917, %v3102
  %v3181 = vadd.f32 %v2920, %v3105
  %v3182 = vadd.f32 %v2923, %v3108
  %v3183 = vadd.f32 %v2926, %v3111
  %v3184 = vadd.f32 %v2929, %v3114
  %v3185 = vadd.f32 %v2932, %v3117
  %v3186 = vadd.f32 %v2935, %v3120
  %v3187 = vadd.f32 %v2938, %v3123
  %v3188 = vadd.f32 %v2941, %v3126
  %v3189 = vadd.f32 %v2944, %v3129
  %v3190 = vadd.f32 %v2947, %v3132
  %v3191 = vadd.f32 %v2950, %v3135
  %v3192 = vadd.f32 %v2953, %v3138
  %v3193 = vadd.f32 %v2956, %v3141
  %v3194 = vadd.f32 %v2959, %v3144
  %v3196 = vsel %vm1660, %v2129, 0
  %v3199 = vsel %vm1660, %v2131, 0
  %v3202 = vsel %vm1660, %v2133, 0
  %v3205 = vsel %vm1660, %v2135, 0
  %v3208 = vsel %vm1660, %v2137, 0
  %v3211 = vsel %vm1660, %v2139, 0
  %v3214 = vsel %vm1660, %v2141, 0
  %v3217 = vsel %vm1660, %v2159, 0
  %v3220 = vsel %vm1660, %v2161, 0
  %v3223 = vsel %vm1660, %v2163, 0
  %v3226 = vsel %vm1660, %v2165, 0
  %v3229 = vsel %vm1660, %v2167, 0
  %v3232 = vsel %vm1660, %v2169, 0
  %v3235 = vsel %vm1660, %v2171, 0
  %v3238 = vsel %vm1660, %v2189, 0
  %v3241 = vsel %vm1660, %v2191, 0
  %v3244 = vsel %vm1660, %v2193, 0
  %v3247 = vsel %vm1660, %v2195, 0
  %v3250 = vsel %vm1660, %v2197, 0
  %v3253 = vsel %vm1660, %v2199, 0
  %v3256 = vsel %vm1660, %v2201, 0
  %v3259 = vsel %vm1660, %v2219, 0
  %v3262 = vsel %vm1660, %v2221, 0
  %v3265 = vsel %vm1660, %v2223, 0
  %v3268 = vsel %vm1660, %v2225, 0
  %v3271 = vsel %vm1660, %v2227, 0
  %v3274 = vsel %vm1660, %v2229, 0
  %v3277 = vsel %vm1660, %v2231, 0
  %v3280 = vsel %vm1660, %v2249, 0
  %v3283 = vsel %vm1660, %v2251, 0
  %v3286 = vsel %vm1660, %v2253, 0
  %v3289 = vsel %vm1660, %v2255, 0
  %v3292 = vsel %vm1660, %v2257, 0
  %v3295 = vsel %vm1660, %v2259, 0
  %v3298 = vsel %vm1660, %v2261, 0
  %v3301 = vsel %vm1660, %v2279, 0
  %v3304 = vsel %vm1660, %v2281, 0
  %v3307 = vsel %vm1660, %v2283, 0
  %v3310 = vsel %vm1660, %v2285, 0
  %v3313 = vsel %vm1660, %v2287, 0
  %v3316 = vsel %vm1660, %v2289, 0
  %v3319 = vsel %vm1660, %v2291, 0
  %v3322 = vsel %vm1660, %v2309, 0
  %v3325 = vsel %vm1660, %v2311, 0
  %v3328 = vsel %vm1660, %v2313, 0
  %v3331 = vsel %vm1660, %v2315, 0
  %v3334 = vsel %vm1660, %v2317, 0
  %v3337 = vsel %vm1660, %v2319, 0
  %v3340 = vsel %vm1660, %v2321, 0
  %3342 = vmatpush.msra.mxu0 0.0
  %3343 = vmatpush.msra.mxu0 0.0
  %3344 = vmatpush.msra.mxu0 0.0
  %3345 = vmatpush.msra.mxu0 0.0
  %3346 = vmatpush.msra.mxu0 0.0
  %3347 = vmatpush.msra.mxu0 0.0
  %3348 = vmatpush.msra.mxu0 0.0
  %3349 = vmatpush.msra.mxu0 0.0
  %3350 = vmatpush.msra.mxu0 0.0
  %3351 = vmatpush.msra.mxu0 0.0
  %3352 = vmatpush.msra.mxu0 0.0
  %3353 = vmatpush.msra.mxu0 0.0
  %3354 = vmatpush.msra.mxu0 0.0
  %3355 = vmatpush.msra.mxu0 0.0
  %3356 = vmatpush.msra.mxu0 %v36
  %3357 = vmatpush.msra.mxu0 %v35
  %3358 = vmatmul.f32.gmra.mxu0 %v3196
  %v3359 = vpop.f32.mrf.mxu0
  %v3360 = vadd.f32 0.0, %v3359
  %3361 = vmatmul.f32.gmra.mxu0 %v3199
  %v3362 = vpop.f32.mrf.mxu0
  %v3363 = vadd.f32 0.0, %v3362
  %3364 = vmatmul.f32.gmra.mxu0 %v3202
  %v3365 = vpop.f32.mrf.mxu0
  %v3366 = vadd.f32 0.0, %v3365
  %3367 = vmatmul.f32.gmra.mxu0 %v3205
  %v3368 = vpop.f32.mrf.mxu0
  %v3369 = vadd.f32 0.0, %v3368
  %3370 = vmatmul.f32.gmra.mxu0 %v3208
  %v3371 = vpop.f32.mrf.mxu0
  %v3372 = vadd.f32 0.0, %v3371
  %3373 = vmatmul.f32.gmra.mxu0 %v3211
  %v3374 = vpop.f32.mrf.mxu0
  %v3375 = vadd.f32 0.0, %v3374
  %3376 = vmatmul.f32.gmra.mxu0 %v3214
  %v3377 = vpop.f32.mrf.mxu0
  %v3378 = vadd.f32 0.0, %v3377
  %3379 = vmatmul.f32.gmra.mxu0 %v3217
  %v3380 = vpop.f32.mrf.mxu0
  %v3381 = vadd.f32 0.0, %v3380
  %3382 = vmatmul.f32.gmra.mxu0 %v3220
  %v3383 = vpop.f32.mrf.mxu0
  %v3384 = vadd.f32 0.0, %v3383
  %3385 = vmatmul.f32.gmra.mxu0 %v3223
  %v3386 = vpop.f32.mrf.mxu0
  %v3387 = vadd.f32 0.0, %v3386
  %3388 = vmatmul.f32.gmra.mxu0 %v3226
  %v3389 = vpop.f32.mrf.mxu0
  %v3390 = vadd.f32 0.0, %v3389
  %3391 = vmatmul.f32.gmra.mxu0 %v3229
  %v3392 = vpop.f32.mrf.mxu0
  %v3393 = vadd.f32 0.0, %v3392
  %3394 = vmatmul.f32.gmra.mxu0 %v3232
  %v3395 = vpop.f32.mrf.mxu0
  %v3396 = vadd.f32 0.0, %v3395
  %3397 = vmatmul.f32.gmra.mxu0 %v3235
  %v3398 = vpop.f32.mrf.mxu0
  %v3399 = vadd.f32 0.0, %v3398
  %3400 = vmatmul.f32.gmra.mxu0 %v3238
  %v3401 = vpop.f32.mrf.mxu0
  %v3402 = vadd.f32 0.0, %v3401
  %3403 = vmatmul.f32.gmra.mxu0 %v3241
  %v3404 = vpop.f32.mrf.mxu0
  %v3405 = vadd.f32 0.0, %v3404
  %3406 = vmatmul.f32.gmra.mxu0 %v3244
  %v3407 = vpop.f32.mrf.mxu0
  %v3408 = vadd.f32 0.0, %v3407
  %3409 = vmatmul.f32.gmra.mxu0 %v3247
  %v3410 = vpop.f32.mrf.mxu0
  %v3411 = vadd.f32 0.0, %v3410
  %3412 = vmatmul.f32.gmra.mxu0 %v3250
  %v3413 = vpop.f32.mrf.mxu0
  %v3414 = vadd.f32 0.0, %v3413
  %3415 = vmatmul.f32.gmra.mxu0 %v3253
  %v3416 = vpop.f32.mrf.mxu0
  %v3417 = vadd.f32 0.0, %v3416
  %3418 = vmatmul.f32.gmra.mxu0 %v3256
  %v3419 = vpop.f32.mrf.mxu0
  %v3420 = vadd.f32 0.0, %v3419
  %3421 = vmatmul.f32.gmra.mxu0 %v3259
  %v3422 = vpop.f32.mrf.mxu0
  %v3423 = vadd.f32 0.0, %v3422
  %3424 = vmatmul.f32.gmra.mxu0 %v3262
  %v3425 = vpop.f32.mrf.mxu0
  %v3426 = vadd.f32 0.0, %v3425
  %3427 = vmatmul.f32.gmra.mxu0 %v3265
  %v3428 = vpop.f32.mrf.mxu0
  %v3429 = vadd.f32 0.0, %v3428
  %3430 = vmatmul.f32.gmra.mxu0 %v3268
  %v3431 = vpop.f32.mrf.mxu0
  %v3432 = vadd.f32 0.0, %v3431
  %3433 = vmatmul.f32.gmra.mxu0 %v3271
  %v3434 = vpop.f32.mrf.mxu0
  %v3435 = vadd.f32 0.0, %v3434
  %3436 = vmatmul.f32.gmra.mxu0 %v3274
  %v3437 = vpop.f32.mrf.mxu0
  %v3438 = vadd.f32 0.0, %v3437
  %3439 = vmatmul.f32.gmra.mxu0 %v3277
  %v3440 = vpop.f32.mrf.mxu0
  %v3441 = vadd.f32 0.0, %v3440
  %3442 = vmatmul.f32.gmra.mxu0 %v3280
  %v3443 = vpop.f32.mrf.mxu0
  %v3444 = vadd.f32 0.0, %v3443
  %3445 = vmatmul.f32.gmra.mxu0 %v3283
  %v3446 = vpop.f32.mrf.mxu0
  %v3447 = vadd.f32 0.0, %v3446
  %3448 = vmatmul.f32.gmra.mxu0 %v3286
  %v3449 = vpop.f32.mrf.mxu0
  %v3450 = vadd.f32 0.0, %v3449
  %3451 = vmatmul.f32.gmra.mxu0 %v3289
  %v3452 = vpop.f32.mrf.mxu0
  %v3453 = vadd.f32 0.0, %v3452
  %3454 = vmatmul.f32.gmra.mxu0 %v3292
  %v3455 = vpop.f32.mrf.mxu0
  %v3456 = vadd.f32 0.0, %v3455
  %3457 = vmatmul.f32.gmra.mxu0 %v3295
  %v3458 = vpop.f32.mrf.mxu0
  %v3459 = vadd.f32 0.0, %v3458
  %3460 = vmatmul.f32.gmra.mxu0 %v3298
  %v3461 = vpop.f32.mrf.mxu0
  %v3462 = vadd.f32 0.0, %v3461
  %3463 = vmatmul.f32.gmra.mxu0 %v3301
  %v3464 = vpop.f32.mrf.mxu0
  %v3465 = vadd.f32 0.0, %v3464
  %3466 = vmatmul.f32.gmra.mxu0 %v3304
  %v3467 = vpop.f32.mrf.mxu0
  %v3468 = vadd.f32 0.0, %v3467
  %3469 = vmatmul.f32.gmra.mxu0 %v3307
  %v3470 = vpop.f32.mrf.mxu0
  %v3471 = vadd.f32 0.0, %v3470
  %3472 = vmatmul.f32.gmra.mxu0 %v3310
  %v3473 = vpop.f32.mrf.mxu0
  %v3474 = vadd.f32 0.0, %v3473
  %3475 = vmatmul.f32.gmra.mxu0 %v3313
  %v3476 = vpop.f32.mrf.mxu0
  %v3477 = vadd.f32 0.0, %v3476
  %3478 = vmatmul.f32.gmra.mxu0 %v3316
  %v3479 = vpop.f32.mrf.mxu0
  %v3480 = vadd.f32 0.0, %v3479
  %3481 = vmatmul.f32.gmra.mxu0 %v3319
  %v3482 = vpop.f32.mrf.mxu0
  %v3483 = vadd.f32 0.0, %v3482
  %3484 = vmatmul.f32.gmra.mxu0 %v3322
  %v3485 = vpop.f32.mrf.mxu0
  %v3486 = vadd.f32 0.0, %v3485
  %3487 = vmatmul.f32.gmra.mxu0 %v3325
  %v3488 = vpop.f32.mrf.mxu0
  %v3489 = vadd.f32 0.0, %v3488
  %3490 = vmatmul.f32.gmra.mxu0 %v3328
  %v3491 = vpop.f32.mrf.mxu0
  %v3492 = vadd.f32 0.0, %v3491
  %3493 = vmatmul.f32.gmra.mxu0 %v3331
  %v3494 = vpop.f32.mrf.mxu0
  %v3495 = vadd.f32 0.0, %v3494
  %3496 = vmatmul.f32.gmra.mxu0 %v3334
  %v3497 = vpop.f32.mrf.mxu0
  %v3498 = vadd.f32 0.0, %v3497
  %3499 = vmatmul.f32.gmra.mxu0 %v3337
  %v3500 = vpop.f32.mrf.mxu0
  %v3501 = vadd.f32 0.0, %v3500
  %3502 = vmatmul.f32.gmra.mxu0 %v3340
  %v3503 = vpop.f32.mrf.mxu0
  %v3504 = vadd.f32 0.0, %v3503
  %3505 = vdwg.mxu0
  %v3506 = vadd.f32 %v3146, %v3360
  %v3507 = vadd.f32 %v3147, %v3363
  %v3508 = vadd.f32 %v3148, %v3366
  %v3509 = vadd.f32 %v3149, %v3369
  %v3510 = vadd.f32 %v3150, %v3372
  %v3511 = vadd.f32 %v3151, %v3375
  %v3512 = vadd.f32 %v3152, %v3378
  %v3513 = vadd.f32 %v3153, %v3381
  %v3514 = vadd.f32 %v3154, %v3384
  %v3515 = vadd.f32 %v3155, %v3387
  %v3516 = vadd.f32 %v3156, %v3390
  %v3517 = vadd.f32 %v3157, %v3393
  %v3518 = vadd.f32 %v3158, %v3396
  %v3519 = vadd.f32 %v3159, %v3399
  %v3520 = vadd.f32 %v3160, %v3402
  %v3521 = vadd.f32 %v3161, %v3405
  %v3522 = vadd.f32 %v3162, %v3408
  %v3523 = vadd.f32 %v3163, %v3411
  %v3524 = vadd.f32 %v3164, %v3414
  %v3525 = vadd.f32 %v3165, %v3417
  %v3526 = vadd.f32 %v3166, %v3420
  %v3527 = vadd.f32 %v3167, %v3423
  %v3528 = vadd.f32 %v3168, %v3426
  %v3529 = vadd.f32 %v3169, %v3429
  %v3530 = vadd.f32 %v3170, %v3432
  %v3531 = vadd.f32 %v3171, %v3435
  %v3532 = vadd.f32 %v3172, %v3438
  %v3533 = vadd.f32 %v3173, %v3441
  %v3534 = vadd.f32 %v3174, %v3444
  %v3535 = vadd.f32 %v3175, %v3447
  %v3536 = vadd.f32 %v3176, %v3450
  %v3537 = vadd.f32 %v3177, %v3453
  %v3538 = vadd.f32 %v3178, %v3456
  %v3539 = vadd.f32 %v3179, %v3459
  %v3540 = vadd.f32 %v3180, %v3462
  %v3541 = vadd.f32 %v3181, %v3465
  %v3542 = vadd.f32 %v3182, %v3468
  %v3543 = vadd.f32 %v3183, %v3471
  %v3544 = vadd.f32 %v3184, %v3474
  %v3545 = vadd.f32 %v3185, %v3477
  %v3546 = vadd.f32 %v3186, %v3480
  %v3547 = vadd.f32 %v3187, %v3483
  %v3548 = vadd.f32 %v3188, %v3486
  %v3549 = vadd.f32 %v3189, %v3489
  %v3550 = vadd.f32 %v3190, %v3492
  %v3551 = vadd.f32 %v3191, %v3495
  %v3552 = vadd.f32 %v3192, %v3498
  %v3553 = vadd.f32 %v3193, %v3501
  %v3554 = vadd.f32 %v3194, %v3504
  %v3556 = vsel %vm1660, %v2130, 0
  %v3559 = vsel %vm1660, %v2132, 0
  %v3562 = vsel %vm1660, %v2134, 0
  %v3565 = vsel %vm1660, %v2136, 0
  %v3568 = vsel %vm1660, %v2138, 0
  %v3571 = vsel %vm1660, %v2140, 0
  %v3574 = vsel %vm1660, %v2142, 0
  %v3577 = vsel %vm1660, %v2160, 0
  %v3580 = vsel %vm1660, %v2162, 0
  %v3583 = vsel %vm1660, %v2164, 0
  %v3586 = vsel %vm1660, %v2166, 0
  %v3589 = vsel %vm1660, %v2168, 0
  %v3592 = vsel %vm1660, %v2170, 0
  %v3595 = vsel %vm1660, %v2172, 0
  %v3598 = vsel %vm1660, %v2190, 0
  %v3601 = vsel %vm1660, %v2192, 0
  %v3604 = vsel %vm1660, %v2194, 0
  %v3607 = vsel %vm1660, %v2196, 0
  %v3610 = vsel %vm1660, %v2198, 0
  %v3613 = vsel %vm1660, %v2200, 0
  %v3616 = vsel %vm1660, %v2202, 0
  %v3619 = vsel %vm1660, %v2220, 0
  %v3622 = vsel %vm1660, %v2222, 0
  %v3625 = vsel %vm1660, %v2224, 0
  %v3628 = vsel %vm1660, %v2226, 0
  %v3631 = vsel %vm1660, %v2228, 0
  %v3634 = vsel %vm1660, %v2230, 0
  %v3637 = vsel %vm1660, %v2232, 0
  %v3640 = vsel %vm1660, %v2250, 0
  %v3643 = vsel %vm1660, %v2252, 0
  %v3646 = vsel %vm1660, %v2254, 0
  %v3649 = vsel %vm1660, %v2256, 0
  %v3652 = vsel %vm1660, %v2258, 0
  %v3655 = vsel %vm1660, %v2260, 0
  %v3658 = vsel %vm1660, %v2262, 0
  %v3661 = vsel %vm1660, %v2280, 0
  %v3664 = vsel %vm1660, %v2282, 0
  %v3667 = vsel %vm1660, %v2284, 0
  %v3670 = vsel %vm1660, %v2286, 0
  %v3673 = vsel %vm1660, %v2288, 0
  %v3676 = vsel %vm1660, %v2290, 0
  %v3679 = vsel %vm1660, %v2292, 0
  %v3682 = vsel %vm1660, %v2310, 0
  %v3685 = vsel %vm1660, %v2312, 0
  %v3688 = vsel %vm1660, %v2314, 0
  %v3691 = vsel %vm1660, %v2316, 0
  %v3694 = vsel %vm1660, %v2318, 0
  %v3697 = vsel %vm1660, %v2320, 0
  %v3700 = vsel %vm1660, %v2322, 0
  %3702 = vmatpush.msra.mxu0 0.0
  %3703 = vmatpush.msra.mxu0 0.0
  %3704 = vmatpush.msra.mxu0 0.0
  %3705 = vmatpush.msra.mxu0 0.0
  %3706 = vmatpush.msra.mxu0 0.0
  %3707 = vmatpush.msra.mxu0 0.0
  %3708 = vmatpush.msra.mxu0 0.0
  %3709 = vmatpush.msra.mxu0 0.0
  %3710 = vmatpush.msra.mxu0 0.0
  %3711 = vmatpush.msra.mxu0 0.0
  %3712 = vmatpush.msra.mxu0 0.0
  %3713 = vmatpush.msra.mxu0 0.0
  %3714 = vmatpush.msra.mxu0 0.0
  %3715 = vmatpush.msra.mxu0 0.0
  %3716 = vmatpush.msra.mxu0 %v38
  %3717 = vmatpush.msra.mxu0 %v37
  %3718 = vmatmul.f32.gmra.mxu0 %v3556
  %v3719 = vpop.f32.mrf.mxu0
  %v3720 = vadd.f32 0.0, %v3719
  %3721 = vmatmul.f32.gmra.mxu0 %v3559
  %v3722 = vpop.f32.mrf.mxu0
  %v3723 = vadd.f32 0.0, %v3722
  %3724 = vmatmul.f32.gmra.mxu0 %v3562
  %v3725 = vpop.f32.mrf.mxu0
  %v3726 = vadd.f32 0.0, %v3725
  %3727 = vmatmul.f32.gmra.mxu0 %v3565
  %v3728 = vpop.f32.mrf.mxu0
  %v3729 = vadd.f32 0.0, %v3728
  %3730 = vmatmul.f32.gmra.mxu0 %v3568
  %v3731 = vpop.f32.mrf.mxu0
  %v3732 = vadd.f32 0.0, %v3731
  %3733 = vmatmul.f32.gmra.mxu0 %v3571
  %v3734 = vpop.f32.mrf.mxu0
  %v3735 = vadd.f32 0.0, %v3734
  %3736 = vmatmul.f32.gmra.mxu0 %v3574
  %v3737 = vpop.f32.mrf.mxu0
  %v3738 = vadd.f32 0.0, %v3737
  %3739 = vmatmul.f32.gmra.mxu0 %v3577
  %v3740 = vpop.f32.mrf.mxu0
  %v3741 = vadd.f32 0.0, %v3740
  %3742 = vmatmul.f32.gmra.mxu0 %v3580
  %v3743 = vpop.f32.mrf.mxu0
  %v3744 = vadd.f32 0.0, %v3743
  %3745 = vmatmul.f32.gmra.mxu0 %v3583
  %v3746 = vpop.f32.mrf.mxu0
  %v3747 = vadd.f32 0.0, %v3746
  %3748 = vmatmul.f32.gmra.mxu0 %v3586
  %v3749 = vpop.f32.mrf.mxu0
  %v3750 = vadd.f32 0.0, %v3749
  %3751 = vmatmul.f32.gmra.mxu0 %v3589
  %v3752 = vpop.f32.mrf.mxu0
  %v3753 = vadd.f32 0.0, %v3752
  %3754 = vmatmul.f32.gmra.mxu0 %v3592
  %v3755 = vpop.f32.mrf.mxu0
  %v3756 = vadd.f32 0.0, %v3755
  %3757 = vmatmul.f32.gmra.mxu0 %v3595
  %v3758 = vpop.f32.mrf.mxu0
  %v3759 = vadd.f32 0.0, %v3758
  %3760 = vmatmul.f32.gmra.mxu0 %v3598
  %v3761 = vpop.f32.mrf.mxu0
  %v3762 = vadd.f32 0.0, %v3761
  %3763 = vmatmul.f32.gmra.mxu0 %v3601
  %v3764 = vpop.f32.mrf.mxu0
  %v3765 = vadd.f32 0.0, %v3764
  %3766 = vmatmul.f32.gmra.mxu0 %v3604
  %v3767 = vpop.f32.mrf.mxu0
  %v3768 = vadd.f32 0.0, %v3767
  %3769 = vmatmul.f32.gmra.mxu0 %v3607
  %v3770 = vpop.f32.mrf.mxu0
  %v3771 = vadd.f32 0.0, %v3770
  %3772 = vmatmul.f32.gmra.mxu0 %v3610
  %v3773 = vpop.f32.mrf.mxu0
  %v3774 = vadd.f32 0.0, %v3773
  %3775 = vmatmul.f32.gmra.mxu0 %v3613
  %v3776 = vpop.f32.mrf.mxu0
  %v3777 = vadd.f32 0.0, %v3776
  %3778 = vmatmul.f32.gmra.mxu0 %v3616
  %v3779 = vpop.f32.mrf.mxu0
  %v3780 = vadd.f32 0.0, %v3779
  %3781 = vmatmul.f32.gmra.mxu0 %v3619
  %v3782 = vpop.f32.mrf.mxu0
  %v3783 = vadd.f32 0.0, %v3782
  %3784 = vmatmul.f32.gmra.mxu0 %v3622
  %v3785 = vpop.f32.mrf.mxu0
  %v3786 = vadd.f32 0.0, %v3785
  %3787 = vmatmul.f32.gmra.mxu0 %v3625
  %v3788 = vpop.f32.mrf.mxu0
  %v3789 = vadd.f32 0.0, %v3788
  %3790 = vmatmul.f32.gmra.mxu0 %v3628
  %v3791 = vpop.f32.mrf.mxu0
  %v3792 = vadd.f32 0.0, %v3791
  %3793 = vmatmul.f32.gmra.mxu0 %v3631
  %v3794 = vpop.f32.mrf.mxu0
  %v3795 = vadd.f32 0.0, %v3794
  %3796 = vmatmul.f32.gmra.mxu0 %v3634
  %v3797 = vpop.f32.mrf.mxu0
  %v3798 = vadd.f32 0.0, %v3797
  %3799 = vmatmul.f32.gmra.mxu0 %v3637
  %v3800 = vpop.f32.mrf.mxu0
  %v3801 = vadd.f32 0.0, %v3800
  %3802 = vmatmul.f32.gmra.mxu0 %v3640
  %v3803 = vpop.f32.mrf.mxu0
  %v3804 = vadd.f32 0.0, %v3803
  %3805 = vmatmul.f32.gmra.mxu0 %v3643
  %v3806 = vpop.f32.mrf.mxu0
  %v3807 = vadd.f32 0.0, %v3806
  %3808 = vmatmul.f32.gmra.mxu0 %v3646
  %v3809 = vpop.f32.mrf.mxu0
  %v3810 = vadd.f32 0.0, %v3809
  %3811 = vmatmul.f32.gmra.mxu0 %v3649
  %v3812 = vpop.f32.mrf.mxu0
  %v3813 = vadd.f32 0.0, %v3812
  %3814 = vmatmul.f32.gmra.mxu0 %v3652
  %v3815 = vpop.f32.mrf.mxu0
  %v3816 = vadd.f32 0.0, %v3815
  %3817 = vmatmul.f32.gmra.mxu0 %v3655
  %v3818 = vpop.f32.mrf.mxu0
  %v3819 = vadd.f32 0.0, %v3818
  %3820 = vmatmul.f32.gmra.mxu0 %v3658
  %v3821 = vpop.f32.mrf.mxu0
  %v3822 = vadd.f32 0.0, %v3821
  %3823 = vmatmul.f32.gmra.mxu0 %v3661
  %v3824 = vpop.f32.mrf.mxu0
  %v3825 = vadd.f32 0.0, %v3824
  %3826 = vmatmul.f32.gmra.mxu0 %v3664
  %v3827 = vpop.f32.mrf.mxu0
  %v3828 = vadd.f32 0.0, %v3827
  %3829 = vmatmul.f32.gmra.mxu0 %v3667
  %v3830 = vpop.f32.mrf.mxu0
  %v3831 = vadd.f32 0.0, %v3830
  %3832 = vmatmul.f32.gmra.mxu0 %v3670
  %v3833 = vpop.f32.mrf.mxu0
  %v3834 = vadd.f32 0.0, %v3833
  %3835 = vmatmul.f32.gmra.mxu0 %v3673
  %v3836 = vpop.f32.mrf.mxu0
  %v3837 = vadd.f32 0.0, %v3836
  %3838 = vmatmul.f32.gmra.mxu0 %v3676
  %v3839 = vpop.f32.mrf.mxu0
  %v3840 = vadd.f32 0.0, %v3839
  %3841 = vmatmul.f32.gmra.mxu0 %v3679
  %v3842 = vpop.f32.mrf.mxu0
  %v3843 = vadd.f32 0.0, %v3842
  %3844 = vmatmul.f32.gmra.mxu0 %v3682
  %v3845 = vpop.f32.mrf.mxu0
  %v3846 = vadd.f32 0.0, %v3845
  %3847 = vmatmul.f32.gmra.mxu0 %v3685
  %v3848 = vpop.f32.mrf.mxu0
  %v3849 = vadd.f32 0.0, %v3848
  %3850 = vmatmul.f32.gmra.mxu0 %v3688
  %v3851 = vpop.f32.mrf.mxu0
  %v3852 = vadd.f32 0.0, %v3851
  %3853 = vmatmul.f32.gmra.mxu0 %v3691
  %v3854 = vpop.f32.mrf.mxu0
  %v3855 = vadd.f32 0.0, %v3854
  %3856 = vmatmul.f32.gmra.mxu0 %v3694
  %v3857 = vpop.f32.mrf.mxu0
  %v3858 = vadd.f32 0.0, %v3857
  %3859 = vmatmul.f32.gmra.mxu0 %v3697
  %v3860 = vpop.f32.mrf.mxu0
  %v3861 = vadd.f32 0.0, %v3860
  %3862 = vmatmul.f32.gmra.mxu0 %v3700
  %v3863 = vpop.f32.mrf.mxu0
  %v3864 = vadd.f32 0.0, %v3863
  %3865 = vdwg.mxu0
  %v3866 = vadd.f32 %v3506, %v3720
  %v3867 = vadd.f32 %v3507, %v3723
  %v3868 = vadd.f32 %v3508, %v3726
  %v3869 = vadd.f32 %v3509, %v3729
  %v3870 = vadd.f32 %v3510, %v3732
  %v3871 = vadd.f32 %v3511, %v3735
  %v3872 = vadd.f32 %v3512, %v3738
  %v3873 = vadd.f32 %v3513, %v3741
  %v3874 = vadd.f32 %v3514, %v3744
  %v3875 = vadd.f32 %v3515, %v3747
  %v3876 = vadd.f32 %v3516, %v3750
  %v3877 = vadd.f32 %v3517, %v3753
  %v3878 = vadd.f32 %v3518, %v3756
  %v3879 = vadd.f32 %v3519, %v3759
  %v3880 = vadd.f32 %v3520, %v3762
  %v3881 = vadd.f32 %v3521, %v3765
  %v3882 = vadd.f32 %v3522, %v3768
  %v3883 = vadd.f32 %v3523, %v3771
  %v3884 = vadd.f32 %v3524, %v3774
  %v3885 = vadd.f32 %v3525, %v3777
  %v3886 = vadd.f32 %v3526, %v3780
  %v3887 = vadd.f32 %v3527, %v3783
  %v3888 = vadd.f32 %v3528, %v3786
  %v3889 = vadd.f32 %v3529, %v3789
  %v3890 = vadd.f32 %v3530, %v3792
  %v3891 = vadd.f32 %v3531, %v3795
  %v3892 = vadd.f32 %v3532, %v3798
  %v3893 = vadd.f32 %v3533, %v3801
  %v3894 = vadd.f32 %v3534, %v3804
  %v3895 = vadd.f32 %v3535, %v3807
  %v3896 = vadd.f32 %v3536, %v3810
  %v3897 = vadd.f32 %v3537, %v3813
  %v3898 = vadd.f32 %v3538, %v3816
  %v3899 = vadd.f32 %v3539, %v3819
  %v3900 = vadd.f32 %v3540, %v3822
  %v3901 = vadd.f32 %v3541, %v3825
  %v3902 = vadd.f32 %v3542, %v3828
  %v3903 = vadd.f32 %v3543, %v3831
  %v3904 = vadd.f32 %v3544, %v3834
  %v3905 = vadd.f32 %v3545, %v3837
  %v3906 = vadd.f32 %v3546, %v3840
  %v3907 = vadd.f32 %v3547, %v3843
  %v3908 = vadd.f32 %v3548, %v3846
  %v3909 = vadd.f32 %v3549, %v3849
  %v3910 = vadd.f32 %v3550, %v3852
  %v3911 = vadd.f32 %v3551, %v3855
  %v3912 = vadd.f32 %v3552, %v3858
  %v3913 = vadd.f32 %v3553, %v3861
  %v3914 = vadd.f32 %v3554, %v3864
  %v3916 = vsel %vm1660, %v2143, 0
  %v3919 = vsel %vm1660, %v2173, 0
  %v3922 = vsel %vm1660, %v2203, 0
  %v3925 = vsel %vm1660, %v2233, 0
  %v3928 = vsel %vm1660, %v2263, 0
  %v3931 = vsel %vm1660, %v2293, 0
  %v3934 = vsel %vm1660, %v2323, 0
  %3936 = vmatpush.msra.mxu0 0.0
  %3937 = vmatpush.msra.mxu0 0.0
  %3938 = vmatpush.msra.mxu0 0.0
  %3939 = vmatpush.msra.mxu0 0.0
  %3940 = vmatpush.msra.mxu0 0.0
  %3941 = vmatpush.msra.mxu0 0.0
  %3942 = vmatpush.msra.mxu0 0.0
  %3943 = vmatpush.msra.mxu0 0.0
  %3944 = vmatpush.msra.mxu0 0.0
  %3945 = vmatpush.msra.mxu0 0.0
  %3946 = vmatpush.msra.mxu0 0.0
  %3947 = vmatpush.msra.mxu0 0.0
  %3948 = vmatpush.msra.mxu0 0.0
  %3949 = vmatpush.msra.mxu0 0.0
  %3950 = vmatpush.msra.mxu0 %v40
  %3951 = vmatpush.msra.mxu0 %v39
  %3952 = vmatmul.f32.gmra.mxu0 %v3199
  %v3953 = vpop.f32.mrf.mxu0
  %v3954 = vadd.f32 0.0, %v3953
  %3955 = vmatmul.f32.gmra.mxu0 %v3202
  %v3956 = vpop.f32.mrf.mxu0
  %v3957 = vadd.f32 0.0, %v3956
  %3958 = vmatmul.f32.gmra.mxu0 %v3205
  %v3959 = vpop.f32.mrf.mxu0
  %v3960 = vadd.f32 0.0, %v3959
  %3961 = vmatmul.f32.gmra.mxu0 %v3208
  %v3962 = vpop.f32.mrf.mxu0
  %v3963 = vadd.f32 0.0, %v3962
  %3964 = vmatmul.f32.gmra.mxu0 %v3211
  %v3965 = vpop.f32.mrf.mxu0
  %v3966 = vadd.f32 0.0, %v3965
  %3967 = vmatmul.f32.gmra.mxu0 %v3214
  %v3968 = vpop.f32.mrf.mxu0
  %v3969 = vadd.f32 0.0, %v3968
  %3970 = vmatmul.f32.gmra.mxu0 %v3916
  %v3971 = vpop.f32.mrf.mxu0
  %v3972 = vadd.f32 0.0, %v3971
  %3973 = vmatmul.f32.gmra.mxu0 %v3220
  %v3974 = vpop.f32.mrf.mxu0
  %v3975 = vadd.f32 0.0, %v3974
  %3976 = vmatmul.f32.gmra.mxu0 %v3223
  %v3977 = vpop.f32.mrf.mxu0
  %v3978 = vadd.f32 0.0, %v3977
  %3979 = vmatmul.f32.gmra.mxu0 %v3226
  %v3980 = vpop.f32.mrf.mxu0
  %v3981 = vadd.f32 0.0, %v3980
  %3982 = vmatmul.f32.gmra.mxu0 %v3229
  %v3983 = vpop.f32.mrf.mxu0
  %v3984 = vadd.f32 0.0, %v3983
  %3985 = vmatmul.f32.gmra.mxu0 %v3232
  %v3986 = vpop.f32.mrf.mxu0
  %v3987 = vadd.f32 0.0, %v3986
  %3988 = vmatmul.f32.gmra.mxu0 %v3235
  %v3989 = vpop.f32.mrf.mxu0
  %v3990 = vadd.f32 0.0, %v3989
  %3991 = vmatmul.f32.gmra.mxu0 %v3919
  %v3992 = vpop.f32.mrf.mxu0
  %v3993 = vadd.f32 0.0, %v3992
  %3994 = vmatmul.f32.gmra.mxu0 %v3241
  %v3995 = vpop.f32.mrf.mxu0
  %v3996 = vadd.f32 0.0, %v3995
  %3997 = vmatmul.f32.gmra.mxu0 %v3244
  %v3998 = vpop.f32.mrf.mxu0
  %v3999 = vadd.f32 0.0, %v3998
  %4000 = vmatmul.f32.gmra.mxu0 %v3247
  %v4001 = vpop.f32.mrf.mxu0
  %v4002 = vadd.f32 0.0, %v4001
  %4003 = vmatmul.f32.gmra.mxu0 %v3250
  %v4004 = vpop.f32.mrf.mxu0
  %v4005 = vadd.f32 0.0, %v4004
  %4006 = vmatmul.f32.gmra.mxu0 %v3253
  %v4007 = vpop.f32.mrf.mxu0
  %v4008 = vadd.f32 0.0, %v4007
  %4009 = vmatmul.f32.gmra.mxu0 %v3256
  %v4010 = vpop.f32.mrf.mxu0
  %v4011 = vadd.f32 0.0, %v4010
  %4012 = vmatmul.f32.gmra.mxu0 %v3922
  %v4013 = vpop.f32.mrf.mxu0
  %v4014 = vadd.f32 0.0, %v4013
  %4015 = vmatmul.f32.gmra.mxu0 %v3262
  %v4016 = vpop.f32.mrf.mxu0
  %v4017 = vadd.f32 0.0, %v4016
  %4018 = vmatmul.f32.gmra.mxu0 %v3265
  %v4019 = vpop.f32.mrf.mxu0
  %v4020 = vadd.f32 0.0, %v4019
  %4021 = vmatmul.f32.gmra.mxu0 %v3268
  %v4022 = vpop.f32.mrf.mxu0
  %v4023 = vadd.f32 0.0, %v4022
  %4024 = vmatmul.f32.gmra.mxu0 %v3271
  %v4025 = vpop.f32.mrf.mxu0
  %v4026 = vadd.f32 0.0, %v4025
  %4027 = vmatmul.f32.gmra.mxu0 %v3274
  %v4028 = vpop.f32.mrf.mxu0
  %v4029 = vadd.f32 0.0, %v4028
  %4030 = vmatmul.f32.gmra.mxu0 %v3277
  %v4031 = vpop.f32.mrf.mxu0
  %v4032 = vadd.f32 0.0, %v4031
  %4033 = vmatmul.f32.gmra.mxu0 %v3925
  %v4034 = vpop.f32.mrf.mxu0
  %v4035 = vadd.f32 0.0, %v4034
  %4036 = vmatmul.f32.gmra.mxu0 %v3283
  %v4037 = vpop.f32.mrf.mxu0
  %v4038 = vadd.f32 0.0, %v4037
  %4039 = vmatmul.f32.gmra.mxu0 %v3286
  %v4040 = vpop.f32.mrf.mxu0
  %v4041 = vadd.f32 0.0, %v4040
  %4042 = vmatmul.f32.gmra.mxu0 %v3289
  %v4043 = vpop.f32.mrf.mxu0
  %v4044 = vadd.f32 0.0, %v4043
  %4045 = vmatmul.f32.gmra.mxu0 %v3292
  %v4046 = vpop.f32.mrf.mxu0
  %v4047 = vadd.f32 0.0, %v4046
  %4048 = vmatmul.f32.gmra.mxu0 %v3295
  %v4049 = vpop.f32.mrf.mxu0
  %v4050 = vadd.f32 0.0, %v4049
  %4051 = vmatmul.f32.gmra.mxu0 %v3298
  %v4052 = vpop.f32.mrf.mxu0
  %v4053 = vadd.f32 0.0, %v4052
  %4054 = vmatmul.f32.gmra.mxu0 %v3928
  %v4055 = vpop.f32.mrf.mxu0
  %v4056 = vadd.f32 0.0, %v4055
  %4057 = vmatmul.f32.gmra.mxu0 %v3304
  %v4058 = vpop.f32.mrf.mxu0
  %v4059 = vadd.f32 0.0, %v4058
  %4060 = vmatmul.f32.gmra.mxu0 %v3307
  %v4061 = vpop.f32.mrf.mxu0
  %v4062 = vadd.f32 0.0, %v4061
  %4063 = vmatmul.f32.gmra.mxu0 %v3310
  %v4064 = vpop.f32.mrf.mxu0
  %v4065 = vadd.f32 0.0, %v4064
  %4066 = vmatmul.f32.gmra.mxu0 %v3313
  %v4067 = vpop.f32.mrf.mxu0
  %v4068 = vadd.f32 0.0, %v4067
  %4069 = vmatmul.f32.gmra.mxu0 %v3316
  %v4070 = vpop.f32.mrf.mxu0
  %v4071 = vadd.f32 0.0, %v4070
  %4072 = vmatmul.f32.gmra.mxu0 %v3319
  %v4073 = vpop.f32.mrf.mxu0
  %v4074 = vadd.f32 0.0, %v4073
  %4075 = vmatmul.f32.gmra.mxu0 %v3931
  %v4076 = vpop.f32.mrf.mxu0
  %v4077 = vadd.f32 0.0, %v4076
  %4078 = vmatmul.f32.gmra.mxu0 %v3325
  %v4079 = vpop.f32.mrf.mxu0
  %v4080 = vadd.f32 0.0, %v4079
  %4081 = vmatmul.f32.gmra.mxu0 %v3328
  %v4082 = vpop.f32.mrf.mxu0
  %v4083 = vadd.f32 0.0, %v4082
  %4084 = vmatmul.f32.gmra.mxu0 %v3331
  %v4085 = vpop.f32.mrf.mxu0
  %v4086 = vadd.f32 0.0, %v4085
  %4087 = vmatmul.f32.gmra.mxu0 %v3334
  %v4088 = vpop.f32.mrf.mxu0
  %v4089 = vadd.f32 0.0, %v4088
  %4090 = vmatmul.f32.gmra.mxu0 %v3337
  %v4091 = vpop.f32.mrf.mxu0
  %v4092 = vadd.f32 0.0, %v4091
  %4093 = vmatmul.f32.gmra.mxu0 %v3340
  %v4094 = vpop.f32.mrf.mxu0
  %v4095 = vadd.f32 0.0, %v4094
  %4096 = vmatmul.f32.gmra.mxu0 %v3934
  %v4097 = vpop.f32.mrf.mxu0
  %v4098 = vadd.f32 0.0, %v4097
  %4099 = vdwg.mxu0
  %v4100 = vadd.f32 %v3866, %v3954
  %v4101 = vadd.f32 %v3867, %v3957
  %v4102 = vadd.f32 %v3868, %v3960
  %v4103 = vadd.f32 %v3869, %v3963
  %v4104 = vadd.f32 %v3870, %v3966
  %v4105 = vadd.f32 %v3871, %v3969
  %v4106 = vadd.f32 %v3872, %v3972
  %v4107 = vadd.f32 %v3873, %v3975
  %v4108 = vadd.f32 %v3874, %v3978
  %v4109 = vadd.f32 %v3875, %v3981
  %v4110 = vadd.f32 %v3876, %v3984
  %v4111 = vadd.f32 %v3877, %v3987
  %v4112 = vadd.f32 %v3878, %v3990
  %v4113 = vadd.f32 %v3879, %v3993
  %v4114 = vadd.f32 %v3880, %v3996
  %v4115 = vadd.f32 %v3881, %v3999
  %v4116 = vadd.f32 %v3882, %v4002
  %v4117 = vadd.f32 %v3883, %v4005
  %v4118 = vadd.f32 %v3884, %v4008
  %v4119 = vadd.f32 %v3885, %v4011
  %v4120 = vadd.f32 %v3886, %v4014
  %v4121 = vadd.f32 %v3887, %v4017
  %v4122 = vadd.f32 %v3888, %v4020
  %v4123 = vadd.f32 %v3889, %v4023
  %v4124 = vadd.f32 %v3890, %v4026
  %v4125 = vadd.f32 %v3891, %v4029
  %v4126 = vadd.f32 %v3892, %v4032
  %v4127 = vadd.f32 %v3893, %v4035
  %v4128 = vadd.f32 %v3894, %v4038
  %v4129 = vadd.f32 %v3895, %v4041
  %v4130 = vadd.f32 %v3896, %v4044
  %v4131 = vadd.f32 %v3897, %v4047
  %v4132 = vadd.f32 %v3898, %v4050
  %v4133 = vadd.f32 %v3899, %v4053
  %v4134 = vadd.f32 %v3900, %v4056
  %v4135 = vadd.f32 %v3901, %v4059
  %v4136 = vadd.f32 %v3902, %v4062
  %v4137 = vadd.f32 %v3903, %v4065
  %v4138 = vadd.f32 %v3904, %v4068
  %v4139 = vadd.f32 %v3905, %v4071
  %v4140 = vadd.f32 %v3906, %v4074
  %v4141 = vadd.f32 %v3907, %v4077
  %v4142 = vadd.f32 %v3908, %v4080
  %v4143 = vadd.f32 %v3909, %v4083
  %v4144 = vadd.f32 %v3910, %v4086
  %v4145 = vadd.f32 %v3911, %v4089
  %v4146 = vadd.f32 %v3912, %v4092
  %v4147 = vadd.f32 %v3913, %v4095
  %v4148 = vadd.f32 %v3914, %v4098
  %v4150 = vsel %vm1660, %v2324, 0
  %v4153 = vsel %vm1660, %v2326, 0
  %v4156 = vsel %vm1660, %v2328, 0
  %v4159 = vsel %vm1660, %v2330, 0
  %v4162 = vsel %vm1660, %v2332, 0
  %v4165 = vsel %vm1660, %v2334, 0
  %v4168 = vsel %vm1660, %v2336, 0
  %4170 = vmatpush.msra.mxu0 0.0
  %4171 = vmatpush.msra.mxu0 0.0
  %4172 = vmatpush.msra.mxu0 0.0
  %4173 = vmatpush.msra.mxu0 0.0
  %4174 = vmatpush.msra.mxu0 0.0
  %4175 = vmatpush.msra.mxu0 0.0
  %4176 = vmatpush.msra.mxu0 0.0
  %4177 = vmatpush.msra.mxu0 0.0
  %4178 = vmatpush.msra.mxu0 0.0
  %4179 = vmatpush.msra.mxu0 0.0
  %4180 = vmatpush.msra.mxu0 0.0
  %4181 = vmatpush.msra.mxu0 0.0
  %4182 = vmatpush.msra.mxu0 0.0
  %4183 = vmatpush.msra.mxu0 0.0
  %4184 = vmatpush.msra.mxu0 %v42
  %4185 = vmatpush.msra.mxu0 %v41
  %4186 = vmatmul.f32.gmra.mxu0 %v2672
  %v4187 = vpop.f32.mrf.mxu0
  %v4188 = vadd.f32 0.0, %v4187
  %4189 = vmatmul.f32.gmra.mxu0 %v2675
  %v4190 = vpop.f32.mrf.mxu0
  %v4191 = vadd.f32 0.0, %v4190
  %4192 = vmatmul.f32.gmra.mxu0 %v2678
  %v4193 = vpop.f32.mrf.mxu0
  %v4194 = vadd.f32 0.0, %v4193
  %4195 = vmatmul.f32.gmra.mxu0 %v2681
  %v4196 = vpop.f32.mrf.mxu0
  %v4197 = vadd.f32 0.0, %v4196
  %4198 = vmatmul.f32.gmra.mxu0 %v2684
  %v4199 = vpop.f32.mrf.mxu0
  %v4200 = vadd.f32 0.0, %v4199
  %4201 = vmatmul.f32.gmra.mxu0 %v2687
  %v4202 = vpop.f32.mrf.mxu0
  %v4203 = vadd.f32 0.0, %v4202
  %4204 = vmatmul.f32.gmra.mxu0 %v2690
  %v4205 = vpop.f32.mrf.mxu0
  %v4206 = vadd.f32 0.0, %v4205
  %4207 = vmatmul.f32.gmra.mxu0 %v2693
  %v4208 = vpop.f32.mrf.mxu0
  %v4209 = vadd.f32 0.0, %v4208
  %4210 = vmatmul.f32.gmra.mxu0 %v2696
  %v4211 = vpop.f32.mrf.mxu0
  %v4212 = vadd.f32 0.0, %v4211
  %4213 = vmatmul.f32.gmra.mxu0 %v2699
  %v4214 = vpop.f32.mrf.mxu0
  %v4215 = vadd.f32 0.0, %v4214
  %4216 = vmatmul.f32.gmra.mxu0 %v2702
  %v4217 = vpop.f32.mrf.mxu0
  %v4218 = vadd.f32 0.0, %v4217
  %4219 = vmatmul.f32.gmra.mxu0 %v2705
  %v4220 = vpop.f32.mrf.mxu0
  %v4221 = vadd.f32 0.0, %v4220
  %4222 = vmatmul.f32.gmra.mxu0 %v2708
  %v4223 = vpop.f32.mrf.mxu0
  %v4224 = vadd.f32 0.0, %v4223
  %4225 = vmatmul.f32.gmra.mxu0 %v2711
  %v4226 = vpop.f32.mrf.mxu0
  %v4227 = vadd.f32 0.0, %v4226
  %4228 = vmatmul.f32.gmra.mxu0 %v2714
  %v4229 = vpop.f32.mrf.mxu0
  %v4230 = vadd.f32 0.0, %v4229
  %4231 = vmatmul.f32.gmra.mxu0 %v2717
  %v4232 = vpop.f32.mrf.mxu0
  %v4233 = vadd.f32 0.0, %v4232
  %4234 = vmatmul.f32.gmra.mxu0 %v2720
  %v4235 = vpop.f32.mrf.mxu0
  %v4236 = vadd.f32 0.0, %v4235
  %4237 = vmatmul.f32.gmra.mxu0 %v2723
  %v4238 = vpop.f32.mrf.mxu0
  %v4239 = vadd.f32 0.0, %v4238
  %4240 = vmatmul.f32.gmra.mxu0 %v2726
  %v4241 = vpop.f32.mrf.mxu0
  %v4242 = vadd.f32 0.0, %v4241
  %4243 = vmatmul.f32.gmra.mxu0 %v2729
  %v4244 = vpop.f32.mrf.mxu0
  %v4245 = vadd.f32 0.0, %v4244
  %4246 = vmatmul.f32.gmra.mxu0 %v2732
  %v4247 = vpop.f32.mrf.mxu0
  %v4248 = vadd.f32 0.0, %v4247
  %4249 = vmatmul.f32.gmra.mxu0 %v2735
  %v4250 = vpop.f32.mrf.mxu0
  %v4251 = vadd.f32 0.0, %v4250
  %4252 = vmatmul.f32.gmra.mxu0 %v2738
  %v4253 = vpop.f32.mrf.mxu0
  %v4254 = vadd.f32 0.0, %v4253
  %4255 = vmatmul.f32.gmra.mxu0 %v2741
  %v4256 = vpop.f32.mrf.mxu0
  %v4257 = vadd.f32 0.0, %v4256
  %4258 = vmatmul.f32.gmra.mxu0 %v2744
  %v4259 = vpop.f32.mrf.mxu0
  %v4260 = vadd.f32 0.0, %v4259
  %4261 = vmatmul.f32.gmra.mxu0 %v2747
  %v4262 = vpop.f32.mrf.mxu0
  %v4263 = vadd.f32 0.0, %v4262
  %4264 = vmatmul.f32.gmra.mxu0 %v2750
  %v4265 = vpop.f32.mrf.mxu0
  %v4266 = vadd.f32 0.0, %v4265
  %4267 = vmatmul.f32.gmra.mxu0 %v2753
  %v4268 = vpop.f32.mrf.mxu0
  %v4269 = vadd.f32 0.0, %v4268
  %4270 = vmatmul.f32.gmra.mxu0 %v2756
  %v4271 = vpop.f32.mrf.mxu0
  %v4272 = vadd.f32 0.0, %v4271
  %4273 = vmatmul.f32.gmra.mxu0 %v2759
  %v4274 = vpop.f32.mrf.mxu0
  %v4275 = vadd.f32 0.0, %v4274
  %4276 = vmatmul.f32.gmra.mxu0 %v2762
  %v4277 = vpop.f32.mrf.mxu0
  %v4278 = vadd.f32 0.0, %v4277
  %4279 = vmatmul.f32.gmra.mxu0 %v2765
  %v4280 = vpop.f32.mrf.mxu0
  %v4281 = vadd.f32 0.0, %v4280
  %4282 = vmatmul.f32.gmra.mxu0 %v2768
  %v4283 = vpop.f32.mrf.mxu0
  %v4284 = vadd.f32 0.0, %v4283
  %4285 = vmatmul.f32.gmra.mxu0 %v2771
  %v4286 = vpop.f32.mrf.mxu0
  %v4287 = vadd.f32 0.0, %v4286
  %4288 = vmatmul.f32.gmra.mxu0 %v2774
  %v4289 = vpop.f32.mrf.mxu0
  %v4290 = vadd.f32 0.0, %v4289
  %4291 = vmatmul.f32.gmra.mxu0 %v2777
  %v4292 = vpop.f32.mrf.mxu0
  %v4293 = vadd.f32 0.0, %v4292
  %4294 = vmatmul.f32.gmra.mxu0 %v2780
  %v4295 = vpop.f32.mrf.mxu0
  %v4296 = vadd.f32 0.0, %v4295
  %4297 = vmatmul.f32.gmra.mxu0 %v2783
  %v4298 = vpop.f32.mrf.mxu0
  %v4299 = vadd.f32 0.0, %v4298
  %4300 = vmatmul.f32.gmra.mxu0 %v2786
  %v4301 = vpop.f32.mrf.mxu0
  %v4302 = vadd.f32 0.0, %v4301
  %4303 = vmatmul.f32.gmra.mxu0 %v2789
  %v4304 = vpop.f32.mrf.mxu0
  %v4305 = vadd.f32 0.0, %v4304
  %4306 = vmatmul.f32.gmra.mxu0 %v2792
  %v4307 = vpop.f32.mrf.mxu0
  %v4308 = vadd.f32 0.0, %v4307
  %4309 = vmatmul.f32.gmra.mxu0 %v2795
  %v4310 = vpop.f32.mrf.mxu0
  %v4311 = vadd.f32 0.0, %v4310
  %4312 = vmatmul.f32.gmra.mxu0 %v4150
  %v4313 = vpop.f32.mrf.mxu0
  %v4314 = vadd.f32 0.0, %v4313
  %4315 = vmatmul.f32.gmra.mxu0 %v4153
  %v4316 = vpop.f32.mrf.mxu0
  %v4317 = vadd.f32 0.0, %v4316
  %4318 = vmatmul.f32.gmra.mxu0 %v4156
  %v4319 = vpop.f32.mrf.mxu0
  %v4320 = vadd.f32 0.0, %v4319
  %4321 = vmatmul.f32.gmra.mxu0 %v4159
  %v4322 = vpop.f32.mrf.mxu0
  %v4323 = vadd.f32 0.0, %v4322
  %4324 = vmatmul.f32.gmra.mxu0 %v4162
  %v4325 = vpop.f32.mrf.mxu0
  %v4326 = vadd.f32 0.0, %v4325
  %4327 = vmatmul.f32.gmra.mxu0 %v4165
  %v4328 = vpop.f32.mrf.mxu0
  %v4329 = vadd.f32 0.0, %v4328
  %4330 = vmatmul.f32.gmra.mxu0 %v4168
  %v4331 = vpop.f32.mrf.mxu0
  %v4332 = vadd.f32 0.0, %v4331
  %4333 = vdwg.mxu0
  %v4334 = vadd.f32 %v4100, %v4188
  %v4335 = vadd.f32 %v4101, %v4191
  %v4336 = vadd.f32 %v4102, %v4194
  %v4337 = vadd.f32 %v4103, %v4197
  %v4338 = vadd.f32 %v4104, %v4200
  %v4339 = vadd.f32 %v4105, %v4203
  %v4340 = vadd.f32 %v4106, %v4206
  %v4341 = vadd.f32 %v4107, %v4209
  %v4342 = vadd.f32 %v4108, %v4212
  %v4343 = vadd.f32 %v4109, %v4215
  %v4344 = vadd.f32 %v4110, %v4218
  %v4345 = vadd.f32 %v4111, %v4221
  %v4346 = vadd.f32 %v4112, %v4224
  %v4347 = vadd.f32 %v4113, %v4227
  %v4348 = vadd.f32 %v4114, %v4230
  %v4349 = vadd.f32 %v4115, %v4233
  %v4350 = vadd.f32 %v4116, %v4236
  %v4351 = vadd.f32 %v4117, %v4239
  %v4352 = vadd.f32 %v4118, %v4242
  %v4353 = vadd.f32 %v4119, %v4245
  %v4354 = vadd.f32 %v4120, %v4248
  %v4355 = vadd.f32 %v4121, %v4251
  %v4356 = vadd.f32 %v4122, %v4254
  %v4357 = vadd.f32 %v4123, %v4257
  %v4358 = vadd.f32 %v4124, %v4260
  %v4359 = vadd.f32 %v4125, %v4263
  %v4360 = vadd.f32 %v4126, %v4266
  %v4361 = vadd.f32 %v4127, %v4269
  %v4362 = vadd.f32 %v4128, %v4272
  %v4363 = vadd.f32 %v4129, %v4275
  %v4364 = vadd.f32 %v4130, %v4278
  %v4365 = vadd.f32 %v4131, %v4281
  %v4366 = vadd.f32 %v4132, %v4284
  %v4367 = vadd.f32 %v4133, %v4287
  %v4368 = vadd.f32 %v4134, %v4290
  %v4369 = vadd.f32 %v4135, %v4293
  %v4370 = vadd.f32 %v4136, %v4296
  %v4371 = vadd.f32 %v4137, %v4299
  %v4372 = vadd.f32 %v4138, %v4302
  %v4373 = vadd.f32 %v4139, %v4305
  %v4374 = vadd.f32 %v4140, %v4308
  %v4375 = vadd.f32 %v4141, %v4311
  %v4376 = vadd.f32 %v4142, %v4314
  %v4377 = vadd.f32 %v4143, %v4317
  %v4378 = vadd.f32 %v4144, %v4320
  %v4379 = vadd.f32 %v4145, %v4323
  %v4380 = vadd.f32 %v4146, %v4326
  %v4381 = vadd.f32 %v4147, %v4329
  %v4382 = vadd.f32 %v4148, %v4332
  %v4384 = vsel %vm1660, %v2325, 0
  %v4387 = vsel %vm1660, %v2327, 0
  %v4390 = vsel %vm1660, %v2329, 0
  %v4393 = vsel %vm1660, %v2331, 0
  %v4396 = vsel %vm1660, %v2333, 0
  %v4399 = vsel %vm1660, %v2335, 0
  %v4402 = vsel %vm1660, %v2337, 0
  %4404 = vmatpush.msra.mxu0 0.0
  %4405 = vmatpush.msra.mxu0 0.0
  %4406 = vmatpush.msra.mxu0 0.0
  %4407 = vmatpush.msra.mxu0 0.0
  %4408 = vmatpush.msra.mxu0 0.0
  %4409 = vmatpush.msra.mxu0 0.0
  %4410 = vmatpush.msra.mxu0 0.0
  %4411 = vmatpush.msra.mxu0 0.0
  %4412 = vmatpush.msra.mxu0 0.0
  %4413 = vmatpush.msra.mxu0 0.0
  %4414 = vmatpush.msra.mxu0 0.0
  %4415 = vmatpush.msra.mxu0 0.0
  %4416 = vmatpush.msra.mxu0 0.0
  %4417 = vmatpush.msra.mxu0 0.0
  %4418 = vmatpush.msra.mxu0 %v44
  %4419 = vmatpush.msra.mxu0 %v43
  %4420 = vmatmul.f32.gmra.mxu0 %v2361
  %v4421 = vpop.f32.mrf.mxu0
  %v4422 = vadd.f32 0.0, %v4421
  %4423 = vmatmul.f32.gmra.mxu0 %v2364
  %v4424 = vpop.f32.mrf.mxu0
  %v4425 = vadd.f32 0.0, %v4424
  %4426 = vmatmul.f32.gmra.mxu0 %v2367
  %v4427 = vpop.f32.mrf.mxu0
  %v4428 = vadd.f32 0.0, %v4427
  %4429 = vmatmul.f32.gmra.mxu0 %v2370
  %v4430 = vpop.f32.mrf.mxu0
  %v4431 = vadd.f32 0.0, %v4430
  %4432 = vmatmul.f32.gmra.mxu0 %v2373
  %v4433 = vpop.f32.mrf.mxu0
  %v4434 = vadd.f32 0.0, %v4433
  %4435 = vmatmul.f32.gmra.mxu0 %v2376
  %v4436 = vpop.f32.mrf.mxu0
  %v4437 = vadd.f32 0.0, %v4436
  %4438 = vmatmul.f32.gmra.mxu0 %v2379
  %v4439 = vpop.f32.mrf.mxu0
  %v4440 = vadd.f32 0.0, %v4439
  %4441 = vmatmul.f32.gmra.mxu0 %v2382
  %v4442 = vpop.f32.mrf.mxu0
  %v4443 = vadd.f32 0.0, %v4442
  %4444 = vmatmul.f32.gmra.mxu0 %v2385
  %v4445 = vpop.f32.mrf.mxu0
  %v4446 = vadd.f32 0.0, %v4445
  %4447 = vmatmul.f32.gmra.mxu0 %v2388
  %v4448 = vpop.f32.mrf.mxu0
  %v4449 = vadd.f32 0.0, %v4448
  %4450 = vmatmul.f32.gmra.mxu0 %v2391
  %v4451 = vpop.f32.mrf.mxu0
  %v4452 = vadd.f32 0.0, %v4451
  %4453 = vmatmul.f32.gmra.mxu0 %v2394
  %v4454 = vpop.f32.mrf.mxu0
  %v4455 = vadd.f32 0.0, %v4454
  %4456 = vmatmul.f32.gmra.mxu0 %v2397
  %v4457 = vpop.f32.mrf.mxu0
  %v4458 = vadd.f32 0.0, %v4457
  %4459 = vmatmul.f32.gmra.mxu0 %v2400
  %v4460 = vpop.f32.mrf.mxu0
  %v4461 = vadd.f32 0.0, %v4460
  %4462 = vmatmul.f32.gmra.mxu0 %v2403
  %v4463 = vpop.f32.mrf.mxu0
  %v4464 = vadd.f32 0.0, %v4463
  %4465 = vmatmul.f32.gmra.mxu0 %v2406
  %v4466 = vpop.f32.mrf.mxu0
  %v4467 = vadd.f32 0.0, %v4466
  %4468 = vmatmul.f32.gmra.mxu0 %v2409
  %v4469 = vpop.f32.mrf.mxu0
  %v4470 = vadd.f32 0.0, %v4469
  %4471 = vmatmul.f32.gmra.mxu0 %v2412
  %v4472 = vpop.f32.mrf.mxu0
  %v4473 = vadd.f32 0.0, %v4472
  %4474 = vmatmul.f32.gmra.mxu0 %v2415
  %v4475 = vpop.f32.mrf.mxu0
  %v4476 = vadd.f32 0.0, %v4475
  %4477 = vmatmul.f32.gmra.mxu0 %v2418
  %v4478 = vpop.f32.mrf.mxu0
  %v4479 = vadd.f32 0.0, %v4478
  %4480 = vmatmul.f32.gmra.mxu0 %v2421
  %v4481 = vpop.f32.mrf.mxu0
  %v4482 = vadd.f32 0.0, %v4481
  %4483 = vmatmul.f32.gmra.mxu0 %v2424
  %v4484 = vpop.f32.mrf.mxu0
  %v4485 = vadd.f32 0.0, %v4484
  %4486 = vmatmul.f32.gmra.mxu0 %v2427
  %v4487 = vpop.f32.mrf.mxu0
  %v4488 = vadd.f32 0.0, %v4487
  %4489 = vmatmul.f32.gmra.mxu0 %v2430
  %v4490 = vpop.f32.mrf.mxu0
  %v4491 = vadd.f32 0.0, %v4490
  %4492 = vmatmul.f32.gmra.mxu0 %v2433
  %v4493 = vpop.f32.mrf.mxu0
  %v4494 = vadd.f32 0.0, %v4493
  %4495 = vmatmul.f32.gmra.mxu0 %v2436
  %v4496 = vpop.f32.mrf.mxu0
  %v4497 = vadd.f32 0.0, %v4496
  %4498 = vmatmul.f32.gmra.mxu0 %v2439
  %v4499 = vpop.f32.mrf.mxu0
  %v4500 = vadd.f32 0.0, %v4499
  %4501 = vmatmul.f32.gmra.mxu0 %v2442
  %v4502 = vpop.f32.mrf.mxu0
  %v4503 = vadd.f32 0.0, %v4502
  %4504 = vmatmul.f32.gmra.mxu0 %v2445
  %v4505 = vpop.f32.mrf.mxu0
  %v4506 = vadd.f32 0.0, %v4505
  %4507 = vmatmul.f32.gmra.mxu0 %v2448
  %v4508 = vpop.f32.mrf.mxu0
  %v4509 = vadd.f32 0.0, %v4508
  %4510 = vmatmul.f32.gmra.mxu0 %v2451
  %v4511 = vpop.f32.mrf.mxu0
  %v4512 = vadd.f32 0.0, %v4511
  %4513 = vmatmul.f32.gmra.mxu0 %v2454
  %v4514 = vpop.f32.mrf.mxu0
  %v4515 = vadd.f32 0.0, %v4514
  %4516 = vmatmul.f32.gmra.mxu0 %v2457
  %v4517 = vpop.f32.mrf.mxu0
  %v4518 = vadd.f32 0.0, %v4517
  %4519 = vmatmul.f32.gmra.mxu0 %v2460
  %v4520 = vpop.f32.mrf.mxu0
  %v4521 = vadd.f32 0.0, %v4520
  %4522 = vmatmul.f32.gmra.mxu0 %v2463
  %v4523 = vpop.f32.mrf.mxu0
  %v4524 = vadd.f32 0.0, %v4523
  %4525 = vmatmul.f32.gmra.mxu0 %v2466
  %v4526 = vpop.f32.mrf.mxu0
  %v4527 = vadd.f32 0.0, %v4526
  %4528 = vmatmul.f32.gmra.mxu0 %v2469
  %v4529 = vpop.f32.mrf.mxu0
  %v4530 = vadd.f32 0.0, %v4529
  %4531 = vmatmul.f32.gmra.mxu0 %v2472
  %v4532 = vpop.f32.mrf.mxu0
  %v4533 = vadd.f32 0.0, %v4532
  %4534 = vmatmul.f32.gmra.mxu0 %v2475
  %v4535 = vpop.f32.mrf.mxu0
  %v4536 = vadd.f32 0.0, %v4535
  %4537 = vmatmul.f32.gmra.mxu0 %v2478
  %v4538 = vpop.f32.mrf.mxu0
  %v4539 = vadd.f32 0.0, %v4538
  %4540 = vmatmul.f32.gmra.mxu0 %v2481
  %v4541 = vpop.f32.mrf.mxu0
  %v4542 = vadd.f32 0.0, %v4541
  %4543 = vmatmul.f32.gmra.mxu0 %v2484
  %v4544 = vpop.f32.mrf.mxu0
  %v4545 = vadd.f32 0.0, %v4544
  %4546 = vmatmul.f32.gmra.mxu0 %v4384
  %v4547 = vpop.f32.mrf.mxu0
  %v4548 = vadd.f32 0.0, %v4547
  %4549 = vmatmul.f32.gmra.mxu0 %v4387
  %v4550 = vpop.f32.mrf.mxu0
  %v4551 = vadd.f32 0.0, %v4550
  %4552 = vmatmul.f32.gmra.mxu0 %v4390
  %v4553 = vpop.f32.mrf.mxu0
  %v4554 = vadd.f32 0.0, %v4553
  %4555 = vmatmul.f32.gmra.mxu0 %v4393
  %v4556 = vpop.f32.mrf.mxu0
  %v4557 = vadd.f32 0.0, %v4556
  %4558 = vmatmul.f32.gmra.mxu0 %v4396
  %v4559 = vpop.f32.mrf.mxu0
  %v4560 = vadd.f32 0.0, %v4559
  %4561 = vmatmul.f32.gmra.mxu0 %v4399
  %v4562 = vpop.f32.mrf.mxu0
  %v4563 = vadd.f32 0.0, %v4562
  %4564 = vmatmul.f32.gmra.mxu0 %v4402
  %v4565 = vpop.f32.mrf.mxu0
  %v4566 = vadd.f32 0.0, %v4565
  %4567 = vdwg.mxu0
  %v4568 = vadd.f32 %v4334, %v4422
  %v4569 = vadd.f32 %v4335, %v4425
  %v4570 = vadd.f32 %v4336, %v4428
  %v4571 = vadd.f32 %v4337, %v4431
  %v4572 = vadd.f32 %v4338, %v4434
  %v4573 = vadd.f32 %v4339, %v4437
  %v4574 = vadd.f32 %v4340, %v4440
  %v4575 = vadd.f32 %v4341, %v4443
  %v4576 = vadd.f32 %v4342, %v4446
  %v4577 = vadd.f32 %v4343, %v4449
  %v4578 = vadd.f32 %v4344, %v4452
  %v4579 = vadd.f32 %v4345, %v4455
  %v4580 = vadd.f32 %v4346, %v4458
  %v4581 = vadd.f32 %v4347, %v4461
  %v4582 = vadd.f32 %v4348, %v4464
  %v4583 = vadd.f32 %v4349, %v4467
  %v4584 = vadd.f32 %v4350, %v4470
  %v4585 = vadd.f32 %v4351, %v4473
  %v4586 = vadd.f32 %v4352, %v4476
  %v4587 = vadd.f32 %v4353, %v4479
  %v4588 = vadd.f32 %v4354, %v4482
  %v4589 = vadd.f32 %v4355, %v4485
  %v4590 = vadd.f32 %v4356, %v4488
  %v4591 = vadd.f32 %v4357, %v4491
  %v4592 = vadd.f32 %v4358, %v4494
  %v4593 = vadd.f32 %v4359, %v4497
  %v4594 = vadd.f32 %v4360, %v4500
  %v4595 = vadd.f32 %v4361, %v4503
  %v4596 = vadd.f32 %v4362, %v4506
  %v4597 = vadd.f32 %v4363, %v4509
  %v4598 = vadd.f32 %v4364, %v4512
  %v4599 = vadd.f32 %v4365, %v4515
  %v4600 = vadd.f32 %v4366, %v4518
  %v4601 = vadd.f32 %v4367, %v4521
  %v4602 = vadd.f32 %v4368, %v4524
  %v4603 = vadd.f32 %v4369, %v4527
  %v4604 = vadd.f32 %v4370, %v4530
  %v4605 = vadd.f32 %v4371, %v4533
  %v4606 = vadd.f32 %v4372, %v4536
  %v4607 = vadd.f32 %v4373, %v4539
  %v4608 = vadd.f32 %v4374, %v4542
  %v4609 = vadd.f32 %v4375, %v4545
  %v4610 = vadd.f32 %v4376, %v4548
  %v4611 = vadd.f32 %v4377, %v4551
  %v4612 = vadd.f32 %v4378, %v4554
  %v4613 = vadd.f32 %v4379, %v4557
  %v4614 = vadd.f32 %v4380, %v4560
  %v4615 = vadd.f32 %v4381, %v4563
  %v4616 = vadd.f32 %v4382, %v4566
  %v4618 = vsel %vm1660, %v2338, 0
  %4620 = vmatpush.msra.mxu0 0.0
  %4621 = vmatpush.msra.mxu0 0.0
  %4622 = vmatpush.msra.mxu0 0.0
  %4623 = vmatpush.msra.mxu0 0.0
  %4624 = vmatpush.msra.mxu0 0.0
  %4625 = vmatpush.msra.mxu0 0.0
  %4626 = vmatpush.msra.mxu0 0.0
  %4627 = vmatpush.msra.mxu0 0.0
  %4628 = vmatpush.msra.mxu0 0.0
  %4629 = vmatpush.msra.mxu0 0.0
  %4630 = vmatpush.msra.mxu0 0.0
  %4631 = vmatpush.msra.mxu0 0.0
  %4632 = vmatpush.msra.mxu0 0.0
  %4633 = vmatpush.msra.mxu0 0.0
  %4634 = vmatpush.msra.mxu0 %v46
  %4635 = vmatpush.msra.mxu0 %v45
  %4636 = vmatmul.f32.gmra.mxu0 %v2675
  %v4637 = vpop.f32.mrf.mxu0
  %v4638 = vadd.f32 0.0, %v4637
  %4639 = vmatmul.f32.gmra.mxu0 %v2678
  %v4640 = vpop.f32.mrf.mxu0
  %v4641 = vadd.f32 0.0, %v4640
  %4642 = vmatmul.f32.gmra.mxu0 %v2681
  %v4643 = vpop.f32.mrf.mxu0
  %v4644 = vadd.f32 0.0, %v4643
  %4645 = vmatmul.f32.gmra.mxu0 %v2684
  %v4646 = vpop.f32.mrf.mxu0
  %v4647 = vadd.f32 0.0, %v4646
  %4648 = vmatmul.f32.gmra.mxu0 %v2687
  %v4649 = vpop.f32.mrf.mxu0
  %v4650 = vadd.f32 0.0, %v4649
  %4651 = vmatmul.f32.gmra.mxu0 %v2690
  %v4652 = vpop.f32.mrf.mxu0
  %v4653 = vadd.f32 0.0, %v4652
  %4654 = vmatmul.f32.gmra.mxu0 %v2965
  %v4655 = vpop.f32.mrf.mxu0
  %v4656 = vadd.f32 0.0, %v4655
  %4657 = vmatmul.f32.gmra.mxu0 %v2696
  %v4658 = vpop.f32.mrf.mxu0
  %v4659 = vadd.f32 0.0, %v4658
  %4660 = vmatmul.f32.gmra.mxu0 %v2699
  %v4661 = vpop.f32.mrf.mxu0
  %v4662 = vadd.f32 0.0, %v4661
  %4663 = vmatmul.f32.gmra.mxu0 %v2702
  %v4664 = vpop.f32.mrf.mxu0
  %v4665 = vadd.f32 0.0, %v4664
  %4666 = vmatmul.f32.gmra.mxu0 %v2705
  %v4667 = vpop.f32.mrf.mxu0
  %v4668 = vadd.f32 0.0, %v4667
  %4669 = vmatmul.f32.gmra.mxu0 %v2708
  %v4670 = vpop.f32.mrf.mxu0
  %v4671 = vadd.f32 0.0, %v4670
  %4672 = vmatmul.f32.gmra.mxu0 %v2711
  %v4673 = vpop.f32.mrf.mxu0
  %v4674 = vadd.f32 0.0, %v4673
  %4675 = vmatmul.f32.gmra.mxu0 %v2968
  %v4676 = vpop.f32.mrf.mxu0
  %v4677 = vadd.f32 0.0, %v4676
  %4678 = vmatmul.f32.gmra.mxu0 %v2717
  %v4679 = vpop.f32.mrf.mxu0
  %v4680 = vadd.f32 0.0, %v4679
  %4681 = vmatmul.f32.gmra.mxu0 %v2720
  %v4682 = vpop.f32.mrf.mxu0
  %v4683 = vadd.f32 0.0, %v4682
  %4684 = vmatmul.f32.gmra.mxu0 %v2723
  %v4685 = vpop.f32.mrf.mxu0
  %v4686 = vadd.f32 0.0, %v4685
  %4687 = vmatmul.f32.gmra.mxu0 %v2726
  %v4688 = vpop.f32.mrf.mxu0
  %v4689 = vadd.f32 0.0, %v4688
  %4690 = vmatmul.f32.gmra.mxu0 %v2729
  %v4691 = vpop.f32.mrf.mxu0
  %v4692 = vadd.f32 0.0, %v4691
  %4693 = vmatmul.f32.gmra.mxu0 %v2732
  %v4694 = vpop.f32.mrf.mxu0
  %v4695 = vadd.f32 0.0, %v4694
  %4696 = vmatmul.f32.gmra.mxu0 %v2971
  %v4697 = vpop.f32.mrf.mxu0
  %v4698 = vadd.f32 0.0, %v4697
  %4699 = vmatmul.f32.gmra.mxu0 %v2738
  %v4700 = vpop.f32.mrf.mxu0
  %v4701 = vadd.f32 0.0, %v4700
  %4702 = vmatmul.f32.gmra.mxu0 %v2741
  %v4703 = vpop.f32.mrf.mxu0
  %v4704 = vadd.f32 0.0, %v4703
  %4705 = vmatmul.f32.gmra.mxu0 %v2744
  %v4706 = vpop.f32.mrf.mxu0
  %v4707 = vadd.f32 0.0, %v4706
  %4708 = vmatmul.f32.gmra.mxu0 %v2747
  %v4709 = vpop.f32.mrf.mxu0
  %v4710 = vadd.f32 0.0, %v4709
  %4711 = vmatmul.f32.gmra.mxu0 %v2750
  %v4712 = vpop.f32.mrf.mxu0
  %v4713 = vadd.f32 0.0, %v4712
  %4714 = vmatmul.f32.gmra.mxu0 %v2753
  %v4715 = vpop.f32.mrf.mxu0
  %v4716 = vadd.f32 0.0, %v4715
  %4717 = vmatmul.f32.gmra.mxu0 %v2974
  %v4718 = vpop.f32.mrf.mxu0
  %v4719 = vadd.f32 0.0, %v4718
  %4720 = vmatmul.f32.gmra.mxu0 %v2759
  %v4721 = vpop.f32.mrf.mxu0
  %v4722 = vadd.f32 0.0, %v4721
  %4723 = vmatmul.f32.gmra.mxu0 %v2762
  %v4724 = vpop.f32.mrf.mxu0
  %v4725 = vadd.f32 0.0, %v4724
  %4726 = vmatmul.f32.gmra.mxu0 %v2765
  %v4727 = vpop.f32.mrf.mxu0
  %v4728 = vadd.f32 0.0, %v4727
  %4729 = vmatmul.f32.gmra.mxu0 %v2768
  %v4730 = vpop.f32.mrf.mxu0
  %v4731 = vadd.f32 0.0, %v4730
  %4732 = vmatmul.f32.gmra.mxu0 %v2771
  %v4733 = vpop.f32.mrf.mxu0
  %v4734 = vadd.f32 0.0, %v4733
  %4735 = vmatmul.f32.gmra.mxu0 %v2774
  %v4736 = vpop.f32.mrf.mxu0
  %v4737 = vadd.f32 0.0, %v4736
  %4738 = vmatmul.f32.gmra.mxu0 %v2977
  %v4739 = vpop.f32.mrf.mxu0
  %v4740 = vadd.f32 0.0, %v4739
  %4741 = vmatmul.f32.gmra.mxu0 %v2780
  %v4742 = vpop.f32.mrf.mxu0
  %v4743 = vadd.f32 0.0, %v4742
  %4744 = vmatmul.f32.gmra.mxu0 %v2783
  %v4745 = vpop.f32.mrf.mxu0
  %v4746 = vadd.f32 0.0, %v4745
  %4747 = vmatmul.f32.gmra.mxu0 %v2786
  %v4748 = vpop.f32.mrf.mxu0
  %v4749 = vadd.f32 0.0, %v4748
  %4750 = vmatmul.f32.gmra.mxu0 %v2789
  %v4751 = vpop.f32.mrf.mxu0
  %v4752 = vadd.f32 0.0, %v4751
  %4753 = vmatmul.f32.gmra.mxu0 %v2792
  %v4754 = vpop.f32.mrf.mxu0
  %v4755 = vadd.f32 0.0, %v4754
  %4756 = vmatmul.f32.gmra.mxu0 %v2795
  %v4757 = vpop.f32.mrf.mxu0
  %v4758 = vadd.f32 0.0, %v4757
  %4759 = vmatmul.f32.gmra.mxu0 %v2980
  %v4760 = vpop.f32.mrf.mxu0
  %v4761 = vadd.f32 0.0, %v4760
  %4762 = vmatmul.f32.gmra.mxu0 %v4153
  %v4763 = vpop.f32.mrf.mxu0
  %v4764 = vadd.f32 0.0, %v4763
  %4765 = vmatmul.f32.gmra.mxu0 %v4156
  %v4766 = vpop.f32.mrf.mxu0
  %v4767 = vadd.f32 0.0, %v4766
  %4768 = vmatmul.f32.gmra.mxu0 %v4159
  %v4769 = vpop.f32.mrf.mxu0
  %v4770 = vadd.f32 0.0, %v4769
  %4771 = vmatmul.f32.gmra.mxu0 %v4162
  %v4772 = vpop.f32.mrf.mxu0
  %v4773 = vadd.f32 0.0, %v4772
  %4774 = vmatmul.f32.gmra.mxu0 %v4165
  %v4775 = vpop.f32.mrf.mxu0
  %v4776 = vadd.f32 0.0, %v4775
  %4777 = vmatmul.f32.gmra.mxu0 %v4168
  %v4778 = vpop.f32.mrf.mxu0
  %v4779 = vadd.f32 0.0, %v4778
  %4780 = vmatmul.f32.gmra.mxu0 %v4618
  %v4781 = vpop.f32.mrf.mxu0
  %v4782 = vadd.f32 0.0, %v4781
  %4783 = vdwg.mxu0
  %v4784 = vadd.f32 %v4568, %v4638
  %v4785 = vadd.f32 %v4569, %v4641
  %v4786 = vadd.f32 %v4570, %v4644
  %v4787 = vadd.f32 %v4571, %v4647
  %v4788 = vadd.f32 %v4572, %v4650
  %v4789 = vadd.f32 %v4573, %v4653
  %v4790 = vadd.f32 %v4574, %v4656
  %v4791 = vadd.f32 %v4575, %v4659
  %v4792 = vadd.f32 %v4576, %v4662
  %v4793 = vadd.f32 %v4577, %v4665
  %v4794 = vadd.f32 %v4578, %v4668
  %v4795 = vadd.f32 %v4579, %v4671
  %v4796 = vadd.f32 %v4580, %v4674
  %v4797 = vadd.f32 %v4581, %v4677
  %v4798 = vadd.f32 %v4582, %v4680
  %v4799 = vadd.f32 %v4583, %v4683
  %v4800 = vadd.f32 %v4584, %v4686
  %v4801 = vadd.f32 %v4585, %v4689
  %v4802 = vadd.f32 %v4586, %v4692
  %v4803 = vadd.f32 %v4587, %v4695
  %v4804 = vadd.f32 %v4588, %v4698
  %v4805 = vadd.f32 %v4589, %v4701
  %v4806 = vadd.f32 %v4590, %v4704
  %v4807 = vadd.f32 %v4591, %v4707
  %v4808 = vadd.f32 %v4592, %v4710
  %v4809 = vadd.f32 %v4593, %v4713
  %v4810 = vadd.f32 %v4594, %v4716
  %v4811 = vadd.f32 %v4595, %v4719
  %v4812 = vadd.f32 %v4596, %v4722
  %v4813 = vadd.f32 %v4597, %v4725
  %v4814 = vadd.f32 %v4598, %v4728
  %v4815 = vadd.f32 %v4599, %v4731
  %v4816 = vadd.f32 %v4600, %v4734
  %v4817 = vadd.f32 %v4601, %v4737
  %v4818 = vadd.f32 %v4602, %v4740
  %v4819 = vadd.f32 %v4603, %v4743
  %v4820 = vadd.f32 %v4604, %v4746
  %v4821 = vadd.f32 %v4605, %v4749
  %v4822 = vadd.f32 %v4606, %v4752
  %v4823 = vadd.f32 %v4607, %v4755
  %v4824 = vadd.f32 %v4608, %v4758
  %v4825 = vadd.f32 %v4609, %v4761
  %v4826 = vadd.f32 %v4610, %v4764
  %v4827 = vadd.f32 %v4611, %v4767
  %v4828 = vadd.f32 %v4612, %v4770
  %v4829 = vadd.f32 %v4613, %v4773
  %v4830 = vadd.f32 %v4614, %v4776
  %v4831 = vadd.f32 %v4615, %v4779
  %v4832 = vadd.f32 %v4616, %v4782
  %v4834 = vperm.slane %v47, 0
  %v4836 = vadd.f32 %v4784, %v4834
  %v4837 = vadd.f32 %v4785, %v4834
  %v4838 = vadd.f32 %v4786, %v4834
  %v4839 = vadd.f32 %v4787, %v4834
  %v4840 = vadd.f32 %v4788, %v4834
  %v4841 = vadd.f32 %v4789, %v4834
  %v4842 = vadd.f32 %v4790, %v4834
  %v4843 = vadd.f32 %v4791, %v4834
  %v4844 = vadd.f32 %v4792, %v4834
  %v4845 = vadd.f32 %v4793, %v4834
  %v4846 = vadd.f32 %v4794, %v4834
  %v4847 = vadd.f32 %v4795, %v4834
  %v4848 = vadd.f32 %v4796, %v4834
  %v4849 = vadd.f32 %v4797, %v4834
  %v4850 = vadd.f32 %v4798, %v4834
  %v4851 = vadd.f32 %v4799, %v4834
  %v4852 = vadd.f32 %v4800, %v4834
  %v4853 = vadd.f32 %v4801, %v4834
  %v4854 = vadd.f32 %v4802, %v4834
  %v4855 = vadd.f32 %v4803, %v4834
  %v4856 = vadd.f32 %v4804, %v4834
  %v4857 = vadd.f32 %v4805, %v4834
  %v4858 = vadd.f32 %v4806, %v4834
  %v4859 = vadd.f32 %v4807, %v4834
  %v4860 = vadd.f32 %v4808, %v4834
  %v4861 = vadd.f32 %v4809, %v4834
  %v4862 = vadd.f32 %v4810, %v4834
  %v4863 = vadd.f32 %v4811, %v4834
  %v4864 = vadd.f32 %v4812, %v4834
  %v4865 = vadd.f32 %v4813, %v4834
  %v4866 = vadd.f32 %v4814, %v4834
  %v4867 = vadd.f32 %v4815, %v4834
  %v4868 = vadd.f32 %v4816, %v4834
  %v4869 = vadd.f32 %v4817, %v4834
  %v4870 = vadd.f32 %v4818, %v4834
  %v4871 = vadd.f32 %v4819, %v4834
  %v4872 = vadd.f32 %v4820, %v4834
  %v4873 = vadd.f32 %v4821, %v4834
  %v4874 = vadd.f32 %v4822, %v4834
  %v4875 = vadd.f32 %v4823, %v4834
  %v4876 = vadd.f32 %v4824, %v4834
  %v4877 = vadd.f32 %v4825, %v4834
  %v4878 = vadd.f32 %v4826, %v4834
  %v4879 = vadd.f32 %v4827, %v4834
  %v4880 = vadd.f32 %v4828, %v4834
  %v4881 = vadd.f32 %v4829, %v4834
  %v4882 = vadd.f32 %v4830, %v4834
  %v4883 = vadd.f32 %v4831, %v4834
  %v4884 = vadd.f32 %v4832, %v4834
  %v4885 = vmax.f32 %v4836, 0.0
  %v4886 = vmax.f32 %v4837, 0.0
  %v4887 = vmax.f32 %v4838, 0.0
  %v4888 = vmax.f32 %v4839, 0.0
  %v4889 = vmax.f32 %v4840, 0.0
  %v4890 = vmax.f32 %v4841, 0.0
  %v4891 = vmax.f32 %v4842, 0.0
  %v4892 = vmax.f32 %v4843, 0.0
  %v4893 = vmax.f32 %v4844, 0.0
  %v4894 = vmax.f32 %v4845, 0.0
  %v4895 = vmax.f32 %v4846, 0.0
  %v4896 = vmax.f32 %v4847, 0.0
  %v4897 = vmax.f32 %v4848, 0.0
  %v4898 = vmax.f32 %v4849, 0.0
  %v4899 = vmax.f32 %v4850, 0.0
  %v4900 = vmax.f32 %v4851, 0.0
  %v4901 = vmax.f32 %v4852, 0.0
  %v4902 = vmax.f32 %v4853, 0.0
  %v4903 = vmax.f32 %v4854, 0.0
  %v4904 = vmax.f32 %v4855, 0.0
  %v4905 = vmax.f32 %v4856, 0.0
  %v4906 = vmax.f32 %v4857, 0.0
  %v4907 = vmax.f32 %v4858, 0.0
  %v4908 = vmax.f32 %v4859, 0.0
  %v4909 = vmax.f32 %v4860, 0.0
  %v4910 = vmax.f32 %v4861, 0.0
  %v4911 = vmax.f32 %v4862, 0.0
  %v4912 = vmax.f32 %v4863, 0.0
  %v4913 = vmax.f32 %v4864, 0.0
  %v4914 = vmax.f32 %v4865, 0.0
  %v4915 = vmax.f32 %v4866, 0.0
  %v4916 = vmax.f32 %v4867, 0.0
  %v4917 = vmax.f32 %v4868, 0.0
  %v4918 = vmax.f32 %v4869, 0.0
  %v4919 = vmax.f32 %v4870, 0.0
  %v4920 = vmax.f32 %v4871, 0.0
  %v4921 = vmax.f32 %v4872, 0.0
  %v4922 = vmax.f32 %v4873, 0.0
  %v4923 = vmax.f32 %v4874, 0.0
  %v4924 = vmax.f32 %v4875, 0.0
  %v4925 = vmax.f32 %v4876, 0.0
  %v4926 = vmax.f32 %v4877, 0.0
  %v4927 = vmax.f32 %v4878, 0.0
  %v4928 = vmax.f32 %v4879, 0.0
  %v4929 = vmax.f32 %v4880, 0.0
  %v4930 = vmax.f32 %v4881, 0.0
  %v4931 = vmax.f32 %v4882, 0.0
  %v4932 = vmax.f32 %v4883, 0.0
  %v4933 = vmax.f32 %v4884, 0.0
  %4934 = vst.msk [vmem:[#allocation3] sm:$0xff] %vm1660, 0.0
  %4935 = vst.msk [vmem:[#allocation3 + $0x8] sm:$0xff] %vm1660, 0.0
  %4936 = vst.msk [vmem:[#allocation3 + $0x10] sm:$0xff] %vm1660, 0.0
  %4937 = vst.msk [vmem:[#allocation3 + $0x18] sm:$0xff] %vm1660, 0.0
  %4938 = vst.msk [vmem:[#allocation3 + $0x20] sm:$0xff] %vm1660, 0.0
  %4939 = vst.msk [vmem:[#allocation3 + $0x28] sm:$0xff] %vm1660, 0.0
  %4940 = vst.msk [vmem:[#allocation3 + $0x30] sm:$0xff] %vm1660, 0.0
  %4941 = vst.msk [vmem:[#allocation3 + $0x38] sm:$0xff] %vm1660, 0.0
  %4942 = vst.msk [vmem:[#allocation3 + $0x40] sm:$0xff] %vm1660, 0.0
  %4943 = vst.msk [vmem:[#allocation3 + $0x48] sm:$0xff] %vm1660, 0.0
  %4944 = vst.msk [vmem:[#allocation3 + $0x50] sm:$0xff] %vm1660, 0.0
  %4945 = vst.msk [vmem:[#allocation3 + $0x58] sm:$0xff] %vm1660, 0.0
  %4946 = vst.msk [vmem:[#allocation3 + $0x60] sm:$0xff] %vm1660, 0.0
  %4947 = vst.msk [vmem:[#allocation3 + $0x68] sm:$0xff] %vm1660, 0.0
  %4948 = vst.msk [vmem:[#allocation3 + $0x70] sm:$0xff] %vm1660, 0.0
  %4949 = vst.msk [vmem:[#allocation3 + $0x78] sm:$0xff] %vm1660, 0.0
  %4950 = vst.msk [vmem:[#allocation3 + $0x80] sm:$0xff] %vm1660, 0.0
  %4951 = vst.msk [vmem:[#allocation3 + $0x88] sm:$0xff] %vm1660, 0.0
  %4952 = vst.msk [vmem:[#allocation3 + $0x90] sm:$0xff] %vm1660, 0.0
  %4953 = vst.msk [vmem:[#allocation3 + $0x98] sm:$0xff] %vm1660, 0.0
  %4954 = vst.msk [vmem:[#allocation3 + $0xa0] sm:$0xff] %vm1660, 0.0
  %4955 = vst.msk [vmem:[#allocation3 + $0xa8] sm:$0xff] %vm1660, 0.0
  %4956 = vst.msk [vmem:[#allocation3 + $0xb0] sm:$0xff] %vm1660, 0.0
  %4957 = vst.msk [vmem:[#allocation3 + $0xb8] sm:$0xff] %vm1660, 0.0
  %4958 = vst.msk [vmem:[#allocation3 + $0xc0] sm:$0xff] %vm1660, 0.0
  %4959 = vst.msk [vmem:[#allocation3 + $0xc8] sm:$0xff] %vm1660, 0.0
  %4960 = vst.msk [vmem:[#allocation3 + $0xd0] sm:$0xff] %vm1660, 0.0
  %4961 = vst.msk [vmem:[#allocation3 + $0xd8] sm:$0xff] %vm1660, 0.0
  %4962 = vst.msk [vmem:[#allocation3 + $0xe0] sm:$0xff] %vm1660, 0.0
  %4963 = vst.msk [vmem:[#allocation3 + $0xe8] sm:$0xff] %vm1660, 0.0
  %4964 = vst.msk [vmem:[#allocation3 + $0xf0] sm:$0xff] %vm1660, 0.0
  %4965 = vst.msk [vmem:[#allocation3 + $0xf8] sm:$0xff] %vm1660, 0.0
  %4966 = vst.msk [vmem:[#allocation3 + $0x100] sm:$0xff] %vm1660, 0.0
  %4967 = vst.msk [vmem:[#allocation3 + $0x108] sm:$0xff] %vm1660, 0.0
  %4968 = vst.msk [vmem:[#allocation3 + $0x110] sm:$0xff] %vm1660, 0.0
  %4969 = vst.msk [vmem:[#allocation3 + $0x118] sm:$0xff] %vm1660, 0.0
  %4970 = vst.msk [vmem:[#allocation3 + $0x120] sm:$0xff] %vm1660, 0.0
  %4971 = vst.msk [vmem:[#allocation3 + $0x128] sm:$0xff] %vm1660, 0.0
  %4972 = vst.msk [vmem:[#allocation3 + $0x130] sm:$0xff] %vm1660, 0.0
  %4973 = vst.msk [vmem:[#allocation3 + $0x138] sm:$0xff] %vm1660, 0.0
  %4974 = vst.msk [vmem:[#allocation3 + $0x140] sm:$0xff] %vm1660, 0.0
  %4975 = vst.msk [vmem:[#allocation3 + $0x148] sm:$0xff] %vm1660, 0.0
  %4976 = vst.msk [vmem:[#allocation3 + $0x150] sm:$0xff] %vm1660, 0.0
  %4977 = vst.msk [vmem:[#allocation3 + $0x158] sm:$0xff] %vm1660, 0.0
  %4978 = vst.msk [vmem:[#allocation3 + $0x160] sm:$0xff] %vm1660, 0.0
  %4979 = vst.msk [vmem:[#allocation3 + $0x168] sm:$0xff] %vm1660, 0.0
  %4980 = vst.msk [vmem:[#allocation3 + $0x170] sm:$0xff] %vm1660, 0.0
  %4981 = vst.msk [vmem:[#allocation3 + $0x178] sm:$0xff] %vm1660, 0.0
  %4982 = vst.msk [vmem:[#allocation3 + $0x180] sm:$0xff] %vm1660, 0.0
  %4983 = vst.msk [vmem:[#allocation3 + $0x188] sm:$0xff] %vm1660, 0.0
  %4984 = vst.msk [vmem:[#allocation3 + $0x190] sm:$0xff] %vm1660, 0.0
  %4985 = vst.msk [vmem:[#allocation3 + $0x198] sm:$0xff] %vm1660, 0.0
  %4986 = vst.msk [vmem:[#allocation3 + $0x1a0] sm:$0xff] %vm1660, 0.0
  %4987 = vst.msk [vmem:[#allocation3 + $0x1a8] sm:$0xff] %vm1660, 0.0
  %4988 = vst.msk [vmem:[#allocation3 + $0x1b0] sm:$0xff] %vm1660, 0.0
  %4989 = vst.msk [vmem:[#allocation3 + $0x1b8] sm:$0xff] %vm1660, 0.0
  %4990 = vst.msk [vmem:[#allocation3 + $0x1c0] sm:$0xff] %vm1660, 0.0
  %4991 = vst.msk [vmem:[#allocation3 + $0x1c8] sm:$0xff] %vm1660, 0.0
  %4992 = vst.msk [vmem:[#allocation3 + $0x1d0] sm:$0xff] %vm1660, 0.0
  %4993 = vst.msk [vmem:[#allocation3 + $0x1d8] sm:$0xff] %vm1660, 0.0
  %4994 = vst.msk [vmem:[#allocation3 + $0x1e0] sm:$0xff] %vm1660, 0.0
  %4995 = vst.msk [vmem:[#allocation3 + $0x1e8] sm:$0xff] %vm1660, 0.0
  %4996 = vst.msk [vmem:[#allocation3 + $0x1f0] sm:$0xff] %vm1660, 0.0
  %4997 = vst.msk [vmem:[#allocation3 + $0x1f8] sm:$0xff] %vm1660, 0.0
  %4998 = vst.msk [vmem:[#allocation3 + $0x200] sm:$0xff] %vm1660, 0.0
  %4999 = vst.msk [vmem:[#allocation3 + $0x208] sm:$0xff] %vm1660, 0.0
  %5000 = vst.msk [vmem:[#allocation3 + $0x210] sm:$0xff] %vm1660, 0.0
  %5001 = vst.msk [vmem:[#allocation3 + $0x218] sm:$0xff] %vm1660, 0.0
  %5002 = vst.msk [vmem:[#allocation3 + $0x220] sm:$0xff] %vm1660, 0.0
  %5003 = vst.msk [vmem:[#allocation3 + $0x228] sm:$0xff] %vm1660, 0.0
  %5004 = vst.msk [vmem:[#allocation3 + $0x230] sm:$0xff] %vm1660, 0.0
  %5005 = vst.msk [vmem:[#allocation3 + $0x238] sm:$0xff] %vm1660, 0.0
  %5006 = vst.msk [vmem:[#allocation3 + $0x240] sm:$0xff] %vm1660, 0.0
  %5007 = vst.msk [vmem:[#allocation3 + $0x248] sm:$0xff] %vm1660, 0.0
  %5008 = vst.msk [vmem:[#allocation3 + $0x250] sm:$0xff] %vm1660, 0.0
  %5009 = vst.msk [vmem:[#allocation3 + $0x258] sm:$0xff] %vm1660, 0.0
  %5010 = vst.msk [vmem:[#allocation3 + $0x260] sm:$0xff] %vm1660, 0.0
  %5011 = vst.msk [vmem:[#allocation3 + $0x268] sm:$0xff] %vm1660, 0.0
  %5012 = vst.msk [vmem:[#allocation3 + $0x270] sm:$0xff] %vm1660, 0.0
  %5013 = vst.msk [vmem:[#allocation3 + $0x278] sm:$0xff] %vm1660, 0.0
  %5014 = vst.msk [vmem:[#allocation3 + $0x280] sm:$0xff] %vm1660, 0.0
  %5015 = vst.msk [vmem:[#allocation3 + $0x288] sm:$0xff] %vm1660, 0.0
  %5016 = vst.msk [vmem:[#allocation3 + $0x290] sm:$0xff] %vm1660, 0.0
  %5017 = vst.msk [vmem:[#allocation3 + $0x298] sm:$0xff] %vm1660, 0.0
  %5018 = vst.msk [vmem:[#allocation3 + $0x2a0] sm:$0xff] %vm1660, 0.0
  %5019 = vst.msk [vmem:[#allocation3 + $0x2a8] sm:$0xff] %vm1660, 0.0
  %5020 = vst.msk [vmem:[#allocation3 + $0x2b0] sm:$0xff] %vm1660, 0.0
  %5021 = vst.msk [vmem:[#allocation3 + $0x2b8] sm:$0xff] %vm1660, 0.0
  %5022 = vst.msk [vmem:[#allocation3 + $0x2c0] sm:$0xff] %vm1660, 0.0
  %5023 = vst.msk [vmem:[#allocation3 + $0x2c8] sm:$0xff] %vm1660, 0.0
  %5024 = vst.msk [vmem:[#allocation3 + $0x2d0] sm:$0xff] %vm1660, 0.0
  %5025 = vst.msk [vmem:[#allocation3 + $0x2d8] sm:$0xff] %vm1660, 0.0
  %5026 = vst.msk [vmem:[#allocation3 + $0x2e0] sm:$0xff] %vm1660, 0.0
  %5027 = vst.msk [vmem:[#allocation3 + $0x2e8] sm:$0xff] %vm1660, 0.0
  %5028 = vst.msk [vmem:[#allocation3 + $0x2f0] sm:$0xff] %vm1660, 0.0
  %5029 = vst.msk [vmem:[#allocation3 + $0x2f8] sm:$0xff] %vm1660, 0.0
  %5030 = vst.msk [vmem:[#allocation3 + $0x300] sm:$0xff] %vm1660, 0.0
  %5031 = vst.msk [vmem:[#allocation3 + $0x308] sm:$0xff] %vm1660, 0.0
  %5032 = vst.msk [vmem:[#allocation3 + $0x310] sm:$0xff] %vm1660, 0.0
  %5033 = vst.msk [vmem:[#allocation3 + $0x318] sm:$0xff] %vm1660, 0.0
  %s5034 = scalar_lea.vmem [#allocation3], 88
  %5035 = vst.msk [vmem:[%s5034] sm:$0xff] %vm1660, %v4885
  %5036 = vst.msk [vmem:[%s5034 + $0x8] sm:$0xff] %vm1660, %v4886
  %5037 = vst.msk [vmem:[%s5034 + $0x10] sm:$0xff] %vm1660, %v4887
  %5038 = vst.msk [vmem:[%s5034 + $0x18] sm:$0xff] %vm1660, %v4888
  %5039 = vst.msk [vmem:[%s5034 + $0x20] sm:$0xff] %vm1660, %v4889
  %5040 = vst.msk [vmem:[%s5034 + $0x28] sm:$0xff] %vm1660, %v4890
  %5041 = vst.msk [vmem:[%s5034 + $0x30] sm:$0xff] %vm1660, %v4891
  %5042 = vst.msk [vmem:[%s5034 + $0x50] sm:$0xff] %vm1660, %v4892
  %5043 = vst.msk [vmem:[%s5034 + $0x58] sm:$0xff] %vm1660, %v4893
  %5044 = vst.msk [vmem:[%s5034 + $0x60] sm:$0xff] %vm1660, %v4894
  %5045 = vst.msk [vmem:[%s5034 + $0x68] sm:$0xff] %vm1660, %v4895
  %5046 = vst.msk [vmem:[%s5034 + $0x70] sm:$0xff] %vm1660, %v4896
  %5047 = vst.msk [vmem:[%s5034 + $0x78] sm:$0xff] %vm1660, %v4897
  %5048 = vst.msk [vmem:[%s5034 + $0x80] sm:$0xff] %vm1660, %v4898
  %5049 = vst.msk [vmem:[%s5034 + $0xa0] sm:$0xff] %vm1660, %v4899
  %5050 = vst.msk [vmem:[%s5034 + $0xa8] sm:$0xff] %vm1660, %v4900
  %5051 = vst.msk [vmem:[%s5034 + $0xb0] sm:$0xff] %vm1660, %v4901
  %5052 = vst.msk [vmem:[%s5034 + $0xb8] sm:$0xff] %vm1660, %v4902
  %5053 = vst.msk [vmem:[%s5034 + $0xc0] sm:$0xff] %vm1660, %v4903
  %5054 = vst.msk [vmem:[%s5034 + $0xc8] sm:$0xff] %vm1660, %v4904
  %5055 = vst.msk [vmem:[%s5034 + $0xd0] sm:$0xff] %vm1660, %v4905
  %5056 = vst.msk [vmem:[%s5034 + $0xf0] sm:$0xff] %vm1660, %v4906
  %5057 = vst.msk [vmem:[%s5034 + $0xf8] sm:$0xff] %vm1660, %v4907
  %5058 = vst.msk [vmem:[%s5034 + $0x100] sm:$0xff] %vm1660, %v4908
  %5059 = vst.msk [vmem:[%s5034 + $0x108] sm:$0xff] %vm1660, %v4909
  %5060 = vst.msk [vmem:[%s5034 + $0x110] sm:$0xff] %vm1660, %v4910
  %5061 = vst.msk [vmem:[%s5034 + $0x118] sm:$0xff] %vm1660, %v4911
  %5062 = vst.msk [vmem:[%s5034 + $0x120] sm:$0xff] %vm1660, %v4912
  %5063 = vst.msk [vmem:[%s5034 + $0x140] sm:$0xff] %vm1660, %v4913
  %5064 = vst.msk [vmem:[%s5034 + $0x148] sm:$0xff] %vm1660, %v4914
  %5065 = vst.msk [vmem:[%s5034 + $0x150] sm:$0xff] %vm1660, %v4915
  %5066 = vst.msk [vmem:[%s5034 + $0x158] sm:$0xff] %vm1660, %v4916
  %5067 = vst.msk [vmem:[%s5034 + $0x160] sm:$0xff] %vm1660, %v4917
  %5068 = vst.msk [vmem:[%s5034 + $0x168] sm:$0xff] %vm1660, %v4918
  %5069 = vst.msk [vmem:[%s5034 + $0x170] sm:$0xff] %vm1660, %v4919
  %5070 = vst.msk [vmem:[%s5034 + $0x190] sm:$0xff] %vm1660, %v4920
  %5071 = vst.msk [vmem:[%s5034 + $0x198] sm:$0xff] %vm1660, %v4921
  %5072 = vst.msk [vmem:[%s5034 + $0x1a0] sm:$0xff] %vm1660, %v4922
  %5073 = vst.msk [vmem:[%s5034 + $0x1a8] sm:$0xff] %vm1660, %v4923
  %5074 = vst.msk [vmem:[%s5034 + $0x1b0] sm:$0xff] %vm1660, %v4924
  %5075 = vst.msk [vmem:[%s5034 + $0x1b8] sm:$0xff] %vm1660, %v4925
  %5076 = vst.msk [vmem:[%s5034 + $0x1c0] sm:$0xff] %vm1660, %v4926
  %5077 = vst.msk [vmem:[%s5034 + $0x1e0] sm:$0xff] %vm1660, %v4927
  %5078 = vst.msk [vmem:[%s5034 + $0x1e8] sm:$0xff] %vm1660, %v4928
  %5079 = vst.msk [vmem:[%s5034 + $0x1f0] sm:$0xff] %vm1660, %v4929
  %5080 = vst.msk [vmem:[%s5034 + $0x1f8] sm:$0xff] %vm1660, %v4930
  %5081 = vst.msk [vmem:[%s5034 + $0x200] sm:$0xff] %vm1660, %v4931
  %5082 = vst.msk [vmem:[%s5034 + $0x208] sm:$0xff] %vm1660, %v4932
  %5083 = vst.msk [vmem:[%s5034 + $0x210] sm:$0xff] %vm1660, %v4933
  %v5084 = vld [vmem:[#allocation3] sm:$0xff]
  %v5085 = vld [vmem:[#allocation3 + $0x8] sm:$0xff]
  %v5086 = vld [vmem:[#allocation3 + $0x10] sm:$0xff]
  %v5087 = vld [vmem:[#allocation3 + $0x18] sm:$0xff]
  %v5088 = vld [vmem:[#allocation3 + $0x20] sm:$0xff]
  %v5089 = vld [vmem:[#allocation3 + $0x28] sm:$0xff]
  %v5090 = vld [vmem:[#allocation3 + $0x30] sm:$0xff]
  %v5091 = vld [vmem:[#allocation3 + $0x38] sm:$0xff]
  %v5092 = vld [vmem:[#allocation3 + $0x40] sm:$0xff]
  %v5093 = vld [vmem:[#allocation3 + $0x50] sm:$0xff]
  %v5094 = vld [vmem:[#allocation3 + $0x58] sm:$0xff]
  %v5095 = vld [vmem:[#allocation3 + $0x60] sm:$0xff]
  %v5096 = vld [vmem:[#allocation3 + $0x68] sm:$0xff]
  %v5097 = vld [vmem:[#allocation3 + $0x70] sm:$0xff]
  %v5098 = vld [vmem:[#allocation3 + $0x78] sm:$0xff]
  %v5099 = vld [vmem:[#allocation3 + $0x80] sm:$0xff]
  %v5100 = vld [vmem:[#allocation3 + $0x88] sm:$0xff]
  %v5101 = vld [vmem:[#allocation3 + $0x90] sm:$0xff]
  %v5102 = vld [vmem:[#allocation3 + $0xa0] sm:$0xff]
  %v5103 = vld [vmem:[#allocation3 + $0xa8] sm:$0xff]
  %v5104 = vld [vmem:[#allocation3 + $0xb0] sm:$0xff]
  %v5105 = vld [vmem:[#allocation3 + $0xb8] sm:$0xff]
  %v5106 = vld [vmem:[#allocation3 + $0xc0] sm:$0xff]
  %v5107 = vld [vmem:[#allocation3 + $0xc8] sm:$0xff]
  %v5108 = vld [vmem:[#allocation3 + $0xd0] sm:$0xff]
  %v5109 = vld [vmem:[#allocation3 + $0xd8] sm:$0xff]
  %v5110 = vld [vmem:[#allocation3 + $0xe0] sm:$0xff]
  %v5111 = vld [vmem:[#allocation3 + $0xf0] sm:$0xff]
  %v5112 = vld [vmem:[#allocation3 + $0xf8] sm:$0xff]
  %v5113 = vld [vmem:[#allocation3 + $0x100] sm:$0xff]
  %v5114 = vld [vmem:[#allocation3 + $0x108] sm:$0xff]
  %v5115 = vld [vmem:[#allocation3 + $0x110] sm:$0xff]
  %v5116 = vld [vmem:[#allocation3 + $0x118] sm:$0xff]
  %v5117 = vld [vmem:[#allocation3 + $0x120] sm:$0xff]
  %v5118 = vld [vmem:[#allocation3 + $0x128] sm:$0xff]
  %v5119 = vld [vmem:[#allocation3 + $0x130] sm:$0xff]
  %v5120 = vld [vmem:[#allocation3 + $0x140] sm:$0xff]
  %v5121 = vld [vmem:[#allocation3 + $0x148] sm:$0xff]
  %v5122 = vld [vmem:[#allocation3 + $0x150] sm:$0xff]
  %v5123 = vld [vmem:[#allocation3 + $0x158] sm:$0xff]
  %v5124 = vld [vmem:[#allocation3 + $0x160] sm:$0xff]
  %v5125 = vld [vmem:[#allocation3 + $0x168] sm:$0xff]
  %v5126 = vld [vmem:[#allocation3 + $0x170] sm:$0xff]
  %v5127 = vld [vmem:[#allocation3 + $0x178] sm:$0xff]
  %v5128 = vld [vmem:[#allocation3 + $0x180] sm:$0xff]
  %v5129 = vld [vmem:[#allocation3 + $0x190] sm:$0xff]
  %v5130 = vld [vmem:[#allocation3 + $0x198] sm:$0xff]
  %v5131 = vld [vmem:[#allocation3 + $0x1a0] sm:$0xff]
  %v5132 = vld [vmem:[#allocation3 + $0x1a8] sm:$0xff]
  %v5133 = vld [vmem:[#allocation3 + $0x1b0] sm:$0xff]
  %v5134 = vld [vmem:[#allocation3 + $0x1b8] sm:$0xff]
  %v5135 = vld [vmem:[#allocation3 + $0x1c0] sm:$0xff]
  %v5136 = vld [vmem:[#allocation3 + $0x1c8] sm:$0xff]
  %v5137 = vld [vmem:[#allocation3 + $0x1d0] sm:$0xff]
  %v5138 = vld [vmem:[#allocation3 + $0x1e0] sm:$0xff]
  %v5139 = vld [vmem:[#allocation3 + $0x1e8] sm:$0xff]
  %v5140 = vld [vmem:[#allocation3 + $0x1f0] sm:$0xff]
  %v5141 = vld [vmem:[#allocation3 + $0x1f8] sm:$0xff]
  %v5142 = vld [vmem:[#allocation3 + $0x200] sm:$0xff]
  %v5143 = vld [vmem:[#allocation3 + $0x208] sm:$0xff]
  %v5144 = vld [vmem:[#allocation3 + $0x210] sm:$0xff]
  %v5145 = vld [vmem:[#allocation3 + $0x218] sm:$0xff]
  %v5146 = vld [vmem:[#allocation3 + $0x220] sm:$0xff]
  %v5147 = vld [vmem:[#allocation3 + $0x230] sm:$0xff]
  %v5148 = vld [vmem:[#allocation3 + $0x238] sm:$0xff]
  %v5149 = vld [vmem:[#allocation3 + $0x240] sm:$0xff]
  %v5150 = vld [vmem:[#allocation3 + $0x248] sm:$0xff]
  %v5151 = vld [vmem:[#allocation3 + $0x250] sm:$0xff]
  %v5152 = vld [vmem:[#allocation3 + $0x258] sm:$0xff]
  %v5153 = vld [vmem:[#allocation3 + $0x260] sm:$0xff]
  %v5154 = vld [vmem:[#allocation3 + $0x268] sm:$0xff]
  %v5155 = vld [vmem:[#allocation3 + $0x270] sm:$0xff]
  %v5156 = vld [vmem:[#allocation3 + $0x280] sm:$0xff]
  %v5157 = vld [vmem:[#allocation3 + $0x288] sm:$0xff]
  %v5158 = vld [vmem:[#allocation3 + $0x290] sm:$0xff]
  %v5159 = vld [vmem:[#allocation3 + $0x298] sm:$0xff]
  %v5160 = vld [vmem:[#allocation3 + $0x2a0] sm:$0xff]
  %v5161 = vld [vmem:[#allocation3 + $0x2a8] sm:$0xff]
  %v5162 = vld [vmem:[#allocation3 + $0x2b0] sm:$0xff]
  %v5163 = vld [vmem:[#allocation3 + $0x2b8] sm:$0xff]
  %v5164 = vld [vmem:[#allocation3 + $0x2c0] sm:$0xff]
  %v5166 = vsel %vm1660, %v5085, 0
  %v5169 = vsel %vm1660, %v5087, 0
  %v5172 = vsel %vm1660, %v5089, 0
  %v5175 = vsel %vm1660, %v5091, 0
  %v5178 = vsel %vm1660, %v5103, 0
  %v5181 = vsel %vm1660, %v5105, 0
  %v5184 = vsel %vm1660, %v5107, 0
  %v5187 = vsel %vm1660, %v5109, 0
  %v5190 = vsel %vm1660, %v5121, 0
  %v5193 = vsel %vm1660, %v5123, 0
  %v5196 = vsel %vm1660, %v5125, 0
  %v5199 = vsel %vm1660, %v5127, 0
  %v5202 = vsel %vm1660, %v5139, 0
  %v5205 = vsel %vm1660, %v5141, 0
  %v5208 = vsel %vm1660, %v5143, 0
  %v5211 = vsel %vm1660, %v5145, 0
  %5213 = vmatpush.msra.mxu0 0.0
  %5214 = vmatpush.msra.mxu0 0.0
  %5215 = vmatpush.msra.mxu0 0.0
  %5216 = vmatpush.msra.mxu0 0.0
  %5217 = vmatpush.msra.mxu0 0.0
  %5218 = vmatpush.msra.mxu0 0.0
  %5219 = vmatpush.msra.mxu0 0.0
  %5220 = vmatpush.msra.mxu0 0.0
  %5221 = vmatpush.msra.mxu0 0.0
  %5222 = vmatpush.msra.mxu0 0.0
  %5223 = vmatpush.msra.mxu0 0.0
  %5224 = vmatpush.msra.mxu0 0.0
  %5225 = vmatpush.msra.mxu0 0.0
  %5226 = vmatpush.msra.mxu0 0.0
  %5227 = vmatpush.msra.mxu0 %v51
  %5228 = vmatpush.msra.mxu0 %v50
  %5229 = vmatmul.f32.gmra.mxu0 %v5166
  %v5230 = vpop.f32.mrf.mxu0
  %v5231 = vadd.f32 0.0, %v5230
  %5232 = vmatmul.f32.gmra.mxu0 %v5169
  %v5233 = vpop.f32.mrf.mxu0
  %v5234 = vadd.f32 0.0, %v5233
  %5235 = vmatmul.f32.gmra.mxu0 %v5172
  %v5236 = vpop.f32.mrf.mxu0
  %v5237 = vadd.f32 0.0, %v5236
  %5238 = vmatmul.f32.gmra.mxu0 %v5175
  %v5239 = vpop.f32.mrf.mxu0
  %v5240 = vadd.f32 0.0, %v5239
  %5241 = vmatmul.f32.gmra.mxu0 %v5178
  %v5242 = vpop.f32.mrf.mxu0
  %v5243 = vadd.f32 0.0, %v5242
  %5244 = vmatmul.f32.gmra.mxu0 %v5181
  %v5245 = vpop.f32.mrf.mxu0
  %v5246 = vadd.f32 0.0, %v5245
  %5247 = vmatmul.f32.gmra.mxu0 %v5184
  %v5248 = vpop.f32.mrf.mxu0
  %v5249 = vadd.f32 0.0, %v5248
  %5250 = vmatmul.f32.gmra.mxu0 %v5187
  %v5251 = vpop.f32.mrf.mxu0
  %v5252 = vadd.f32 0.0, %v5251
  %5253 = vmatmul.f32.gmra.mxu0 %v5190
  %v5254 = vpop.f32.mrf.mxu0
  %v5255 = vadd.f32 0.0, %v5254
  %5256 = vmatmul.f32.gmra.mxu0 %v5193
  %v5257 = vpop.f32.mrf.mxu0
  %v5258 = vadd.f32 0.0, %v5257
  %5259 = vmatmul.f32.gmra.mxu0 %v5196
  %v5260 = vpop.f32.mrf.mxu0
  %v5261 = vadd.f32 0.0, %v5260
  %5262 = vmatmul.f32.gmra.mxu0 %v5199
  %v5263 = vpop.f32.mrf.mxu0
  %v5264 = vadd.f32 0.0, %v5263
  %5265 = vmatmul.f32.gmra.mxu0 %v5202
  %v5266 = vpop.f32.mrf.mxu0
  %v5267 = vadd.f32 0.0, %v5266
  %5268 = vmatmul.f32.gmra.mxu0 %v5205
  %v5269 = vpop.f32.mrf.mxu0
  %v5270 = vadd.f32 0.0, %v5269
  %5271 = vmatmul.f32.gmra.mxu0 %v5208
  %v5272 = vpop.f32.mrf.mxu0
  %v5273 = vadd.f32 0.0, %v5272
  %5274 = vmatmul.f32.gmra.mxu0 %v5211
  %v5275 = vpop.f32.mrf.mxu0
  %v5276 = vadd.f32 0.0, %v5275
  %5277 = vdwg.mxu0
  %v5279 = vsel %vm1660, %v5084, 0
  %v5282 = vsel %vm1660, %v5086, 0
  %v5285 = vsel %vm1660, %v5088, 0
  %v5288 = vsel %vm1660, %v5090, 0
  %v5291 = vsel %vm1660, %v5102, 0
  %v5294 = vsel %vm1660, %v5104, 0
  %v5297 = vsel %vm1660, %v5106, 0
  %v5300 = vsel %vm1660, %v5108, 0
  %v5303 = vsel %vm1660, %v5120, 0
  %v5306 = vsel %vm1660, %v5122, 0
  %v5309 = vsel %vm1660, %v5124, 0
  %v5312 = vsel %vm1660, %v5126, 0
  %v5315 = vsel %vm1660, %v5138, 0
  %v5318 = vsel %vm1660, %v5140, 0
  %v5321 = vsel %vm1660, %v5142, 0
  %v5324 = vsel %vm1660, %v5144, 0
  %5326 = vmatpush.msra.mxu0 0.0
  %5327 = vmatpush.msra.mxu0 0.0
  %5328 = vmatpush.msra.mxu0 0.0
  %5329 = vmatpush.msra.mxu0 0.0
  %5330 = vmatpush.msra.mxu0 0.0
  %5331 = vmatpush.msra.mxu0 0.0
  %5332 = vmatpush.msra.mxu0 0.0
  %5333 = vmatpush.msra.mxu0 0.0
  %5334 = vmatpush.msra.mxu0 0.0
  %5335 = vmatpush.msra.mxu0 0.0
  %5336 = vmatpush.msra.mxu0 0.0
  %5337 = vmatpush.msra.mxu0 0.0
  %5338 = vmatpush.msra.mxu0 0.0
  %5339 = vmatpush.msra.mxu0 0.0
  %5340 = vmatpush.msra.mxu0 %v49
  %5341 = vmatpush.msra.mxu0 %v48
  %5342 = vmatmul.f32.gmra.mxu0 %v5279
  %v5343 = vpop.f32.mrf.mxu0
  %v5344 = vadd.f32 %v5231, %v5343
  %5345 = vmatmul.f32.gmra.mxu0 %v5282
  %v5346 = vpop.f32.mrf.mxu0
  %v5347 = vadd.f32 %v5234, %v5346
  %5348 = vmatmul.f32.gmra.mxu0 %v5285
  %v5349 = vpop.f32.mrf.mxu0
  %v5350 = vadd.f32 %v5237, %v5349
  %5351 = vmatmul.f32.gmra.mxu0 %v5288
  %v5352 = vpop.f32.mrf.mxu0
  %v5353 = vadd.f32 %v5240, %v5352
  %5354 = vmatmul.f32.gmra.mxu0 %v5291
  %v5355 = vpop.f32.mrf.mxu0
  %v5356 = vadd.f32 %v5243, %v5355
  %5357 = vmatmul.f32.gmra.mxu0 %v5294
  %v5358 = vpop.f32.mrf.mxu0
  %v5359 = vadd.f32 %v5246, %v5358
  %5360 = vmatmul.f32.gmra.mxu0 %v5297
  %v5361 = vpop.f32.mrf.mxu0
  %v5362 = vadd.f32 %v5249, %v5361
  %5363 = vmatmul.f32.gmra.mxu0 %v5300
  %v5364 = vpop.f32.mrf.mxu0
  %v5365 = vadd.f32 %v5252, %v5364
  %5366 = vmatmul.f32.gmra.mxu0 %v5303
  %v5367 = vpop.f32.mrf.mxu0
  %v5368 = vadd.f32 %v5255, %v5367
  %5369 = vmatmul.f32.gmra.mxu0 %v5306
  %v5370 = vpop.f32.mrf.mxu0
  %v5371 = vadd.f32 %v5258, %v5370
  %5372 = vmatmul.f32.gmra.mxu0 %v5309
  %v5373 = vpop.f32.mrf.mxu0
  %v5374 = vadd.f32 %v5261, %v5373
  %5375 = vmatmul.f32.gmra.mxu0 %v5312
  %v5376 = vpop.f32.mrf.mxu0
  %v5377 = vadd.f32 %v5264, %v5376
  %5378 = vmatmul.f32.gmra.mxu0 %v5315
  %v5379 = vpop.f32.mrf.mxu0
  %v5380 = vadd.f32 %v5267, %v5379
  %5381 = vmatmul.f32.gmra.mxu0 %v5318
  %v5382 = vpop.f32.mrf.mxu0
  %v5383 = vadd.f32 %v5270, %v5382
  %5384 = vmatmul.f32.gmra.mxu0 %v5321
  %v5385 = vpop.f32.mrf.mxu0
  %v5386 = vadd.f32 %v5273, %v5385
  %5387 = vmatmul.f32.gmra.mxu0 %v5324
  %v5388 = vpop.f32.mrf.mxu0
  %v5389 = vadd.f32 %v5276, %v5388
  %5390 = vdwg.mxu0
  %v5392 = vsel %vm1660, %v5092, 0
  %v5395 = vsel %vm1660, %v5110, 0
  %v5398 = vsel %vm1660, %v5128, 0
  %v5401 = vsel %vm1660, %v5146, 0
  %5403 = vmatpush.msra.mxu0 0.0
  %5404 = vmatpush.msra.mxu0 0.0
  %5405 = vmatpush.msra.mxu0 0.0
  %5406 = vmatpush.msra.mxu0 0.0
  %5407 = vmatpush.msra.mxu0 0.0
  %5408 = vmatpush.msra.mxu0 0.0
  %5409 = vmatpush.msra.mxu0 0.0
  %5410 = vmatpush.msra.mxu0 0.0
  %5411 = vmatpush.msra.mxu0 0.0
  %5412 = vmatpush.msra.mxu0 0.0
  %5413 = vmatpush.msra.mxu0 0.0
  %5414 = vmatpush.msra.mxu0 0.0
  %5415 = vmatpush.msra.mxu0 0.0
  %5416 = vmatpush.msra.mxu0 0.0
  %5417 = vmatpush.msra.mxu0 %v53
  %5418 = vmatpush.msra.mxu0 %v52
  %5419 = vmatmul.f32.gmra.mxu0 %v5282
  %v5420 = vpop.f32.mrf.mxu0
  %v5421 = vadd.f32 0.0, %v5420
  %5422 = vmatmul.f32.gmra.mxu0 %v5285
  %v5423 = vpop.f32.mrf.mxu0
  %v5424 = vadd.f32 0.0, %v5423
  %5425 = vmatmul.f32.gmra.mxu0 %v5288
  %v5426 = vpop.f32.mrf.mxu0
  %v5427 = vadd.f32 0.0, %v5426
  %5428 = vmatmul.f32.gmra.mxu0 %v5392
  %v5429 = vpop.f32.mrf.mxu0
  %v5430 = vadd.f32 0.0, %v5429
  %5431 = vmatmul.f32.gmra.mxu0 %v5294
  %v5432 = vpop.f32.mrf.mxu0
  %v5433 = vadd.f32 0.0, %v5432
  %5434 = vmatmul.f32.gmra.mxu0 %v5297
  %v5435 = vpop.f32.mrf.mxu0
  %v5436 = vadd.f32 0.0, %v5435
  %5437 = vmatmul.f32.gmra.mxu0 %v5300
  %v5438 = vpop.f32.mrf.mxu0
  %v5439 = vadd.f32 0.0, %v5438
  %5440 = vmatmul.f32.gmra.mxu0 %v5395
  %v5441 = vpop.f32.mrf.mxu0
  %v5442 = vadd.f32 0.0, %v5441
  %5443 = vmatmul.f32.gmra.mxu0 %v5306
  %v5444 = vpop.f32.mrf.mxu0
  %v5445 = vadd.f32 0.0, %v5444
  %5446 = vmatmul.f32.gmra.mxu0 %v5309
  %v5447 = vpop.f32.mrf.mxu0
  %v5448 = vadd.f32 0.0, %v5447
  %5449 = vmatmul.f32.gmra.mxu0 %v5312
  %v5450 = vpop.f32.mrf.mxu0
  %v5451 = vadd.f32 0.0, %v5450
  %5452 = vmatmul.f32.gmra.mxu0 %v5398
  %v5453 = vpop.f32.mrf.mxu0
  %v5454 = vadd.f32 0.0, %v5453
  %5455 = vmatmul.f32.gmra.mxu0 %v5318
  %v5456 = vpop.f32.mrf.mxu0
  %v5457 = vadd.f32 0.0, %v5456
  %5458 = vmatmul.f32.gmra.mxu0 %v5321
  %v5459 = vpop.f32.mrf.mxu0
  %v5460 = vadd.f32 0.0, %v5459
  %5461 = vmatmul.f32.gmra.mxu0 %v5324
  %v5462 = vpop.f32.mrf.mxu0
  %v5463 = vadd.f32 0.0, %v5462
  %5464 = vmatmul.f32.gmra.mxu0 %v5401
  %v5465 = vpop.f32.mrf.mxu0
  %v5466 = vadd.f32 0.0, %v5465
  %5467 = vdwg.mxu0
  %v5468 = vadd.f32 %v5344, %v5421
  %v5469 = vadd.f32 %v5347, %v5424
  %v5470 = vadd.f32 %v5350, %v5427
  %v5471 = vadd.f32 %v5353, %v5430
  %v5472 = vadd.f32 %v5356, %v5433
  %v5473 = vadd.f32 %v5359, %v5436
  %v5474 = vadd.f32 %v5362, %v5439
  %v5475 = vadd.f32 %v5365, %v5442
  %v5476 = vadd.f32 %v5368, %v5445
  %v5477 = vadd.f32 %v5371, %v5448
  %v5478 = vadd.f32 %v5374, %v5451
  %v5479 = vadd.f32 %v5377, %v5454
  %v5480 = vadd.f32 %v5380, %v5457
  %v5481 = vadd.f32 %v5383, %v5460
  %v5482 = vadd.f32 %v5386, %v5463
  %v5483 = vadd.f32 %v5389, %v5466
  %v5485 = vsel %vm1660, %v5093, 0
  %v5488 = vsel %vm1660, %v5095, 0
  %v5491 = vsel %vm1660, %v5097, 0
  %v5494 = vsel %vm1660, %v5099, 0
  %v5497 = vsel %vm1660, %v5111, 0
  %v5500 = vsel %vm1660, %v5113, 0
  %v5503 = vsel %vm1660, %v5115, 0
  %v5506 = vsel %vm1660, %v5117, 0
  %v5509 = vsel %vm1660, %v5129, 0
  %v5512 = vsel %vm1660, %v5131, 0
  %v5515 = vsel %vm1660, %v5133, 0
  %v5518 = vsel %vm1660, %v5135, 0
  %v5521 = vsel %vm1660, %v5147, 0
  %v5524 = vsel %vm1660, %v5149, 0
  %v5527 = vsel %vm1660, %v5151, 0
  %v5530 = vsel %vm1660, %v5153, 0
  %5532 = vmatpush.msra.mxu0 0.0
  %5533 = vmatpush.msra.mxu0 0.0
  %5534 = vmatpush.msra.mxu0 0.0
  %5535 = vmatpush.msra.mxu0 0.0
  %5536 = vmatpush.msra.mxu0 0.0
  %5537 = vmatpush.msra.mxu0 0.0
  %5538 = vmatpush.msra.mxu0 0.0
  %5539 = vmatpush.msra.mxu0 0.0
  %5540 = vmatpush.msra.mxu0 0.0
  %5541 = vmatpush.msra.mxu0 0.0
  %5542 = vmatpush.msra.mxu0 0.0
  %5543 = vmatpush.msra.mxu0 0.0
  %5544 = vmatpush.msra.mxu0 0.0
  %5545 = vmatpush.msra.mxu0 0.0
  %5546 = vmatpush.msra.mxu0 %v55
  %5547 = vmatpush.msra.mxu0 %v54
  %5548 = vmatmul.f32.gmra.mxu0 %v5485
  %v5549 = vpop.f32.mrf.mxu0
  %v5550 = vadd.f32 0.0, %v5549
  %5551 = vmatmul.f32.gmra.mxu0 %v5488
  %v5552 = vpop.f32.mrf.mxu0
  %v5553 = vadd.f32 0.0, %v5552
  %5554 = vmatmul.f32.gmra.mxu0 %v5491
  %v5555 = vpop.f32.mrf.mxu0
  %v5556 = vadd.f32 0.0, %v5555
  %5557 = vmatmul.f32.gmra.mxu0 %v5494
  %v5558 = vpop.f32.mrf.mxu0
  %v5559 = vadd.f32 0.0, %v5558
  %5560 = vmatmul.f32.gmra.mxu0 %v5497
  %v5561 = vpop.f32.mrf.mxu0
  %v5562 = vadd.f32 0.0, %v5561
  %5563 = vmatmul.f32.gmra.mxu0 %v5500
  %v5564 = vpop.f32.mrf.mxu0
  %v5565 = vadd.f32 0.0, %v5564
  %5566 = vmatmul.f32.gmra.mxu0 %v5503
  %v5567 = vpop.f32.mrf.mxu0
  %v5568 = vadd.f32 0.0, %v5567
  %5569 = vmatmul.f32.gmra.mxu0 %v5506
  %v5570 = vpop.f32.mrf.mxu0
  %v5571 = vadd.f32 0.0, %v5570
  %5572 = vmatmul.f32.gmra.mxu0 %v5509
  %v5573 = vpop.f32.mrf.mxu0
  %v5574 = vadd.f32 0.0, %v5573
  %5575 = vmatmul.f32.gmra.mxu0 %v5512
  %v5576 = vpop.f32.mrf.mxu0
  %v5577 = vadd.f32 0.0, %v5576
  %5578 = vmatmul.f32.gmra.mxu0 %v5515
  %v5579 = vpop.f32.mrf.mxu0
  %v5580 = vadd.f32 0.0, %v5579
  %5581 = vmatmul.f32.gmra.mxu0 %v5518
  %v5582 = vpop.f32.mrf.mxu0
  %v5583 = vadd.f32 0.0, %v5582
  %5584 = vmatmul.f32.gmra.mxu0 %v5521
  %v5585 = vpop.f32.mrf.mxu0
  %v5586 = vadd.f32 0.0, %v5585
  %5587 = vmatmul.f32.gmra.mxu0 %v5524
  %v5588 = vpop.f32.mrf.mxu0
  %v5589 = vadd.f32 0.0, %v5588
  %5590 = vmatmul.f32.gmra.mxu0 %v5527
  %v5591 = vpop.f32.mrf.mxu0
  %v5592 = vadd.f32 0.0, %v5591
  %5593 = vmatmul.f32.gmra.mxu0 %v5530
  %v5594 = vpop.f32.mrf.mxu0
  %v5595 = vadd.f32 0.0, %v5594
  %5596 = vdwg.mxu0
  %v5597 = vadd.f32 %v5468, %v5550
  %v5598 = vadd.f32 %v5469, %v5553
  %v5599 = vadd.f32 %v5470, %v5556
  %v5600 = vadd.f32 %v5471, %v5559
  %v5601 = vadd.f32 %v5472, %v5562
  %v5602 = vadd.f32 %v5473, %v5565
  %v5603 = vadd.f32 %v5474, %v5568
  %v5604 = vadd.f32 %v5475, %v5571
  %v5605 = vadd.f32 %v5476, %v5574
  %v5606 = vadd.f32 %v5477, %v5577
  %v5607 = vadd.f32 %v5478, %v5580
  %v5608 = vadd.f32 %v5479, %v5583
  %v5609 = vadd.f32 %v5480, %v5586
  %v5610 = vadd.f32 %v5481, %v5589
  %v5611 = vadd.f32 %v5482, %v5592
  %v5612 = vadd.f32 %v5483, %v5595
  %v5614 = vsel %vm1660, %v5094, 0
  %v5617 = vsel %vm1660, %v5096, 0
  %v5620 = vsel %vm1660, %v5098, 0
  %v5623 = vsel %vm1660, %v5100, 0
  %v5626 = vsel %vm1660, %v5112, 0
  %v5629 = vsel %vm1660, %v5114, 0
  %v5632 = vsel %vm1660, %v5116, 0
  %v5635 = vsel %vm1660, %v5118, 0
  %v5638 = vsel %vm1660, %v5130, 0
  %v5641 = vsel %vm1660, %v5132, 0
  %v5644 = vsel %vm1660, %v5134, 0
  %v5647 = vsel %vm1660, %v5136, 0
  %v5650 = vsel %vm1660, %v5148, 0
  %v5653 = vsel %vm1660, %v5150, 0
  %v5656 = vsel %vm1660, %v5152, 0
  %v5659 = vsel %vm1660, %v5154, 0
  %5661 = vmatpush.msra.mxu0 0.0
  %5662 = vmatpush.msra.mxu0 0.0
  %5663 = vmatpush.msra.mxu0 0.0
  %5664 = vmatpush.msra.mxu0 0.0
  %5665 = vmatpush.msra.mxu0 0.0
  %5666 = vmatpush.msra.mxu0 0.0
  %5667 = vmatpush.msra.mxu0 0.0
  %5668 = vmatpush.msra.mxu0 0.0
  %5669 = vmatpush.msra.mxu0 0.0
  %5670 = vmatpush.msra.mxu0 0.0
  %5671 = vmatpush.msra.mxu0 0.0
  %5672 = vmatpush.msra.mxu0 0.0
  %5673 = vmatpush.msra.mxu0 0.0
  %5674 = vmatpush.msra.mxu0 0.0
  %5675 = vmatpush.msra.mxu0 %v57
  %5676 = vmatpush.msra.mxu0 %v56
  %5677 = vmatmul.f32.gmra.mxu0 %v5614
  %v5678 = vpop.f32.mrf.mxu0
  %v5679 = vadd.f32 0.0, %v5678
  %5680 = vmatmul.f32.gmra.mxu0 %v5617
  %v5681 = vpop.f32.mrf.mxu0
  %v5682 = vadd.f32 0.0, %v5681
  %5683 = vmatmul.f32.gmra.mxu0 %v5620
  %v5684 = vpop.f32.mrf.mxu0
  %v5685 = vadd.f32 0.0, %v5684
  %5686 = vmatmul.f32.gmra.mxu0 %v5623
  %v5687 = vpop.f32.mrf.mxu0
  %v5688 = vadd.f32 0.0, %v5687
  %5689 = vmatmul.f32.gmra.mxu0 %v5626
  %v5690 = vpop.f32.mrf.mxu0
  %v5691 = vadd.f32 0.0, %v5690
  %5692 = vmatmul.f32.gmra.mxu0 %v5629
  %v5693 = vpop.f32.mrf.mxu0
  %v5694 = vadd.f32 0.0, %v5693
  %5695 = vmatmul.f32.gmra.mxu0 %v5632
  %v5696 = vpop.f32.mrf.mxu0
  %v5697 = vadd.f32 0.0, %v5696
  %5698 = vmatmul.f32.gmra.mxu0 %v5635
  %v5699 = vpop.f32.mrf.mxu0
  %v5700 = vadd.f32 0.0, %v5699
  %5701 = vmatmul.f32.gmra.mxu0 %v5638
  %v5702 = vpop.f32.mrf.mxu0
  %v5703 = vadd.f32 0.0, %v5702
  %5704 = vmatmul.f32.gmra.mxu0 %v5641
  %v5705 = vpop.f32.mrf.mxu0
  %v5706 = vadd.f32 0.0, %v5705
  %5707 = vmatmul.f32.gmra.mxu0 %v5644
  %v5708 = vpop.f32.mrf.mxu0
  %v5709 = vadd.f32 0.0, %v5708
  %5710 = vmatmul.f32.gmra.mxu0 %v5647
  %v5711 = vpop.f32.mrf.mxu0
  %v5712 = vadd.f32 0.0, %v5711
  %5713 = vmatmul.f32.gmra.mxu0 %v5650
  %v5714 = vpop.f32.mrf.mxu0
  %v5715 = vadd.f32 0.0, %v5714
  %5716 = vmatmul.f32.gmra.mxu0 %v5653
  %v5717 = vpop.f32.mrf.mxu0
  %v5718 = vadd.f32 0.0, %v5717
  %5719 = vmatmul.f32.gmra.mxu0 %v5656
  %v5720 = vpop.f32.mrf.mxu0
  %v5721 = vadd.f32 0.0, %v5720
  %5722 = vmatmul.f32.gmra.mxu0 %v5659
  %v5723 = vpop.f32.mrf.mxu0
  %v5724 = vadd.f32 0.0, %v5723
  %5725 = vdwg.mxu0
  %v5726 = vadd.f32 %v5597, %v5679
  %v5727 = vadd.f32 %v5598, %v5682
  %v5728 = vadd.f32 %v5599, %v5685
  %v5729 = vadd.f32 %v5600, %v5688
  %v5730 = vadd.f32 %v5601, %v5691
  %v5731 = vadd.f32 %v5602, %v5694
  %v5732 = vadd.f32 %v5603, %v5697
  %v5733 = vadd.f32 %v5604, %v5700
  %v5734 = vadd.f32 %v5605, %v5703
  %v5735 = vadd.f32 %v5606, %v5706
  %v5736 = vadd.f32 %v5607, %v5709
  %v5737 = vadd.f32 %v5608, %v5712
  %v5738 = vadd.f32 %v5609, %v5715
  %v5739 = vadd.f32 %v5610, %v5718
  %v5740 = vadd.f32 %v5611, %v5721
  %v5741 = vadd.f32 %v5612, %v5724
  %v5743 = vsel %vm1660, %v5101, 0
  %v5746 = vsel %vm1660, %v5119, 0
  %v5749 = vsel %vm1660, %v5137, 0
  %v5752 = vsel %vm1660, %v5155, 0
  %5754 = vmatpush.msra.mxu0 0.0
  %5755 = vmatpush.msra.mxu0 0.0
  %5756 = vmatpush.msra.mxu0 0.0
  %5757 = vmatpush.msra.mxu0 0.0
  %5758 = vmatpush.msra.mxu0 0.0
  %5759 = vmatpush.msra.mxu0 0.0
  %5760 = vmatpush.msra.mxu0 0.0
  %5761 = vmatpush.msra.mxu0 0.0
  %5762 = vmatpush.msra.mxu0 0.0
  %5763 = vmatpush.msra.mxu0 0.0
  %5764 = vmatpush.msra.mxu0 0.0
  %5765 = vmatpush.msra.mxu0 0.0
  %5766 = vmatpush.msra.mxu0 0.0
  %5767 = vmatpush.msra.mxu0 0.0
  %5768 = vmatpush.msra.mxu0 %v59
  %5769 = vmatpush.msra.mxu0 %v58
  %5770 = vmatmul.f32.gmra.mxu0 %v5488
  %v5771 = vpop.f32.mrf.mxu0
  %v5772 = vadd.f32 0.0, %v5771
  %5773 = vmatmul.f32.gmra.mxu0 %v5491
  %v5774 = vpop.f32.mrf.mxu0
  %v5775 = vadd.f32 0.0, %v5774
  %5776 = vmatmul.f32.gmra.mxu0 %v5494
  %v5777 = vpop.f32.mrf.mxu0
  %v5778 = vadd.f32 0.0, %v5777
  %5779 = vmatmul.f32.gmra.mxu0 %v5743
  %v5780 = vpop.f32.mrf.mxu0
  %v5781 = vadd.f32 0.0, %v5780
  %5782 = vmatmul.f32.gmra.mxu0 %v5500
  %v5783 = vpop.f32.mrf.mxu0
  %v5784 = vadd.f32 0.0, %v5783
  %5785 = vmatmul.f32.gmra.mxu0 %v5503
  %v5786 = vpop.f32.mrf.mxu0
  %v5787 = vadd.f32 0.0, %v5786
  %5788 = vmatmul.f32.gmra.mxu0 %v5506
  %v5789 = vpop.f32.mrf.mxu0
  %v5790 = vadd.f32 0.0, %v5789
  %5791 = vmatmul.f32.gmra.mxu0 %v5746
  %v5792 = vpop.f32.mrf.mxu0
  %v5793 = vadd.f32 0.0, %v5792
  %5794 = vmatmul.f32.gmra.mxu0 %v5512
  %v5795 = vpop.f32.mrf.mxu0
  %v5796 = vadd.f32 0.0, %v5795
  %5797 = vmatmul.f32.gmra.mxu0 %v5515
  %v5798 = vpop.f32.mrf.mxu0
  %v5799 = vadd.f32 0.0, %v5798
  %5800 = vmatmul.f32.gmra.mxu0 %v5518
  %v5801 = vpop.f32.mrf.mxu0
  %v5802 = vadd.f32 0.0, %v5801
  %5803 = vmatmul.f32.gmra.mxu0 %v5749
  %v5804 = vpop.f32.mrf.mxu0
  %v5805 = vadd.f32 0.0, %v5804
  %5806 = vmatmul.f32.gmra.mxu0 %v5524
  %v5807 = vpop.f32.mrf.mxu0
  %v5808 = vadd.f32 0.0, %v5807
  %5809 = vmatmul.f32.gmra.mxu0 %v5527
  %v5810 = vpop.f32.mrf.mxu0
  %v5811 = vadd.f32 0.0, %v5810
  %5812 = vmatmul.f32.gmra.mxu0 %v5530
  %v5813 = vpop.f32.mrf.mxu0
  %v5814 = vadd.f32 0.0, %v5813
  %5815 = vmatmul.f32.gmra.mxu0 %v5752
  %v5816 = vpop.f32.mrf.mxu0
  %v5817 = vadd.f32 0.0, %v5816
  %5818 = vdwg.mxu0
  %v5819 = vadd.f32 %v5726, %v5772
  %v5820 = vadd.f32 %v5727, %v5775
  %v5821 = vadd.f32 %v5728, %v5778
  %v5822 = vadd.f32 %v5729, %v5781
  %v5823 = vadd.f32 %v5730, %v5784
  %v5824 = vadd.f32 %v5731, %v5787
  %v5825 = vadd.f32 %v5732, %v5790
  %v5826 = vadd.f32 %v5733, %v5793
  %v5827 = vadd.f32 %v5734, %v5796
  %v5828 = vadd.f32 %v5735, %v5799
  %v5829 = vadd.f32 %v5736, %v5802
  %v5830 = vadd.f32 %v5737, %v5805
  %v5831 = vadd.f32 %v5738, %v5808
  %v5832 = vadd.f32 %v5739, %v5811
  %v5833 = vadd.f32 %v5740, %v5814
  %v5834 = vadd.f32 %v5741, %v5817
  %v5836 = vsel %vm1660, %v5156, 0
  %v5839 = vsel %vm1660, %v5158, 0
  %v5842 = vsel %vm1660, %v5160, 0
  %v5845 = vsel %vm1660, %v5162, 0
  %5847 = vmatpush.msra.mxu0 0.0
  %5848 = vmatpush.msra.mxu0 0.0
  %5849 = vmatpush.msra.mxu0 0.0
  %5850 = vmatpush.msra.mxu0 0.0
  %5851 = vmatpush.msra.mxu0 0.0
  %5852 = vmatpush.msra.mxu0 0.0
  %5853 = vmatpush.msra.mxu0 0.0
  %5854 = vmatpush.msra.mxu0 0.0
  %5855 = vmatpush.msra.mxu0 0.0
  %5856 = vmatpush.msra.mxu0 0.0
  %5857 = vmatpush.msra.mxu0 0.0
  %5858 = vmatpush.msra.mxu0 0.0
  %5859 = vmatpush.msra.mxu0 0.0
  %5860 = vmatpush.msra.mxu0 0.0
  %5861 = vmatpush.msra.mxu0 %v61
  %5862 = vmatpush.msra.mxu0 %v60
  %5863 = vmatmul.f32.gmra.mxu0 %v5291
  %v5864 = vpop.f32.mrf.mxu0
  %v5865 = vadd.f32 0.0, %v5864
  %5866 = vmatmul.f32.gmra.mxu0 %v5294
  %v5867 = vpop.f32.mrf.mxu0
  %v5868 = vadd.f32 0.0, %v5867
  %5869 = vmatmul.f32.gmra.mxu0 %v5297
  %v5870 = vpop.f32.mrf.mxu0
  %v5871 = vadd.f32 0.0, %v5870
  %5872 = vmatmul.f32.gmra.mxu0 %v5300
  %v5873 = vpop.f32.mrf.mxu0
  %v5874 = vadd.f32 0.0, %v5873
  %5875 = vmatmul.f32.gmra.mxu0 %v5303
  %v5876 = vpop.f32.mrf.mxu0
  %v5877 = vadd.f32 0.0, %v5876
  %5878 = vmatmul.f32.gmra.mxu0 %v5306
  %v5879 = vpop.f32.mrf.mxu0
  %v5880 = vadd.f32 0.0, %v5879
  %5881 = vmatmul.f32.gmra.mxu0 %v5309
  %v5882 = vpop.f32.mrf.mxu0
  %v5883 = vadd.f32 0.0, %v5882
  %5884 = vmatmul.f32.gmra.mxu0 %v5312
  %v5885 = vpop.f32.mrf.mxu0
  %v5886 = vadd.f32 0.0, %v5885
  %5887 = vmatmul.f32.gmra.mxu0 %v5315
  %v5888 = vpop.f32.mrf.mxu0
  %v5889 = vadd.f32 0.0, %v5888
  %5890 = vmatmul.f32.gmra.mxu0 %v5318
  %v5891 = vpop.f32.mrf.mxu0
  %v5892 = vadd.f32 0.0, %v5891
  %5893 = vmatmul.f32.gmra.mxu0 %v5321
  %v5894 = vpop.f32.mrf.mxu0
  %v5895 = vadd.f32 0.0, %v5894
  %5896 = vmatmul.f32.gmra.mxu0 %v5324
  %v5897 = vpop.f32.mrf.mxu0
  %v5898 = vadd.f32 0.0, %v5897
  %5899 = vmatmul.f32.gmra.mxu0 %v5836
  %v5900 = vpop.f32.mrf.mxu0
  %v5901 = vadd.f32 0.0, %v5900
  %5902 = vmatmul.f32.gmra.mxu0 %v5839
  %v5903 = vpop.f32.mrf.mxu0
  %v5904 = vadd.f32 0.0, %v5903
  %5905 = vmatmul.f32.gmra.mxu0 %v5842
  %v5906 = vpop.f32.mrf.mxu0
  %v5907 = vadd.f32 0.0, %v5906
  %5908 = vmatmul.f32.gmra.mxu0 %v5845
  %v5909 = vpop.f32.mrf.mxu0
  %v5910 = vadd.f32 0.0, %v5909
  %5911 = vdwg.mxu0
  %v5912 = vadd.f32 %v5819, %v5865
  %v5913 = vadd.f32 %v5820, %v5868
  %v5914 = vadd.f32 %v5821, %v5871
  %v5915 = vadd.f32 %v5822, %v5874
  %v5916 = vadd.f32 %v5823, %v5877
  %v5917 = vadd.f32 %v5824, %v5880
  %v5918 = vadd.f32 %v5825, %v5883
  %v5919 = vadd.f32 %v5826, %v5886
  %v5920 = vadd.f32 %v5827, %v5889
  %v5921 = vadd.f32 %v5828, %v5892
  %v5922 = vadd.f32 %v5829, %v5895
  %v5923 = vadd.f32 %v5830, %v5898
  %v5924 = vadd.f32 %v5831, %v5901
  %v5925 = vadd.f32 %v5832, %v5904
  %v5926 = vadd.f32 %v5833, %v5907
  %v5927 = vadd.f32 %v5834, %v5910
  %v5929 = vsel %vm1660, %v5157, 0
  %v5932 = vsel %vm1660, %v5159, 0
  %v5935 = vsel %vm1660, %v5161, 0
  %v5938 = vsel %vm1660, %v5163, 0
  %5940 = vmatpush.msra.mxu0 0.0
  %5941 = vmatpush.msra.mxu0 0.0
  %5942 = vmatpush.msra.mxu0 0.0
  %5943 = vmatpush.msra.mxu0 0.0
  %5944 = vmatpush.msra.mxu0 0.0
  %5945 = vmatpush.msra.mxu0 0.0
  %5946 = vmatpush.msra.mxu0 0.0
  %5947 = vmatpush.msra.mxu0 0.0
  %5948 = vmatpush.msra.mxu0 0.0
  %5949 = vmatpush.msra.mxu0 0.0
  %5950 = vmatpush.msra.mxu0 0.0
  %5951 = vmatpush.msra.mxu0 0.0
  %5952 = vmatpush.msra.mxu0 0.0
  %5953 = vmatpush.msra.mxu0 0.0
  %5954 = vmatpush.msra.mxu0 %v63
  %5955 = vmatpush.msra.mxu0 %v62
  %5956 = vmatmul.f32.gmra.mxu0 %v5178
  %v5957 = vpop.f32.mrf.mxu0
  %v5958 = vadd.f32 0.0, %v5957
  %5959 = vmatmul.f32.gmra.mxu0 %v5181
  %v5960 = vpop.f32.mrf.mxu0
  %v5961 = vadd.f32 0.0, %v5960
  %5962 = vmatmul.f32.gmra.mxu0 %v5184
  %v5963 = vpop.f32.mrf.mxu0
  %v5964 = vadd.f32 0.0, %v5963
  %5965 = vmatmul.f32.gmra.mxu0 %v5187
  %v5966 = vpop.f32.mrf.mxu0
  %v5967 = vadd.f32 0.0, %v5966
  %5968 = vmatmul.f32.gmra.mxu0 %v5190
  %v5969 = vpop.f32.mrf.mxu0
  %v5970 = vadd.f32 0.0, %v5969
  %5971 = vmatmul.f32.gmra.mxu0 %v5193
  %v5972 = vpop.f32.mrf.mxu0
  %v5973 = vadd.f32 0.0, %v5972
  %5974 = vmatmul.f32.gmra.mxu0 %v5196
  %v5975 = vpop.f32.mrf.mxu0
  %v5976 = vadd.f32 0.0, %v5975
  %5977 = vmatmul.f32.gmra.mxu0 %v5199
  %v5978 = vpop.f32.mrf.mxu0
  %v5979 = vadd.f32 0.0, %v5978
  %5980 = vmatmul.f32.gmra.mxu0 %v5202
  %v5981 = vpop.f32.mrf.mxu0
  %v5982 = vadd.f32 0.0, %v5981
  %5983 = vmatmul.f32.gmra.mxu0 %v5205
  %v5984 = vpop.f32.mrf.mxu0
  %v5985 = vadd.f32 0.0, %v5984
  %5986 = vmatmul.f32.gmra.mxu0 %v5208
  %v5987 = vpop.f32.mrf.mxu0
  %v5988 = vadd.f32 0.0, %v5987
  %5989 = vmatmul.f32.gmra.mxu0 %v5211
  %v5990 = vpop.f32.mrf.mxu0
  %v5991 = vadd.f32 0.0, %v5990
  %5992 = vmatmul.f32.gmra.mxu0 %v5929
  %v5993 = vpop.f32.mrf.mxu0
  %v5994 = vadd.f32 0.0, %v5993
  %5995 = vmatmul.f32.gmra.mxu0 %v5932
  %v5996 = vpop.f32.mrf.mxu0
  %v5997 = vadd.f32 0.0, %v5996
  %5998 = vmatmul.f32.gmra.mxu0 %v5935
  %v5999 = vpop.f32.mrf.mxu0
  %v6000 = vadd.f32 0.0, %v5999
  %6001 = vmatmul.f32.gmra.mxu0 %v5938
  %v6002 = vpop.f32.mrf.mxu0
  %v6003 = vadd.f32 0.0, %v6002
  %6004 = vdwg.mxu0
  %v6005 = vadd.f32 %v5912, %v5958
  %v6006 = vadd.f32 %v5913, %v5961
  %v6007 = vadd.f32 %v5914, %v5964
  %v6008 = vadd.f32 %v5915, %v5967
  %v6009 = vadd.f32 %v5916, %v5970
  %v6010 = vadd.f32 %v5917, %v5973
  %v6011 = vadd.f32 %v5918, %v5976
  %v6012 = vadd.f32 %v5919, %v5979
  %v6013 = vadd.f32 %v5920, %v5982
  %v6014 = vadd.f32 %v5921, %v5985
  %v6015 = vadd.f32 %v5922, %v5988
  %v6016 = vadd.f32 %v5923, %v5991
  %v6017 = vadd.f32 %v5924, %v5994
  %v6018 = vadd.f32 %v5925, %v5997
  %v6019 = vadd.f32 %v5926, %v6000
  %v6020 = vadd.f32 %v5927, %v6003
  %v6022 = vsel %vm1660, %v5164, 0
  %6024 = vmatpush.msra.mxu0 0.0
  %6025 = vmatpush.msra.mxu0 0.0
  %6026 = vmatpush.msra.mxu0 0.0
  %6027 = vmatpush.msra.mxu0 0.0
  %6028 = vmatpush.msra.mxu0 0.0
  %6029 = vmatpush.msra.mxu0 0.0
  %6030 = vmatpush.msra.mxu0 0.0
  %6031 = vmatpush.msra.mxu0 0.0
  %6032 = vmatpush.msra.mxu0 0.0
  %6033 = vmatpush.msra.mxu0 0.0
  %6034 = vmatpush.msra.mxu0 0.0
  %6035 = vmatpush.msra.mxu0 0.0
  %6036 = vmatpush.msra.mxu0 0.0
  %6037 = vmatpush.msra.mxu0 0.0
  %6038 = vmatpush.msra.mxu0 %v65
  %6039 = vmatpush.msra.mxu0 %v64
  %6040 = vmatmul.f32.gmra.mxu0 %v5294
  %v6041 = vpop.f32.mrf.mxu0
  %v6042 = vadd.f32 0.0, %v6041
  %6043 = vmatmul.f32.gmra.mxu0 %v5297
  %v6044 = vpop.f32.mrf.mxu0
  %v6045 = vadd.f32 0.0, %v6044
  %6046 = vmatmul.f32.gmra.mxu0 %v5300
  %v6047 = vpop.f32.mrf.mxu0
  %v6048 = vadd.f32 0.0, %v6047
  %6049 = vmatmul.f32.gmra.mxu0 %v5395
  %v6050 = vpop.f32.mrf.mxu0
  %v6051 = vadd.f32 0.0, %v6050
  %6052 = vmatmul.f32.gmra.mxu0 %v5306
  %v6053 = vpop.f32.mrf.mxu0
  %v6054 = vadd.f32 0.0, %v6053
  %6055 = vmatmul.f32.gmra.mxu0 %v5309
  %v6056 = vpop.f32.mrf.mxu0
  %v6057 = vadd.f32 0.0, %v6056
  %6058 = vmatmul.f32.gmra.mxu0 %v5312
  %v6059 = vpop.f32.mrf.mxu0
  %v6060 = vadd.f32 0.0, %v6059
  %6061 = vmatmul.f32.gmra.mxu0 %v5398
  %v6062 = vpop.f32.mrf.mxu0
  %v6063 = vadd.f32 0.0, %v6062
  %6064 = vmatmul.f32.gmra.mxu0 %v5318
  %v6065 = vpop.f32.mrf.mxu0
  %v6066 = vadd.f32 0.0, %v6065
  %6067 = vmatmul.f32.gmra.mxu0 %v5321
  %v6068 = vpop.f32.mrf.mxu0
  %v6069 = vadd.f32 0.0, %v6068
  %6070 = vmatmul.f32.gmra.mxu0 %v5324
  %v6071 = vpop.f32.mrf.mxu0
  %v6072 = vadd.f32 0.0, %v6071
  %6073 = vmatmul.f32.gmra.mxu0 %v5401
  %v6074 = vpop.f32.mrf.mxu0
  %v6075 = vadd.f32 0.0, %v6074
  %6076 = vmatmul.f32.gmra.mxu0 %v5839
  %v6077 = vpop.f32.mrf.mxu0
  %v6078 = vadd.f32 0.0, %v6077
  %6079 = vmatmul.f32.gmra.mxu0 %v5842
  %v6080 = vpop.f32.mrf.mxu0
  %v6081 = vadd.f32 0.0, %v6080
  %6082 = vmatmul.f32.gmra.mxu0 %v5845
  %v6083 = vpop.f32.mrf.mxu0
  %v6084 = vadd.f32 0.0, %v6083
  %6085 = vmatmul.f32.gmra.mxu0 %v6022
  %v6086 = vpop.f32.mrf.mxu0
  %v6087 = vadd.f32 0.0, %v6086
  %6088 = vdwg.mxu0
  %v6089 = vadd.f32 %v6005, %v6042
  %v6090 = vadd.f32 %v6006, %v6045
  %v6091 = vadd.f32 %v6007, %v6048
  %v6092 = vadd.f32 %v6008, %v6051
  %v6093 = vadd.f32 %v6009, %v6054
  %v6094 = vadd.f32 %v6010, %v6057
  %v6095 = vadd.f32 %v6011, %v6060
  %v6096 = vadd.f32 %v6012, %v6063
  %v6097 = vadd.f32 %v6013, %v6066
  %v6098 = vadd.f32 %v6014, %v6069
  %v6099 = vadd.f32 %v6015, %v6072
  %v6100 = vadd.f32 %v6016, %v6075
  %v6101 = vadd.f32 %v6017, %v6078
  %v6102 = vadd.f32 %v6018, %v6081
  %v6103 = vadd.f32 %v6019, %v6084
  %v6104 = vadd.f32 %v6020, %v6087
  %v6106 = vperm.slane %v66, 0
  %v6108 = vadd.f32 %v6089, %v6106
  %v6109 = vadd.f32 %v6090, %v6106
  %v6110 = vadd.f32 %v6091, %v6106
  %v6111 = vadd.f32 %v6092, %v6106
  %v6112 = vadd.f32 %v6093, %v6106
  %v6113 = vadd.f32 %v6094, %v6106
  %v6114 = vadd.f32 %v6095, %v6106
  %v6115 = vadd.f32 %v6096, %v6106
  %v6116 = vadd.f32 %v6097, %v6106
  %v6117 = vadd.f32 %v6098, %v6106
  %v6118 = vadd.f32 %v6099, %v6106
  %v6119 = vadd.f32 %v6100, %v6106
  %v6120 = vadd.f32 %v6101, %v6106
  %v6121 = vadd.f32 %v6102, %v6106
  %v6122 = vadd.f32 %v6103, %v6106
  %v6123 = vadd.f32 %v6104, %v6106
  %v6124 = vmax.f32 %v6108, 0.0
  %v6125 = vmax.f32 %v6109, 0.0
  %v6126 = vmax.f32 %v6110, 0.0
  %v6127 = vmax.f32 %v6111, 0.0
  %v6128 = vmax.f32 %v6112, 0.0
  %v6129 = vmax.f32 %v6113, 0.0
  %v6130 = vmax.f32 %v6114, 0.0
  %v6131 = vmax.f32 %v6115, 0.0
  %v6132 = vmax.f32 %v6116, 0.0
  %v6133 = vmax.f32 %v6117, 0.0
  %v6134 = vmax.f32 %v6118, 0.0
  %v6135 = vmax.f32 %v6119, 0.0
  %v6136 = vmax.f32 %v6120, 0.0
  %v6137 = vmax.f32 %v6121, 0.0
  %v6138 = vmax.f32 %v6122, 0.0
  %v6139 = vmax.f32 %v6123, 0.0
  %vm6140 = vcmask 80896
  %v6141 = vsel %vm6140, %v6124, 0.0
  %v6142 = vsel %vm6140, %v6125, 0.0
  %v6143 = vadd.f32 %v6141, %v6142
  %v6144 = vsel %vm6140, %v6126, 0.0
  %v6145 = vadd.f32 %v6143, %v6144
  %v6146 = vsel %vm6140, %v6127, 0.0
  %v6147 = vadd.f32 %v6145, %v6146
  %v6148 = vsel %vm6140, %v6128, 0.0
  %v6149 = vadd.f32 %v6147, %v6148
  %v6150 = vsel %vm6140, %v6129, 0.0
  %v6151 = vadd.f32 %v6149, %v6150
  %v6152 = vsel %vm6140, %v6130, 0.0
  %v6153 = vadd.f32 %v6151, %v6152
  %v6154 = vsel %vm6140, %v6131, 0.0
  %v6155 = vadd.f32 %v6153, %v6154
  %v6156 = vsel %vm6140, %v6132, 0.0
  %v6157 = vadd.f32 %v6155, %v6156
  %v6158 = vsel %vm6140, %v6133, 0.0
  %v6159 = vadd.f32 %v6157, %v6158
  %v6160 = vsel %vm6140, %v6134, 0.0
  %v6161 = vadd.f32 %v6159, %v6160
  %v6162 = vsel %vm6140, %v6135, 0.0
  %v6163 = vadd.f32 %v6161, %v6162
  %v6164 = vsel %vm6140, %v6136, 0.0
  %v6165 = vadd.f32 %v6163, %v6164
  %v6166 = vsel %vm6140, %v6137, 0.0
  %v6167 = vadd.f32 %v6165, %v6166
  %v6168 = vsel %vm6140, %v6138, 0.0
  %v6169 = vadd.f32 %v6167, %v6168
  %v6170 = vsel %vm6140, %v6139, 0.0
  %v6171 = vadd.f32 %v6169, %v6170
  %v6172 = vrcp.pop 16.0
  %v6173 = vmul.f32 16.0, %v6172
  %v6174 = vsub.f32 1.0, %v6173
  %v6175 = vmul.f32 %v6172, %v6174
  %v6176 = vadd.f32 %v6172, %v6175
  %vm6177 = vweird.f32 %v6172
  %v6178 = vsel %vm6177, %v6172, %v6176
  %v6179 = vmul.f32 %v6171, %v6178
  %6180 = vst.msk [vmem:[%s7] sm:$0xff] %vm6140, %v6179
  // Predicated region
  $region30: #{my_model_forward.1} parent=0 // pred_check
    _
  $region31: #{my_model_forward.1} parent=0 // pred_check_branch
    %6182 = sbr.rel (0) target = $region33
  $region32: #{my_model_forward.1} parent=0 // pred_region
    _
  $region33: #{my_model_forward.1} parent=0 // pred_fallthru
    _
  // Predicated region
  $region34: #{my_model_forward.1} parent=0 // pred_check
    _
  $region35: #{my_model_forward.1} parent=0 // pred_check_branch
    %6184 = sbr.rel (0) target = $region37
  $region36: #{my_model_forward.1} parent=0 // pred_region
    _
  $region37: #{my_model_forward.1} parent=0 // pred_fallthru
    _

</llo_original>
